<compile_context>
chip_gen: v6e
topology: v6e:2x2x1
jax: 0.10.0
libtpu: 0.0.40
codegen_flags: <defaults>
</compile_context>

<pallas_src>
import functools
import math

import jax
import jax.numpy as jnp
from jax.experimental import pallas as pl
from jax.experimental.pallas import tpu as pltpu

_BN_EPS = 1e-5
_LANE = 128
_VMEM_LIMIT = 32 * 1024 * 1024   # above v5e's 16 MiB scoped default, <= v7x physical


# ---------------------------------------------------------------------------
# Pallas kernels
# ---------------------------------------------------------------------------
def _trunk_kernel(*refs, block_has_ds):
    """Fused stem + all 1x1 residual blocks + pooled partial sums, per M-tile.

    refs = (cols, pool_T, stem_w, stem_b, [w1(|wd), b1(|bd), w2, b2] * nblocks,
            psums_out)

    Matmuls run on bf16 operands with f32 accumulation; bias / residual /
    ReLU epilogues stay in f32 (friendly to v5e's f32-only VPU).  For blocks
    with a downsample branch, w1 and wd are pre-concatenated along the output
    dim so one wide matmul feeds both the main path and the shortcut
    (full-width fill of the 256-wide MXU on v6e/v7x).  All intermediate
    activations stay resident in VMEM; only a (1, N_pad, C) pooled partial
    sum per tile goes back to HBM.
    """
    cols_ref, pool_ref, stem_w_ref, stem_b_ref = refs[0], refs[1], refs[2], refs[3]
    o_ref = refs[-1]
    blk_refs = refs[4:-1]

    # Composed stem conv (1x1 ∘ 3x3, BN1 scale pre-folded) + bias + ReLU.
    x = jnp.dot(cols_ref[...], stem_w_ref[...],
                preferred_element_type=jnp.float32)
    x = jnp.maximum(x + stem_b_ref[...], 0.0)             # (tm, 128) f32

    idx = 0
    for has_ds in block_has_ds:                           # unrolled at trace
        w1 = blk_refs[idx][...]                           # fused w1||wd if has_ds
        b1 = blk_refs[idx + 1][...]
        w2 = blk_refs[idx + 2][...]
        b2 = blk_refs[idx + 3][...]
        idx += 4
        cout = w2.shape[0]                                # padded output width

        xb = x.astype(w1.dtype)                           # bf16 MXU operand
        hr = jnp.dot(xb, w1, preferred_element_type=jnp.float32) + b1
        if has_ds:
            h = jnp.maximum(hr[:, :cout], 0.0)            # main branch (pre-relu'd)
            res = hr[:, cout:]                            # 1x1 conv + BN shortcut
        else:
            h = jnp.maximum(hr, 0.0)
            res = x                                       # identity shortcut

        y = jnp.dot(h.astype(w2.dtype), w2,
                    preferred_element_type=jnp.float32) + b2 + res
        x = jnp.maximum(y, 0.0)

    # Fused global-average-pool partial sums: (N_pad, tm) @ (tm, C) -> (N_pad, C).
    # pool_T is a 0/1 row->batch map with zero columns for padded rows, so the
    # garbage activations of padding rows are masked out by construction.
    psum = jnp.dot(pool_ref[...], x.astype(jnp.bfloat16),
                   preferred_element_type=jnp.float32)
    o_ref[0] = psum


def _fc_kernel(ps_ref, w_ref, b_ref, o_ref, *, inv_hw):
    """Sum per-tile pool partials, scale by 1/HW, fused fc matmul + bias."""
    pooled = jnp.sum(ps_ref[...], axis=0) * inv_hw        # (nb, 512) f32
    y = jnp.dot(pooled.astype(w_ref.dtype), w_ref[...],
                preferred_element_type=jnp.float32) + b_ref[...]
    o_ref[...] = y


# ---------------------------------------------------------------------------
# pallas_call wrappers
# ---------------------------------------------------------------------------
def _const_spec(shape):
    """Whole-array block that stays resident across the (1-D) grid."""
    zeros = (0,) * len(shape)
    return pl.BlockSpec(shape, lambda i, _z=zeros: _z)


def _choose_tm(m, *, min_tm=128, max_tm=512, target_tiles=8):
    """Adaptive M tile: multiple of 128 (lane-aligned pool-matrix blocks),
    small enough for >= target_tiles grid steps at small M, capped at 512 so
    the f32 working set stays well inside the scoped VMEM on every gen
    (including v7x's 64 MiB/TC)."""
    tm = pl.cdiv(m, target_tiles)
    tm = ((tm + min_tm - 1) // min_tm) * min_tm
    return max(min_tm, min(max_tm, tm))


def _trunk_call(params, meta, cols, pool_t, tm, m_true):
    """One fused pallas_call: stem + all residual blocks + pooled partials."""
    blocks = params["blocks"]
    block_meta = meta[1]
    has_ds = tuple(bm[2] for bm in block_meta)
    mp, kcols = cols.shape
    np_, _ = pool_t.shape
    coutp = blocks[-1]["w2"].shape[1]
    n_tiles = mp // tm

    args = [cols, pool_t, params["stem_w"], params["stem_b"]]
    in_specs = [
        pl.BlockSpec((tm, kcols), lambda i: (i, 0)),
        pl.BlockSpec((np_, tm), lambda i: (0, i)),
        _const_spec(params["stem_w"].shape),
        _const_spec(params["stem_b"].shape),
    ]
    for b in blocks:
        for name in ("w1", "b1", "w2", "b2"):
            args.append(b[name])
            in_specs.append(_const_spec(b[name].shape))

    # Cost estimate from the TRUE (unpadded) channel widths.
    stem_k, stem_cout = meta[0]
    flops = 2 * m_true * stem_k * stem_cout
    for cin, cout, ds in block_meta:
        flops += 2 * m_true * (cin * cout * (2 if ds else 1) + cout * cout)
    flops += 2 * m_true * block_meta[-1][1]               # pool partial sums
    bytes_acc = sum(a.size * a.dtype.itemsize for a in args)
    bytes_acc += n_tiles * np_ * coutp * 4                # f32 pooled partials

    kernel = functools.partial(_trunk_kernel, block_has_ds=has_ds)
    return pl.pallas_call(
        kernel,
        out_shape=jax.ShapeDtypeStruct((n_tiles, np_, coutp), jnp.float32),
        grid=(n_tiles,),
        in_specs=in_specs,
        out_specs=pl.BlockSpec((1, np_, coutp), lambda i: (i, 0, 0)),
        compiler_params=pltpu.CompilerParams(
            dimension_semantics=("parallel",),
            vmem_limit_bytes=_VMEM_LIMIT),
        cost_estimate=pl.CostEstimate(flops=int(flops), transcendentals=0,
                                      bytes_accessed=int(bytes_acc)),
    )(*args)


def _fc_call(params, psums, inv_hw):
    """Tiny second kernel: reduce pool partials + fc, tiled over batch rows."""
    t, np_, c = psums.shape
    fc_w, fc_b = params["fc_w"], params["fc_b"]
    ncp = fc_w.shape[1]
    nb = 8                                                # sublane-aligned batch tile
    kernel = functools.partial(_fc_kernel, inv_hw=inv_hw)
    return pl.pallas_call(
        kernel,
        out_shape=jax.ShapeDtypeStruct((np_, ncp), jnp.float32),
        grid=(np_ // nb,),
        in_specs=[pl.BlockSpec((t, nb, c), lambda i: (0, i, 0)),
                  _const_spec(fc_w.shape),
                  _const_spec(fc_b.shape)],
        out_specs=pl.BlockSpec((nb, ncp), lambda i: (i, 0)),
        compiler_params=pltpu.CompilerParams(
            dimension_semantics=("parallel",),
            vmem_limit_bytes=_VMEM_LIMIT),
    )(psums, fc_w, fc_b)


# ---------------------------------------------------------------------------
# Forward pass (avg_pool=True path)
# ---------------------------------------------------------------------------
def resnet_forward(params, x_nchw, *, meta, num_classes, tm=None):
    # Cast to bf16 BEFORE im2col so the 9x-expanded cols never exists in f32.
    x = jnp.transpose(x_nchw, (0, 2, 3, 1)).astype(jnp.bfloat16)     # -> NHWC
    n, h, w, c = x.shape
    ho, wo = h - 2, w - 2
    hw = ho * wo
    m = n * hw

    if tm is None:
        tm = _choose_tm(m)
    n_tiles = pl.cdiv(m, tm)
    n_tiles += n_tiles % 2          # even tile count -> both v7x TCs get equal work
    mp = n_tiles * tm

    # im2col on the raw 3-channel input (tap-major, channel-minor ordering,
    # matching the composed stem weight): only 9*3 = 27 columns.
    cols = jnp.concatenate(
        [x[:, dh:dh + ho, dw:dw + wo, :] for dh in range(3) for dw in range(3)],
        axis=-1).reshape(m, 9 * c)
    kp = params["stem_w"].shape[0]
    cols = jnp.pad(cols, ((0, mp - m), (0, kp - 9 * c)))

    # Transposed one-hot row->batch pooling matrix (N_pad, mp):
    #  * zero COLUMNS for the padded rows (masks garbage activations),
    #  * zero ROWS for the padded batch slots.
    np_ = max(8, ((n + 7) // 8) * 8)
    rows = jnp.arange(mp)
    pool_t = ((jnp.arange(np_)[:, None] == (rows // hw)[None, :])
              & (rows < m)[None, :]).astype(jnp.bfloat16)

    psums = _trunk_call(params, meta, cols, pool_t, tm, m)   # (T, np_, 512) f32
    logits = _fc_call(params, psums, 1.0 / hw)               # (np_, padded_nc) f32
    return logits[:n, :num_classes]


# ---------------------------------------------------------------------------
# Parameter construction (mirrors PyTorch __init__ semantics) + inference prep
# ---------------------------------------------------------------------------
def _bn_fold(c):
    """Eval-mode BN with gamma=1, beta=0, running_mean=0, running_var=1."""
    scale = jnp.full((c,), 1.0 / math.sqrt(1.0 + _BN_EPS), jnp.float32)
    bias = jnp.zeros((c,), jnp.float32)
    return scale, bias


def _pad2(a, rows, cols):
    r, c = a.shape
    return jnp.pad(a, ((0, rows - r), (0, cols - c)))


def init_params(key, layers=(1, 1, 1, 1), num_classes=10):
    """Raw parameters (matmul layout), matching the PyTorch init recipe."""
    keys = iter(jax.random.split(key, 256))

    def conv_w(cin, cout, k=1):
        # PyTorch: normal(0, sqrt(2 / (kh*kw*out_channels))), laid out as
        # (k*k*cin, cout) for conv-as-matmul.
        std = math.sqrt(2.0 / (k * k * cout))
        return jax.random.normal(next(keys), (k * k * cin, cout), jnp.float32) * std

    params = {"conv1_w": conv_w(3, 64, k=1), "conv2_w": conv_w(64, 64, k=3)}

    inplanes = 64
    params["layers"] = []
    for planes, nblocks in zip((64, 128, 256, 512), layers):
        layer = []
        for _ in range(nblocks):
            blk = {"w1": conv_w(inplanes, planes), "w2": conv_w(planes, planes)}
            if inplanes != planes:                     # 1x1 downsample + bn
                blk["wd"] = conv_w(inplanes, planes)
            layer.append(blk)
            inplanes = planes
        params["layers"].append(layer)

    # nn.Linear default init: U(-1/sqrt(fan_in), 1/sqrt(fan_in))
    bound = 1.0 / math.sqrt(512)
    params["fc_w"] = jax.random.uniform(next(keys), (512, num_classes),
                                        jnp.float32, -bound, bound)
    params["fc_b"] = jax.random.uniform(next(keys), (num_classes,),
                                        jnp.float32, -bound, bound)
    return params


def prepare_params(raw):
    """Compose the stem convs, fold BN scales into weights, concatenate w1||wd
    for downsample blocks (one wide MXU-filling matmul), pad every sub-128
    channel dim to 128 (lane-dense), cast matmul weights to bf16 (biases f32).

    Returns (params_pytree, meta) where meta is a hashable static description
    ((stem_k, stem_cout), ((cin, cout, has_ds), ...)) used for kernel
    specialization and true-FLOP cost estimates.
    """
    prep = {}

    # conv1 (1x1, no BN/ReLU) composed into conv2 (3x3), then bn1 scale folded.
    s1, b1 = _bn_fold(64)
    w2r = raw["conv2_w"].reshape(9, 64, 64)
    wc = jnp.einsum("cm,tmo->tco", raw["conv1_w"], w2r).reshape(27, 64)
    wc = wc * s1[None, :]
    # Pad K 27 -> 32 (sublane-aligned) and Cout 64 -> 128 (lane-dense).
    prep["stem_w"] = _pad2(wc, 32, _LANE).astype(jnp.bfloat16)
    prep["stem_b"] = _pad2(b1.reshape(1, -1), 1, _LANE)              # f32

    blocks = []
    meta_blocks = []
    for layer in raw["layers"]:
        for blk in layer:
            cin, cout = blk["w1"].shape
            cinp, coutp = max(cin, _LANE), max(cout, _LANE)
            has_ds = "wd" in blk

            s, b = _bn_fold(cout)
            w1 = _pad2(blk["w1"] * s[None, :], cinp, coutp)
            b1v = _pad2(b.reshape(1, -1), 1, coutp)
            if has_ds:
                s, b = _bn_fold(cout)
                wd = _pad2(blk["wd"] * s[None, :], cinp, coutp)
                bd = _pad2(b.reshape(1, -1), 1, coutp)
                w1 = jnp.concatenate([w1, wd], axis=1)   # (cinp, 2*coutp)
                b1v = jnp.concatenate([b1v, bd], axis=1)

            s, b = _bn_fold(cout)
            w2 = _pad2(blk["w2"] * s[None, :], coutp, coutp)
            b2 = _pad2(b.reshape(1, -1), 1, coutp)

            blocks.append({"w1": w1.astype(jnp.bfloat16), "b1": b1v,
                           "w2": w2.astype(jnp.bfloat16), "b2": b2})
            meta_blocks.append((cin, cout, has_ds))
    prep["blocks"] = blocks

    nc = raw["fc_w"].shape[1]
    ncp = pl.cdiv(nc, _LANE) * _LANE
    prep["fc_w"] = _pad2(raw["fc_w"], 512, ncp).astype(jnp.bfloat16)
    prep["fc_b"] = _pad2(raw["fc_b"].reshape(1, -1), 1, ncp)

    meta = ((27, 64), tuple(meta_blocks))
    return prep, meta


# ---------------------------------------------------------------------------
if __name__ == "__main__":
    key = jax.random.PRNGKey(0)
    pkey, xkey = jax.random.split(key)

    num_classes = 10
    raw = init_params(pkey, layers=(1, 1, 1, 1), num_classes=num_classes)
    params, meta = prepare_params(raw)

    x = jax.random.normal(xkey, (2, 3, 16, 16), jnp.float32)  # NCHW input

    fwd = jax.jit(resnet_forward, static_argnames=("meta", "num_classes", "tm"))
    out = fwd(params, x, meta=meta, num_classes=num_classes)
    out = jax.block_until_ready(out)

    assert out.shape == (2, num_classes), out.shape
    assert bool(jnp.all(jnp.isfinite(out)))
    print("KERNEL_OK")
</pallas_src>

<mosaic_0001>
module attributes {stable_mosaic.version = 11 : i64} {
  func.func @_fc_kernel(%arg0: i32, %arg1: memref<4x8x512xf32, #tpu.memory_space<vmem>>, %arg2: memref<512x128xbf16, #tpu.memory_space<vmem>>, %arg3: memref<1x128xf32, #tpu.memory_space<vmem>>, %arg4: memref<8x128xf32, #tpu.memory_space<vmem>>) attributes {dimension_semantics = [#tpu.dimension_semantics<parallel>], iteration_bounds = array<i64: 1>, scalar_prefetch = 0 : i64, scratch_operands = 0 : i64, tpu.core_type = #tpu.core_type<tc>, window_params = [{transform_indices = @transform_0, window_bounds = array<i64: 4, 8, 512>}, {pipeline_mode = #tpu.pipeline_mode<synchronous>, transform_indices = @transform_1, window_bounds = array<i64: 512, 128>}, {pipeline_mode = #tpu.pipeline_mode<synchronous>, transform_indices = @transform_2, window_bounds = array<i64: 1, 128>}, {transform_indices = @transform_3, window_bounds = array<i64: 8, 128>}]} {
    %c0 = arith.constant 0 : index
    %c0_0 = arith.constant 0 : index
    %c0_1 = arith.constant 0 : index
    %0 = vector.load %arg1[%c0, %c0_0, %c0_1] : memref<4x8x512xf32, #tpu.memory_space<vmem>>, vector<4x8x512xf32>
    %cst = arith.constant dense<0.000000e+00> : vector<8x512xf32>
    %1 = vector.multi_reduction <add>, %0, %cst [0] : vector<4x8x512xf32> to vector<8x512xf32>
    %cst_2 = arith.constant 0.00510204071 : f32
    %2 = vector.broadcast %cst_2 : f32 to vector<8x512xf32>
    %3 = arith.mulf %1, %2 : vector<8x512xf32>
    %4 = arith.truncf %3 : vector<8x512xf32> to vector<8x512xbf16>
    %c0_3 = arith.constant 0 : index
    %c0_4 = arith.constant 0 : index
    %5 = vector.load %arg2[%c0_3, %c0_4] : memref<512x128xbf16, #tpu.memory_space<vmem>>, vector<512x128xbf16>
    %cst_5 = arith.constant dense<0.000000e+00> : vector<8x128xf32>
    %6 = tpu.matmul %4, %5, %cst_5 {dimension_numbers = #tpu.dot_dimension_numbers<[1], [0], [0], [1], [0, 0, 1, 1], [], []>} : vector<8x512xbf16>, vector<512x128xbf16>, vector<8x128xf32> -> vector<8x128xf32>
    %c0_6 = arith.constant 0 : index
    %c0_7 = arith.constant 0 : index
    %7 = vector.load %arg3[%c0_6, %c0_7] : memref<1x128xf32, #tpu.memory_space<vmem>>, vector<1x128xf32>
    %8 = vector.broadcast %7 : vector<1x128xf32> to vector<8x128xf32>
    %9 = arith.addf %6, %8 : vector<8x128xf32>
    %c0_8 = arith.constant 0 : index
    %c0_9 = arith.constant 0 : index
    %10 = vector.load %arg4[%c0_8, %c0_9] : memref<8x128xf32, #tpu.memory_space<vmem>>, vector<8x128xf32>
    tpu.vector_store %arg4[%c0_8, %c0_9], %9 {strides = array<i32>} : memref<8x128xf32, #tpu.memory_space<vmem>>, vector<8x128xf32>,
    return
  }
  func.func @transform_0(%arg0: i32) -> (i32, i32, i32) {
    %c0_i32 = arith.constant 0 : i32
    %c0_i32_0 = arith.constant 0 : i32
    %c0_i32_1 = arith.constant 0 : i32
    return %c0_i32, %arg0, %c0_i32_0 : i32, i32, i32
  }
  func.func @transform_1(%arg0: i32) -> (i32, i32) {
    %c0_i32 = arith.constant 0 : i32
    %c0_i32_0 = arith.constant 0 : i32
    %c0_i32_1 = arith.constant 0 : i32
    return %c0_i32, %c0_i32_0 : i32, i32
  }
  func.func @transform_2(%arg0: i32) -> (i32, i32) {
    %c0_i32 = arith.constant 0 : i32
    %c0_i32_0 = arith.constant 0 : i32
    %c0_i32_1 = arith.constant 0 : i32
    return %c0_i32, %c0_i32_0 : i32, i32
  }
  func.func @transform_3(%arg0: i32) -> (i32, i32) {
    %c0_i32 = arith.constant 0 : i32
    %c0_i32_0 = arith.constant 0 : i32
    return %arg0, %c0_i32 : i32, i32
  }
}

module attributes {stable_mosaic.version = 11 : i64} {
  func.func @_trunk_kernel(%arg0: i32, %arg1: memref<128x32xbf16, #tpu.memory_space<vmem>>, %arg2: memref<8x128xbf16, #tpu.memory_space<vmem>>, %arg3: memref<32x128xbf16, #tpu.memory_space<vmem>>, %arg4: memref<1x128xf32, #tpu.memory_space<vmem>>, %arg5: memref<128x128xbf16, #tpu.memory_space<vmem>>, %arg6: memref<1x128xf32, #tpu.memory_space<vmem>>, %arg7: memref<128x128xbf16, #tpu.memory_space<vmem>>, %arg8: memref<1x128xf32, #tpu.memory_space<vmem>>, %arg9: memref<128x256xbf16, #tpu.memory_space<vmem>>, %arg10: memref<1x256xf32, #tpu.memory_space<vmem>>, %arg11: memref<128x128xbf16, #tpu.memory_space<vmem>>, %arg12: memref<1x128xf32, #tpu.memory_space<vmem>>, %arg13: memref<128x512xbf16, #tpu.memory_space<vmem>>, %arg14: memref<1x512xf32, #tpu.memory_space<vmem>>, %arg15: memref<256x256xbf16, #tpu.memory_space<vmem>>, %arg16: memref<1x256xf32, #tpu.memory_space<vmem>>, %arg17: memref<256x1024xbf16, #tpu.memory_space<vmem>>, %arg18: memref<1x1024xf32, #tpu.memory_space<vmem>>, %arg19: memref<512x512xbf16, #tpu.memory_space<vmem>>, %arg20: memref<1x512xf32, #tpu.memory_space<vmem>>, %arg21: memref<1x8x512xf32, #tpu.memory_space<vmem>>) attributes {dimension_semantics = [#tpu.dimension_semantics<parallel>], iteration_bounds = array<i64: 4>, scalar_prefetch = 0 : i64, scratch_operands = 0 : i64, tpu.core_type = #tpu.core_type<tc>, window_params = [{transform_indices = @transform_0, window_bounds = array<i64: 128, 32>}, {transform_indices = @transform_1, window_bounds = array<i64: 8, 128>}, {pipeline_mode = #tpu.pipeline_mode<synchronous>, transform_indices = @transform_2, window_bounds = array<i64: 32, 128>}, {pipeline_mode = #tpu.pipeline_mode<synchronous>, transform_indices = @transform_3, window_bounds = array<i64: 1, 128>}, {pipeline_mode = #tpu.pipeline_mode<synchronous>, transform_indices = @transform_4, window_bounds = array<i64: 128, 128>}, {pipeline_mode = #tpu.pipeline_mode<synchronous>, transform_indices = @transform_5, window_bounds = array<i64: 1, 128>}, {pipeline_mode = #tpu.pipeline_mode<synchronous>, transform_indices = @transform_6, window_bounds = array<i64: 128, 128>}, {pipeline_mode = #tpu.pipeline_mode<synchronous>, transform_indices = @transform_7, window_bounds = array<i64: 1, 128>}, {pipeline_mode = #tpu.pipeline_mode<synchronous>, transform_indices = @transform_8, window_bounds = array<i64: 128, 256>}, {pipeline_mode = #tpu.pipeline_mode<synchronous>, transform_indices = @transform_9, window_bounds = array<i64: 1, 256>}, {pipeline_mode = #tpu.pipeline_mode<synchronous>, transform_indices = @transform_10, window_bounds = array<i64: 128, 128>}, {pipeline_mode = #tpu.pipeline_mode<synchronous>, transform_indices = @transform_11, window_bounds = array<i64: 1, 128>}, {pipeline_mode = #tpu.pipeline_mode<synchronous>, transform_indices = @transform_12, window_bounds = array<i64: 128, 512>}, {pipeline_mode = #tpu.pipeline_mode<synchronous>, transform_indices = @transform_13, window_bounds = array<i64: 1, 512>}, {pipeline_mode = #tpu.pipeline_mode<synchronous>, transform_indices = @transform_14, window_bounds = array<i64: 256, 256>}, {pipeline_mode = #tpu.pipeline_mode<synchronous>, transform_indices = @transform_15, window_bounds = array<i64: 1, 256>}, {pipeline_mode = #tpu.pipeline_mode<synchronous>, transform_indices = @transform_16, window_bounds = array<i64: 256, 1024>}, {pipeline_mode = #tpu.pipeline_mode<synchronous>, transform_indices = @transform_17, window_bounds = array<i64: 1, 1024>}, {pipeline_mode = #tpu.pipeline_mode<synchronous>, transform_indices = @transform_18, window_bounds = array<i64: 512, 512>}, {pipeline_mode = #tpu.pipeline_mode<synchronous>, transform_indices = @transform_19, window_bounds = array<i64: 1, 512>}, {transform_indices = @transform_20, window_bounds = array<i64: 1, 8, 512>}]} {
    %c0 = arith.constant 0 : index
    %c0_0 = arith.constant 0 : index
    %0 = vector.load %arg1[%c0, %c0_0] : memref<128x32xbf16, #tpu.memory_space<vmem>>, vector<128x32xbf16>
    %c0_1 = arith.constant 0 : index
    %c0_2 = arith.constant 0 : index
    %1 = vector.load %arg3[%c0_1, %c0_2] : memref<32x128xbf16, #tpu.memory_space<vmem>>, vector<32x128xbf16>
    %cst = arith.constant dense<0.000000e+00> : vector<128x128xf32>
    %2 = tpu.matmul %0, %1, %cst {dimension_numbers = #tpu.dot_dimension_numbers<[1], [0], [0], [1], [0, 0, 1, 1], [], []>} : vector<128x32xbf16>, vector<32x128xbf16>, vector<128x128xf32> -> vector<128x128xf32>
    %c0_3 = arith.constant 0 : index
    %c0_4 = arith.constant 0 : index
    %3 = vector.load %arg4[%c0_3, %c0_4] : memref<1x128xf32, #tpu.memory_space<vmem>>, vector<1x128xf32>
    %4 = vector.broadcast %3 : vector<1x128xf32> to vector<128x128xf32>
    %5 = arith.addf %2, %4 : vector<128x128xf32>
    %cst_5 = arith.constant 0.000000e+00 : f32
    %6 = vector.broadcast %cst_5 : f32 to vector<128x128xf32>
    %7 = arith.maximumf %5, %6 : vector<128x128xf32>
    %c0_6 = arith.constant 0 : index
    %c0_7 = arith.constant 0 : index
    %8 = vector.load %arg5[%c0_6, %c0_7] : memref<128x128xbf16, #tpu.memory_space<vmem>>, vector<128x128xbf16>
    %c0_8 = arith.constant 0 : index
    %c0_9 = arith.constant 0 : index
    %9 = vector.load %arg6[%c0_8, %c0_9] : memref<1x128xf32, #tpu.memory_space<vmem>>, vector<1x128xf32>
    %c0_10 = arith.constant 0 : index
    %c0_11 = arith.constant 0 : index
    %10 = vector.load %arg7[%c0_10, %c0_11] : memref<128x128xbf16, #tpu.memory_space<vmem>>, vector<128x128xbf16>
    %c0_12 = arith.constant 0 : index
    %c0_13 = arith.constant 0 : index
    %11 = vector.load %arg8[%c0_12, %c0_13] : memref<1x128xf32, #tpu.memory_space<vmem>>, vector<1x128xf32>
    %12 = arith.truncf %7 : vector<128x128xf32> to vector<128x128xbf16>
    %cst_14 = arith.constant dense<0.000000e+00> : vector<128x128xf32>
    %13 = tpu.matmul %12, %8, %cst_14 {dimension_numbers = #tpu.dot_dimension_numbers<[1], [0], [0], [1], [0, 0, 1, 1], [], []>} : vector<128x128xbf16>, vector<128x128xbf16>, vector<128x128xf32> -> vector<128x128xf32>
    %14 = vector.broadcast %9 : vector<1x128xf32> to vector<128x128xf32>
    %15 = arith.addf %13, %14 : vector<128x128xf32>
    %cst_15 = arith.constant 0.000000e+00 : f32
    %16 = vector.broadcast %cst_15 : f32 to vector<128x128xf32>
    %17 = arith.maximumf %15, %16 : vector<128x128xf32>
    %18 = arith.truncf %17 : vector<128x128xf32> to vector<128x128xbf16>
    %cst_16 = arith.constant dense<0.000000e+00> : vector<128x128xf32>
    %19 = tpu.matmul %18, %10, %cst_16 {dimension_numbers = #tpu.dot_dimension_numbers<[1], [0], [0], [1], [0, 0, 1, 1], [], []>} : vector<128x128xbf16>, vector<128x128xbf16>, vector<128x128xf32> -> vector<128x128xf32>
    %20 = vector.broadcast %11 : vector<1x128xf32> to vector<128x128xf32>
    %21 = arith.addf %19, %20 : vector<128x128xf32>
    %22 = arith.addf %21, %7 : vector<128x128xf32>
    %cst_17 = arith.constant 0.000000e+00 : f32
    %23 = vector.broadcast %cst_17 : f32 to vector<128x128xf32>
    %24 = arith.maximumf %22, %23 : vector<128x128xf32>
    %c0_18 = arith.constant 0 : index
    %c0_19 = arith.constant 0 : index
    %25 = vector.load %arg9[%c0_18, %c0_19] : memref<128x256xbf16, #tpu.memory_space<vmem>>, vector<128x256xbf16>
    %c0_20 = arith.constant 0 : index
    %c0_21 = arith.constant 0 : index
    %26 = vector.load %arg10[%c0_20, %c0_21] : memref<1x256xf32, #tpu.memory_space<vmem>>, vector<1x256xf32>
    %c0_22 = arith.constant 0 : index
    %c0_23 = arith.constant 0 : index
    %27 = vector.load %arg11[%c0_22, %c0_23] : memref<128x128xbf16, #tpu.memory_space<vmem>>, vector<128x128xbf16>
    %c0_24 = arith.constant 0 : index
    %c0_25 = arith.constant 0 : index
    %28 = vector.load %arg12[%c0_24, %c0_25] : memref<1x128xf32, #tpu.memory_space<vmem>>, vector<1x128xf32>
    %29 = arith.truncf %24 : vector<128x128xf32> to vector<128x128xbf16>
    %cst_26 = arith.constant dense<0.000000e+00> : vector<128x256xf32>
    %30 = tpu.matmul %29, %25, %cst_26 {dimension_numbers = #tpu.dot_dimension_numbers<[1], [0], [0], [1], [0, 0, 1, 1], [], []>} : vector<128x128xbf16>, vector<128x256xbf16>, vector<128x256xf32> -> vector<128x256xf32>
    %31 = vector.broadcast %26 : vector<1x256xf32> to vector<128x256xf32>
    %32 = arith.addf %30, %31 : vector<128x256xf32>
    %33 = vector.extract_strided_slice %32 {offsets = [0, 0], sizes = [128, 128], strides = [1, 1]} : vector<128x256xf32> to vector<128x128xf32>
    %cst_27 = arith.constant 0.000000e+00 : f32
    %34 = vector.broadcast %cst_27 : f32 to vector<128x128xf32>
    %35 = arith.maximumf %33, %34 : vector<128x128xf32>
    %36 = vector.extract_strided_slice %32 {offsets = [0, 128], sizes = [128, 128], strides = [1, 1]} : vector<128x256xf32> to vector<128x128xf32>
    %37 = arith.truncf %35 : vector<128x128xf32> to vector<128x128xbf16>
    %cst_28 = arith.constant dense<0.000000e+00> : vector<128x128xf32>
    %38 = tpu.matmul %37, %27, %cst_28 {dimension_numbers = #tpu.dot_dimension_numbers<[1], [0], [0], [1], [0, 0, 1, 1], [], []>} : vector<128x128xbf16>, vector<128x128xbf16>, vector<128x128xf32> -> vector<128x128xf32>
    %39 = vector.broadcast %28 : vector<1x128xf32> to vector<128x128xf32>
    %40 = arith.addf %38, %39 : vector<128x128xf32>
    %41 = arith.addf %40, %36 : vector<128x128xf32>
    %cst_29 = arith.constant 0.000000e+00 : f32
    %42 = vector.broadcast %cst_29 : f32 to vector<128x128xf32>
    %43 = arith.maximumf %41, %42 : vector<128x128xf32>
    %c0_30 = arith.constant 0 : index
    %c0_31 = arith.constant 0 : index
    %44 = vector.load %arg13[%c0_30, %c0_31] : memref<128x512xbf16, #tpu.memory_space<vmem>>, vector<128x512xbf16>
    %c0_32 = arith.constant 0 : index
    %c0_33 = arith.constant 0 : index
    %45 = vector.load %arg14[%c0_32, %c0_33] : memref<1x512xf32, #tpu.memory_space<vmem>>, vector<1x512xf32>
    %c0_34 = arith.constant 0 : index
    %c0_35 = arith.constant 0 : index
    %46 = vector.load %arg15[%c0_34, %c0_35] : memref<256x256xbf16, #tpu.memory_space<vmem>>, vector<256x256xbf16>
    %c0_36 = arith.constant 0 : index
    %c0_37 = arith.constant 0 : index
    %47 = vector.load %arg16[%c0_36, %c0_37] : memref<1x256xf32, #tpu.memory_space<vmem>>, vector<1x256xf32>
    %48 = arith.truncf %43 : vector<128x128xf32> to vector<128x128xbf16>
    %cst_38 = arith.constant dense<0.000000e+00> : vector<128x512xf32>
    %49 = tpu.matmul %48, %44, %cst_38 {dimension_numbers = #tpu.dot_dimension_numbers<[1], [0], [0], [1], [0, 0, 1, 1], [], []>} : vector<128x128xbf16>, vector<128x512xbf16>, vector<128x512xf32> -> vector<128x512xf32>
    %50 = vector.broadcast %45 : vector<1x512xf32> to vector<128x512xf32>
    %51 = arith.addf %49, %50 : vector<128x512xf32>
    %52 = vector.extract_strided_slice %51 {offsets = [0, 0], sizes = [128, 256], strides = [1, 1]} : vector<128x512xf32> to vector<128x256xf32>
    %cst_39 = arith.constant 0.000000e+00 : f32
    %53 = vector.broadcast %cst_39 : f32 to vector<128x256xf32>
    %54 = arith.maximumf %52, %53 : vector<128x256xf32>
    %55 = vector.extract_strided_slice %51 {offsets = [0, 256], sizes = [128, 256], strides = [1, 1]} : vector<128x512xf32> to vector<128x256xf32>
    %56 = arith.truncf %54 : vector<128x256xf32> to vector<128x256xbf16>
    %cst_40 = arith.constant dense<0.000000e+00> : vector<128x256xf32>
    %57 = tpu.matmul %56, %46, %cst_40 {dimension_numbers = #tpu.dot_dimension_numbers<[1], [0], [0], [1], [0, 0, 1, 1], [], []>} : vector<128x256xbf16>, vector<256x256xbf16>, vector<128x256xf32> -> vector<128x256xf32>
    %58 = vector.broadcast %47 : vector<1x256xf32> to vector<128x256xf32>
    %59 = arith.addf %57, %58 : vector<128x256xf32>
    %60 = arith.addf %59, %55 : vector<128x256xf32>
    %cst_41 = arith.constant 0.000000e+00 : f32
    %61 = vector.broadcast %cst_41 : f32 to vector<128x256xf32>
    %62 = arith.maximumf %60, %61 : vector<128x256xf32>
    %c0_42 = arith.constant 0 : index
    %c0_43 = arith.constant 0 : index
    %63 = vector.load %arg17[%c0_42, %c0_43] : memref<256x1024xbf16, #tpu.memory_space<vmem>>, vector<256x1024xbf16>
    %c0_44 = arith.constant 0 : index
    %c0_45 = arith.constant 0 : index
    %64 = vector.load %arg18[%c0_44, %c0_45] : memref<1x1024xf32, #tpu.memory_space<vmem>>, vector<1x1024xf32>
    %c0_46 = arith.constant 0 : index
    %c0_47 = arith.constant 0 : index
    %65 = vector.load %arg19[%c0_46, %c0_47] : memref<512x512xbf16, #tpu.memory_space<vmem>>, vector<512x512xbf16>
    %c0_48 = arith.constant 0 : index
    %c0_49 = arith.constant 0 : index
    %66 = vector.load %arg20[%c0_48, %c0_49] : memref<1x512xf32, #tpu.memory_space<vmem>>, vector<1x512xf32>
    %67 = arith.truncf %62 : vector<128x256xf32> to vector<128x256xbf16>
    %cst_50 = arith.constant dense<0.000000e+00> : vector<128x1024xf32>
    %68 = tpu.matmul %67, %63, %cst_50 {dimension_numbers = #tpu.dot_dimension_numbers<[1], [0], [0], [1], [0, 0, 1, 1], [], []>} : vector<128x256xbf16>, vector<256x1024xbf16>, vector<128x1024xf32> -> vector<128x1024xf32>
    %69 = vector.broadcast %64 : vector<1x1024xf32> to vector<128x1024xf32>
    %70 = arith.addf %68, %69 : vector<128x1024xf32>
    %71 = vector.extract_strided_slice %70 {offsets = [0, 0], sizes = [128, 512], strides = [1, 1]} : vector<128x1024xf32> to vector<128x512xf32>
    %cst_51 = arith.constant 0.000000e+00 : f32
    %72 = vector.broadcast %cst_51 : f32 to vector<128x512xf32>
    %73 = arith.maximumf %71, %72 : vector<128x512xf32>
    %74 = vector.extract_strided_slice %70 {offsets = [0, 512], sizes = [128, 512], strides = [1, 1]} : vector<128x1024xf32> to vector<128x512xf32>
    %75 = arith.truncf %73 : vector<128x512xf32> to vector<128x512xbf16>
    %cst_52 = arith.constant dense<0.000000e+00> : vector<128x512xf32>
    %76 = tpu.matmul %75, %65, %cst_52 {dimension_numbers = #tpu.dot_dimension_numbers<[1], [0], [0], [1], [0, 0, 1, 1], [], []>} : vector<128x512xbf16>, vector<512x512xbf16>, vector<128x512xf32> -> vector<128x512xf32>
    %77 = vector.broadcast %66 : vector<1x512xf32> to vector<128x512xf32>
    %78 = arith.addf %76, %77 : vector<128x512xf32>
    %79 = arith.addf %78, %74 : vector<128x512xf32>
    %cst_53 = arith.constant 0.000000e+00 : f32
    %80 = vector.broadcast %cst_53 : f32 to vector<128x512xf32>
    %81 = arith.maximumf %79, %80 : vector<128x512xf32>
    %c0_54 = arith.constant 0 : index
    %c0_55 = arith.constant 0 : index
    %82 = vector.load %arg2[%c0_54, %c0_55] : memref<8x128xbf16, #tpu.memory_space<vmem>>, vector<8x128xbf16>
    %83 = arith.truncf %81 : vector<128x512xf32> to vector<128x512xbf16>
    %cst_56 = arith.constant dense<0.000000e+00> : vector<8x512xf32>
    %84 = tpu.matmul %82, %83, %cst_56 {dimension_numbers = #tpu.dot_dimension_numbers<[1], [0], [0], [1], [0, 0, 1, 1], [], []>} : vector<8x128xbf16>, vector<128x512xbf16>, vector<8x512xf32> -> vector<8x512xf32>
    %c0_57 = arith.constant 0 : index
    %c0_58 = arith.constant 0 : index
    %c0_59 = arith.constant 0 : index
    %85 = vector.load %arg21[%c0_57, %c0_58, %c0_59] : memref<1x8x512xf32, #tpu.memory_space<vmem>>, vector<1x8x512xf32>
    %86 = vector.shape_cast %85 : vector<1x8x512xf32> to vector<8x512xf32>
    %87 = vector.shape_cast %84 : vector<8x512xf32> to vector<1x8x512xf32>
    tpu.vector_store %arg21[%c0_57, %c0_58, %c0_59], %87 {strides = array<i32>} : memref<1x8x512xf32, #tpu.memory_space<vmem>>, vector<1x8x512xf32>,
    return
  }
  func.func @transform_0(%arg0: i32) -> (i32, i32) {
    %c0_i32 = arith.constant 0 : i32
    %c0_i32_0 = arith.constant 0 : i32
    return %arg0, %c0_i32 : i32, i32
  }
  func.func @transform_1(%arg0: i32) -> (i32, i32) {
    %c0_i32 = arith.constant 0 : i32
    %c0_i32_0 = arith.constant 0 : i32
    return %c0_i32, %arg0 : i32, i32
  }
  func.func @transform_2(%arg0: i32) -> (i32, i32) {
    %c0_i32 = arith.constant 0 : i32
    %c0_i32_0 = arith.constant 0 : i32
    %c0_i32_1 = arith.constant 0 : i32
    return %c0_i32, %c0_i32_0 : i32, i32
  }
  func.func @transform_3(%arg0: i32) -> (i32, i32) {
    %c0_i32 = arith.constant 0 : i32
    %c0_i32_0 = arith.constant 0 : i32
    %c0_i32_1 = arith.constant 0 : i32
    return %c0_i32, %c0_i32_0 : i32, i32
  }
  func.func @transform_4(%arg0: i32) -> (i32, i32) {
    %c0_i32 = arith.constant 0 : i32
    %c0_i32_0 = arith.constant 0 : i32
    %c0_i32_1 = arith.constant 0 : i32
    return %c0_i32, %c0_i32_0 : i32, i32
  }
  func.func @transform_5(%arg0: i32) -> (i32, i32) {
    %c0_i32 = arith.constant 0 : i32
    %c0_i32_0 = arith.constant 0 : i32
    %c0_i32_1 = arith.constant 0 : i32
    return %c0_i32, %c0_i32_0 : i32, i32
  }
  func.func @transform_6(%arg0: i32) -> (i32, i32) {
    %c0_i32 = arith.constant 0 : i32
    %c0_i32_0 = arith.constant 0 : i32
    %c0_i32_1 = arith.constant 0 : i32
    return %c0_i32, %c0_i32_0 : i32, i32
  }
  func.func @transform_7(%arg0: i32) -> (i32, i32) {
    %c0_i32 = arith.constant 0 : i32
    %c0_i32_0 = arith.constant 0 : i32
    %c0_i32_1 = arith.constant 0 : i32
    return %c0_i32, %c0_i32_0 : i32, i32
  }
  func.func @transform_8(%arg0: i32) -> (i32, i32) {
    %c0_i32 = arith.constant 0 : i32
    %c0_i32_0 = arith.constant 0 : i32
    %c0_i32_1 = arith.constant 0 : i32
    return %c0_i32, %c0_i32_0 : i32, i32
  }
  func.func @transform_9(%arg0: i32) -> (i32, i32) {
    %c0_i32 = arith.constant 0 : i32
    %c0_i32_0 = arith.constant 0 : i32
    %c0_i32_1 = arith.constant 0 : i32
    return %c0_i32, %c0_i32_0 : i32, i32
  }
  func.func @transform_10(%arg0: i32) -> (i32, i32) {
    %c0_i32 = arith.constant 0 : i32
    %c0_i32_0 = arith.constant 0 : i32
    %c0_i32_1 = arith.constant 0 : i32
    return %c0_i32, %c0_i32_0 : i32, i32
  }
  func.func @transform_11(%arg0: i32) -> (i32, i32) {
    %c0_i32 = arith.constant 0 : i32
    %c0_i32_0 = arith.constant 0 : i32
    %c0_i32_1 = arith.constant 0 : i32
    return %c0_i32, %c0_i32_0 : i32, i32
  }
  func.func @transform_12(%arg0: i32) -> (i32, i32) {
    %c0_i32 = arith.constant 0 : i32
    %c0_i32_0 = arith.constant 0 : i32
    %c0_i32_1 = arith.constant 0 : i32
    return %c0_i32, %c0_i32_0 : i32, i32
  }
  func.func @transform_13(%arg0: i32) -> (i32, i32) {
    %c0_i32 = arith.constant 0 : i32
    %c0_i32_0 = arith.constant 0 : i32
    %c0_i32_1 = arith.constant 0 : i32
    return %c0_i32, %c0_i32_0 : i32, i32
  }
  func.func @transform_14(%arg0: i32) -> (i32, i32) {
    %c0_i32 = arith.constant 0 : i32
    %c0_i32_0 = arith.constant 0 : i32
    %c0_i32_1 = arith.constant 0 : i32
    return %c0_i32, %c0_i32_0 : i32, i32
  }
  func.func @transform_15(%arg0: i32) -> (i32, i32) {
    %c0_i32 = arith.constant 0 : i32
    %c0_i32_0 = arith.constant 0 : i32
    %c0_i32_1 = arith.constant 0 : i32
    return %c0_i32, %c0_i32_0 : i32, i32
  }
  func.func @transform_16(%arg0: i32) -> (i32, i32) {
    %c0_i32 = arith.constant 0 : i32
    %c0_i32_0 = arith.constant 0 : i32
    %c0_i32_1 = arith.constant 0 : i32
    return %c0_i32, %c0_i32_0 : i32, i32
  }
  func.func @transform_17(%arg0: i32) -> (i32, i32) {
    %c0_i32 = arith.constant 0 : i32
    %c0_i32_0 = arith.constant 0 : i32
    %c0_i32_1 = arith.constant 0 : i32
    return %c0_i32, %c0_i32_0 : i32, i32
  }
  func.func @transform_18(%arg0: i32) -> (i32, i32) {
    %c0_i32 = arith.constant 0 : i32
    %c0_i32_0 = arith.constant 0 : i32
    %c0_i32_1 = arith.constant 0 : i32
    return %c0_i32, %c0_i32_0 : i32, i32
  }
  func.func @transform_19(%arg0: i32) -> (i32, i32) {
    %c0_i32 = arith.constant 0 : i32
    %c0_i32_0 = arith.constant 0 : i32
    %c0_i32_1 = arith.constant 0 : i32
    return %c0_i32, %c0_i32_0 : i32, i32
  }
  func.func @transform_20(%arg0: i32) -> (i32, i32, i32) {
    %c0_i32 = arith.constant 0 : i32
    %c0_i32_0 = arith.constant 0 : i32
    %c0_i32_1 = arith.constant 0 : i32
    return %arg0, %c0_i32, %c0_i32_0 : i32, i32, i32
  }
}

</mosaic_0001>

<llo_original>
// kernel: resnet_forward.3
$region0: #{resnet_forward.3}
  #allocation0 [shape = 'u32[]', space=smem, size = 0x4, offset = 0x4, fixed_abs, tag = 'smem constant byte address 0x4 - core index']
  #allocation1 [shape = 'u32[144,128]{1,0:T(1,128)}', space=vmem, size = 0x12000, scoped, tag = 'internal scratch']
  %s0 = inlined_call_operand.vmem [shape: f32[4,8,512], index: 0, kind: input, shape index: {}]
  %s1 = inlined_call_operand.vmem [shape: bf16[512,128], index: 1, kind: input, shape index: {}]
  %s2 = inlined_call_operand.vmem [shape: f32[1,128], index: 2, kind: input, shape index: {}]
  %s3 = inlined_call_operand.vmem [shape: f32[8,128], index: 3, kind: output, shape index: {}]
  %s4 = sld [smem:[#allocation0]]
  $region22: #{resnet_forward.3} parent=0
    _
  %s6 = ssub.s32 1, %s4
  %s7 = scalar_select 0, %s6, %s4
  // Predicated region
  $region2: #{resnet_forward.3} parent=0 // pred_check
    _
  $region3: #{resnet_forward.3} parent=0 // pred_check_branch
    %9 = sbr.rel (0) target = $region5
  $region4: #{resnet_forward.3} parent=0 // pred_region
    _
  $region5: #{resnet_forward.3} parent=0 // pred_fallthru
    _
  // Predicated region
  $region6: #{resnet_forward.3} parent=0 // pred_check
    _
  $region7: #{resnet_forward.3} parent=0 // pred_check_branch
    %11 = sbr.rel (0) target = $region9
  $region8: #{resnet_forward.3} parent=0 // pred_region
    _
  $region9: #{resnet_forward.3} parent=0 // pred_fallthru
    _
  // Predicated region
  $region10: #{resnet_forward.3} parent=0 // pred_check
    _
  $region11: #{resnet_forward.3} parent=0 // pred_check_branch
    %13 = sbr.rel (0) target = $region13
  $region12: #{resnet_forward.3} parent=0 // pred_region
    _
  $region13: #{resnet_forward.3} parent=0 // pred_fallthru
    _
  %v15 = vld [vmem:[%s0] sm:$0xff]
  %v16 = vld [vmem:[%s0 + $0x8] sm:$0xff]
  %v17 = vld [vmem:[%s0 + $0x10] sm:$0xff]
  %v18 = vld [vmem:[%s0 + $0x18] sm:$0xff]
  %v19 = vld [vmem:[%s0 + $0x20] sm:$0xff]
  %v20 = vld [vmem:[%s0 + $0x28] sm:$0xff]
  %v21 = vld [vmem:[%s0 + $0x30] sm:$0xff]
  %v22 = vld [vmem:[%s0 + $0x38] sm:$0xff]
  %v23 = vld [vmem:[%s0 + $0x40] sm:$0xff]
  %v24 = vld [vmem:[%s0 + $0x48] sm:$0xff]
  %v25 = vld [vmem:[%s0 + $0x50] sm:$0xff]
  %v26 = vld [vmem:[%s0 + $0x58] sm:$0xff]
  %v27 = vld [vmem:[%s0 + $0x60] sm:$0xff]
  %v28 = vld [vmem:[%s0 + $0x68] sm:$0xff]
  %v29 = vld [vmem:[%s0 + $0x70] sm:$0xff]
  %v30 = vld [vmem:[%s0 + $0x78] sm:$0xff]
  %v31 = vadd.f32 %v15, %v19
  %v32 = vadd.f32 %v31, %v23
  %v33 = vadd.f32 %v32, %v27
  %v34 = vadd.f32 %v16, %v20
  %v35 = vadd.f32 %v34, %v24
  %v36 = vadd.f32 %v35, %v28
  %v37 = vadd.f32 %v17, %v21
  %v38 = vadd.f32 %v37, %v25
  %v39 = vadd.f32 %v38, %v29
  %v40 = vadd.f32 %v18, %v22
  %v41 = vadd.f32 %v40, %v26
  %v42 = vadd.f32 %v41, %v30
  %v43 = vmul.f32 %v33, 0.0051020407
  %v44 = vmul.f32 %v36, 0.0051020407
  %v45 = vmul.f32 %v39, 0.0051020407
  %v46 = vmul.f32 %v42, 0.0051020407
  %v47 = vpack.c.bf16 %v43, %v43
  %v48 = vpack.c.bf16 %v44, %v44
  %v49 = vpack.c.bf16 %v45, %v45
  %v50 = vpack.c.bf16 %v46, %v46
  %v51 = vld [vmem:[%s1] sm:$0xf]
  %v52 = vld [vmem:[%s1 + $0x4] sm:$0xf]
  %v53 = vld [vmem:[%s1 + $0x8] sm:$0xf]
  %v54 = vld [vmem:[%s1 + $0xc] sm:$0xf]
  %v55 = vld [vmem:[%s1 + $0x10] sm:$0xf]
  %v56 = vld [vmem:[%s1 + $0x14] sm:$0xf]
  %v57 = vld [vmem:[%s1 + $0x18] sm:$0xf]
  %v58 = vld [vmem:[%s1 + $0x1c] sm:$0xf]
  %v59 = vld [vmem:[%s1 + $0x20] sm:$0xf]
  %v60 = vld [vmem:[%s1 + $0x24] sm:$0xf]
  %v61 = vld [vmem:[%s1 + $0x28] sm:$0xf]
  %v62 = vld [vmem:[%s1 + $0x2c] sm:$0xf]
  %v63 = vld [vmem:[%s1 + $0x30] sm:$0xf]
  %v64 = vld [vmem:[%s1 + $0x34] sm:$0xf]
  %v65 = vld [vmem:[%s1 + $0x38] sm:$0xf]
  %v66 = vld [vmem:[%s1 + $0x3c] sm:$0xf]
  %v67 = vld [vmem:[%s1 + $0x40] sm:$0xf]
  %v68 = vld [vmem:[%s1 + $0x44] sm:$0xf]
  %v69 = vld [vmem:[%s1 + $0x48] sm:$0xf]
  %v70 = vld [vmem:[%s1 + $0x4c] sm:$0xf]
  %v71 = vld [vmem:[%s1 + $0x50] sm:$0xf]
  %v72 = vld [vmem:[%s1 + $0x54] sm:$0xf]
  %v73 = vld [vmem:[%s1 + $0x58] sm:$0xf]
  %v74 = vld [vmem:[%s1 + $0x5c] sm:$0xf]
  %v75 = vld [vmem:[%s1 + $0x60] sm:$0xf]
  %v76 = vld [vmem:[%s1 + $0x64] sm:$0xf]
  %v77 = vld [vmem:[%s1 + $0x68] sm:$0xf]
  %v78 = vld [vmem:[%s1 + $0x6c] sm:$0xf]
  %v79 = vld [vmem:[%s1 + $0x70] sm:$0xf]
  %v80 = vld [vmem:[%s1 + $0x74] sm:$0xf]
  %v81 = vld [vmem:[%s1 + $0x78] sm:$0xf]
  %v82 = vld [vmem:[%s1 + $0x7c] sm:$0xf]
  %v83 = vld [vmem:[%s1 + $0x80] sm:$0xf]
  %v84 = vld [vmem:[%s1 + $0x84] sm:$0xf]
  %v85 = vld [vmem:[%s1 + $0x88] sm:$0xf]
  %v86 = vld [vmem:[%s1 + $0x8c] sm:$0xf]
  %v87 = vld [vmem:[%s1 + $0x90] sm:$0xf]
  %v88 = vld [vmem:[%s1 + $0x94] sm:$0xf]
  %v89 = vld [vmem:[%s1 + $0x98] sm:$0xf]
  %v90 = vld [vmem:[%s1 + $0x9c] sm:$0xf]
  %v91 = vld [vmem:[%s1 + $0xa0] sm:$0xf]
  %v92 = vld [vmem:[%s1 + $0xa4] sm:$0xf]
  %v93 = vld [vmem:[%s1 + $0xa8] sm:$0xf]
  %v94 = vld [vmem:[%s1 + $0xac] sm:$0xf]
  %v95 = vld [vmem:[%s1 + $0xb0] sm:$0xf]
  %v96 = vld [vmem:[%s1 + $0xb4] sm:$0xf]
  %v97 = vld [vmem:[%s1 + $0xb8] sm:$0xf]
  %v98 = vld [vmem:[%s1 + $0xbc] sm:$0xf]
  %v99 = vld [vmem:[%s1 + $0xc0] sm:$0xf]
  %v100 = vld [vmem:[%s1 + $0xc4] sm:$0xf]
  %v101 = vld [vmem:[%s1 + $0xc8] sm:$0xf]
  %v102 = vld [vmem:[%s1 + $0xcc] sm:$0xf]
  %v103 = vld [vmem:[%s1 + $0xd0] sm:$0xf]
  %v104 = vld [vmem:[%s1 + $0xd4] sm:$0xf]
  %v105 = vld [vmem:[%s1 + $0xd8] sm:$0xf]
  %v106 = vld [vmem:[%s1 + $0xdc] sm:$0xf]
  %v107 = vld [vmem:[%s1 + $0xe0] sm:$0xf]
  %v108 = vld [vmem:[%s1 + $0xe4] sm:$0xf]
  %v109 = vld [vmem:[%s1 + $0xe8] sm:$0xf]
  %v110 = vld [vmem:[%s1 + $0xec] sm:$0xf]
  %v111 = vld [vmem:[%s1 + $0xf0] sm:$0xf]
  %v112 = vld [vmem:[%s1 + $0xf4] sm:$0xf]
  %v113 = vld [vmem:[%s1 + $0xf8] sm:$0xf]
  %v114 = vld [vmem:[%s1 + $0xfc] sm:$0xf]
  %v115 = vld [vmem:[%s2] sm:$0x1]
  %v117 = vlaneseq
  %v118 = vshrl.u32 %v117, 7
  %v119 = vsub.s32 0, %v118
  %v120 = vrot.slane %v115, %v119
  %v186 = vunpack.c.l.b16 %v51
  %v187 = vunpack.c.l.b16 %v52
  %v188 = vunpack.c.l.b16 %v53
  %v189 = vunpack.c.l.b16 %v54
  %v190 = vunpack.c.l.b16 %v55
  %v191 = vunpack.c.l.b16 %v56
  %v192 = vunpack.c.l.b16 %v57
  %v193 = vunpack.c.l.b16 %v58
  %v194 = vunpack.c.l.b16 %v59
  %v195 = vunpack.c.l.b16 %v60
  %v196 = vunpack.c.l.b16 %v61
  %v197 = vunpack.c.l.b16 %v62
  %v198 = vunpack.c.l.b16 %v63
  %v199 = vunpack.c.l.b16 %v64
  %v200 = vunpack.c.l.b16 %v65
  %v201 = vunpack.c.l.b16 %v66
  %v202 = vunpack.c.l.b16 %v67
  %v203 = vunpack.c.l.b16 %v68
  %v204 = vunpack.c.l.b16 %v69
  %v205 = vunpack.c.l.b16 %v70
  %v206 = vunpack.c.l.b16 %v71
  %v207 = vunpack.c.l.b16 %v72
  %v208 = vunpack.c.l.b16 %v73
  %v209 = vunpack.c.l.b16 %v74
  %v210 = vunpack.c.l.b16 %v75
  %v211 = vunpack.c.l.b16 %v76
  %v212 = vunpack.c.l.b16 %v77
  %v213 = vunpack.c.l.b16 %v78
  %v214 = vunpack.c.l.b16 %v79
  %v215 = vunpack.c.l.b16 %v80
  %v216 = vunpack.c.l.b16 %v81
  %v217 = vunpack.c.l.b16 %v82
  %v218 = vunpack.c.l.b16 %v83
  %v219 = vunpack.c.l.b16 %v84
  %v220 = vunpack.c.l.b16 %v85
  %v221 = vunpack.c.l.b16 %v86
  %v222 = vunpack.c.l.b16 %v87
  %v223 = vunpack.c.l.b16 %v88
  %v224 = vunpack.c.l.b16 %v89
  %v225 = vunpack.c.l.b16 %v90
  %v226 = vunpack.c.l.b16 %v91
  %v227 = vunpack.c.l.b16 %v92
  %v228 = vunpack.c.l.b16 %v93
  %v229 = vunpack.c.l.b16 %v94
  %v230 = vunpack.c.l.b16 %v95
  %v231 = vunpack.c.l.b16 %v96
  %v232 = vunpack.c.l.b16 %v97
  %v233 = vunpack.c.l.b16 %v98
  %v234 = vunpack.c.l.b16 %v99
  %v235 = vunpack.c.l.b16 %v100
  %v236 = vunpack.c.l.b16 %v101
  %v237 = vunpack.c.l.b16 %v102
  %v238 = vunpack.c.l.b16 %v103
  %v239 = vunpack.c.l.b16 %v104
  %v240 = vunpack.c.l.b16 %v105
  %v241 = vunpack.c.l.b16 %v106
  %v242 = vunpack.c.l.b16 %v107
  %v243 = vunpack.c.l.b16 %v108
  %v244 = vunpack.c.l.b16 %v109
  %v245 = vunpack.c.l.b16 %v110
  %v246 = vunpack.c.l.b16 %v111
  %v247 = vunpack.c.l.b16 %v112
  %v248 = vunpack.c.l.b16 %v113
  %v249 = vunpack.c.l.b16 %v114
  %v250 = vpack.c.b16 %v187, %v186
  %v251 = vpack.c.b16 %v189, %v188
  %v252 = vpack.c.b16 %v191, %v190
  %v253 = vpack.c.b16 %v193, %v192
  %v254 = vpack.c.b16 %v195, %v194
  %v255 = vpack.c.b16 %v197, %v196
  %v256 = vpack.c.b16 %v199, %v198
  %v257 = vpack.c.b16 %v201, %v200
  %v258 = vpack.c.b16 %v203, %v202
  %v259 = vpack.c.b16 %v205, %v204
  %v260 = vpack.c.b16 %v207, %v206
  %v261 = vpack.c.b16 %v209, %v208
  %v262 = vpack.c.b16 %v211, %v210
  %v263 = vpack.c.b16 %v213, %v212
  %v264 = vpack.c.b16 %v215, %v214
  %v265 = vpack.c.b16 %v217, %v216
  %v266 = vpack.c.b16 %v219, %v218
  %v267 = vpack.c.b16 %v221, %v220
  %v268 = vpack.c.b16 %v223, %v222
  %v269 = vpack.c.b16 %v225, %v224
  %v270 = vpack.c.b16 %v227, %v226
  %v271 = vpack.c.b16 %v229, %v228
  %v272 = vpack.c.b16 %v231, %v230
  %v273 = vpack.c.b16 %v233, %v232
  %v274 = vpack.c.b16 %v235, %v234
  %v275 = vpack.c.b16 %v237, %v236
  %v276 = vpack.c.b16 %v239, %v238
  %v277 = vpack.c.b16 %v241, %v240
  %v278 = vpack.c.b16 %v243, %v242
  %v279 = vpack.c.b16 %v245, %v244
  %v280 = vpack.c.b16 %v247, %v246
  %v281 = vpack.c.b16 %v249, %v248
  %314 = vmatprep.subr.bf16.mxu0 0
  %315 = vmatpush1.bf16.msra.mxu0 %v257
  %316 = vmatprep.subr.bf16.mxu0 0
  %317 = vmatpush1.bf16.msra.mxu0 %v256
  %318 = vmatprep.subr.bf16.mxu0 0
  %319 = vmatpush1.bf16.msra.mxu0 %v255
  %320 = vmatprep.subr.bf16.mxu0 0
  %321 = vmatpush1.bf16.msra.mxu0 %v254
  %322 = vmatprep.subr.bf16.mxu0 0
  %323 = vmatpush1.bf16.msra.mxu0 %v253
  %324 = vmatprep.subr.bf16.mxu0 0
  %325 = vmatpush1.bf16.msra.mxu0 %v252
  %326 = vmatprep.subr.bf16.mxu0 0
  %327 = vmatpush1.bf16.msra.mxu0 %v251
  %328 = vmatprep.subr.bf16.mxu0 0
  %329 = vmatpush1.bf16.msra.mxu0 %v250
  %330 = vmatprep.subr.bf16.mxu0 0
  %331 = vmatpush2.bf16.msra.mxu0 %v265
  %332 = vmatprep.subr.bf16.mxu0 0
  %333 = vmatpush2.bf16.msra.mxu0 %v264
  %334 = vmatprep.subr.bf16.mxu0 0
  %335 = vmatpush2.bf16.msra.mxu0 %v263
  %336 = vmatprep.subr.bf16.mxu0 0
  %337 = vmatpush2.bf16.msra.mxu0 %v262
  %338 = vmatprep.subr.bf16.mxu0 0
  %339 = vmatpush2.bf16.msra.mxu0 %v261
  %340 = vmatprep.subr.bf16.mxu0 0
  %341 = vmatpush2.bf16.msra.mxu0 %v260
  %342 = vmatprep.subr.bf16.mxu0 0
  %343 = vmatpush2.bf16.msra.mxu0 %v259
  %344 = vmatprep.subr.bf16.mxu0 0
  %345 = vmatpush2.bf16.msra.mxu0 %v258
  %346 = vmatprep.mubr.bf16.mxu0 %v48
  %347 = vmatmul.mubr.bf16.gmra.mxu0 %v47
  %v348 = vpop.f32.mrf.mxu0
  %v349 = vadd.f32 %v120, %v348
  %v350 = vpop.f32.mrf.mxu0
  %v351 = vpop.f32.mrf.mxu0
  %v352 = vpop.f32.mrf.mxu0
  %353 = vdwg.mxu0
  %354 = vmatprep.subr.bf16.mxu0 0
  %355 = vmatpush1.bf16.msra.mxu0 %v273
  %356 = vmatprep.subr.bf16.mxu0 0
  %357 = vmatpush1.bf16.msra.mxu0 %v272
  %358 = vmatprep.subr.bf16.mxu0 0
  %359 = vmatpush1.bf16.msra.mxu0 %v271
  %360 = vmatprep.subr.bf16.mxu0 0
  %361 = vmatpush1.bf16.msra.mxu0 %v270
  %362 = vmatprep.subr.bf16.mxu0 0
  %363 = vmatpush1.bf16.msra.mxu0 %v269
  %364 = vmatprep.subr.bf16.mxu0 0
  %365 = vmatpush1.bf16.msra.mxu0 %v268
  %366 = vmatprep.subr.bf16.mxu0 0
  %367 = vmatpush1.bf16.msra.mxu0 %v267
  %368 = vmatprep.subr.bf16.mxu0 0
  %369 = vmatpush1.bf16.msra.mxu0 %v266
  %370 = vmatprep.subr.bf16.mxu0 0
  %371 = vmatpush2.bf16.msra.mxu0 %v281
  %372 = vmatprep.subr.bf16.mxu0 0
  %373 = vmatpush2.bf16.msra.mxu0 %v280
  %374 = vmatprep.subr.bf16.mxu0 0
  %375 = vmatpush2.bf16.msra.mxu0 %v279
  %376 = vmatprep.subr.bf16.mxu0 0
  %377 = vmatpush2.bf16.msra.mxu0 %v278
  %378 = vmatprep.subr.bf16.mxu0 0
  %379 = vmatpush2.bf16.msra.mxu0 %v277
  %380 = vmatprep.subr.bf16.mxu0 0
  %381 = vmatpush2.bf16.msra.mxu0 %v276
  %382 = vmatprep.subr.bf16.mxu0 0
  %383 = vmatpush2.bf16.msra.mxu0 %v275
  %384 = vmatprep.subr.bf16.mxu0 0
  %385 = vmatpush2.bf16.msra.mxu0 %v274
  %386 = vmatprep.mubr.bf16.mxu0 %v50
  %387 = vmatmul.mubr.bf16.gmra.mxu0 %v49
  %v388 = vpop.f32.mrf.mxu0
  %v389 = vadd.f32 %v349, %v388
  %v390 = vpop.f32.mrf.mxu0
  %v391 = vpop.f32.mrf.mxu0
  %v392 = vpop.f32.mrf.mxu0
  %393 = vdwg.mxu0
  %394 = vst [vmem:[%s3] sm:$0xff] %v389
  // Predicated region
  $region14: #{resnet_forward.3} parent=0 // pred_check
    _
  $region15: #{resnet_forward.3} parent=0 // pred_check_branch
    %396 = sbr.rel (0) target = $region17
  $region16: #{resnet_forward.3} parent=0 // pred_region
    _
  $region17: #{resnet_forward.3} parent=0 // pred_fallthru
    _
  // Predicated region
  $region18: #{resnet_forward.3} parent=0 // pred_check
    _
  $region19: #{resnet_forward.3} parent=0 // pred_check_branch
    %398 = sbr.rel (0) target = $region21
  $region20: #{resnet_forward.3} parent=0 // pred_region
    _
  $region21: #{resnet_forward.3} parent=0 // pred_fallthru
    _

// kernel: resnet_forward.2
$region0: #{resnet_forward.2}
  #allocation0 [shape = 'u32[]', space=smem, size = 0x4, offset = 0x4, fixed_abs, tag = 'smem constant byte address 0x4 - core index']
  #allocation1 [shape = 'u32[144,128]{1,0:T(1,128)}', space=vmem, size = 0x12000, scoped, tag = 'internal scratch']
  %s0 = inlined_call_operand.vmem [shape: bf16[512,32], index: 0, kind: input, shape index: {}]
  %s1 = inlined_call_operand.vmem [shape: bf16[8,512], index: 1, kind: input, shape index: {}]
  %s2 = inlined_call_operand.vmem [shape: bf16[32,128], index: 2, kind: input, shape index: {}]
  %s3 = inlined_call_operand.vmem [shape: f32[1,128], index: 3, kind: input, shape index: {}]
  %s4 = inlined_call_operand.vmem [shape: bf16[128,128], index: 4, kind: input, shape index: {}]
  %s5 = inlined_call_operand.vmem [shape: f32[1,128], index: 5, kind: input, shape index: {}]
  %s6 = inlined_call_operand.vmem [shape: bf16[128,128], index: 6, kind: input, shape index: {}]
  %s7 = inlined_call_operand.vmem [shape: f32[1,128], index: 7, kind: input, shape index: {}]
  %s8 = inlined_call_operand.vmem [shape: bf16[128,256], index: 8, kind: input, shape index: {}]
  %s9 = inlined_call_operand.vmem [shape: f32[1,256], index: 9, kind: input, shape index: {}]
  %s10 = inlined_call_operand.vmem [shape: bf16[128,128], index: 10, kind: input, shape index: {}]
  %s11 = inlined_call_operand.vmem [shape: f32[1,128], index: 11, kind: input, shape index: {}]
  %s12 = inlined_call_operand.vmem [shape: bf16[128,512], index: 12, kind: input, shape index: {}]
  %s13 = inlined_call_operand.vmem [shape: f32[1,512], index: 13, kind: input, shape index: {}]
  %s14 = inlined_call_operand.vmem [shape: bf16[256,256], index: 14, kind: input, shape index: {}]
  %s15 = inlined_call_operand.vmem [shape: f32[1,256], index: 15, kind: input, shape index: {}]
  %s16 = inlined_call_operand.vmem [shape: bf16[256,1024], index: 16, kind: input, shape index: {}]
  %s17 = inlined_call_operand.vmem [shape: f32[1,1024], index: 17, kind: input, shape index: {}]
  %s18 = inlined_call_operand.vmem [shape: bf16[512,512], index: 18, kind: input, shape index: {}]
  %s19 = inlined_call_operand.vmem [shape: f32[1,512], index: 19, kind: input, shape index: {}]
  %s20 = inlined_call_operand.vmem [shape: f32[4,8,512], index: 20, kind: output, shape index: {}]
  %s21 = sld [smem:[#allocation0]]
  $region113: #{resnet_forward.2} parent=0
    _
  %s23 = ssub.s32 1, %s21
  %s24 = scalar_select 0, %s23, %s21
  loop: start=0, step=1, limit=6
  $region2: #{resnet_forward.2} parent=0 // loop_pre_header
    _
  $region3: #{resnet_forward.2} parent=0 // loop_header
    %s26 = sphi 0, %s30
    %p27 = scmp.ge.s32.totalorder %s26, 6
    %s36 = sphi 0, %s38
    %s39 = sphi 0, %s36
    %s40 = sphi 0, %s39
    %s56 = sphi 0, %s40
    %s62 = sphi 0, %s64
    %s65 = sphi 0, %s62
    %s66 = sphi 0, %s65
    %s82 = sphi 0, %s66
    %s86 = sphi 0, %s86
    %s88 = sphi 0, %s86
    %s89 = sphi 0, %s88
    %s103 = sphi 0, %s89
    %s107 = sphi 0, %s107
    %s109 = sphi 0, %s107
    %s110 = sphi 0, %s109
    %s124 = sphi 0, %s110
    %s128 = sphi 0, %s128
    %s130 = sphi 0, %s128
    %s131 = sphi 0, %s130
    %s145 = sphi 0, %s131
    %s149 = sphi 0, %s149
    %s151 = sphi 0, %s149
    %s152 = sphi 0, %s151
    %s166 = sphi 0, %s152
    %s170 = sphi 0, %s170
    %s172 = sphi 0, %s170
    %s173 = sphi 0, %s172
    %s187 = sphi 0, %s173
    %s191 = sphi 0, %s191
    %s193 = sphi 0, %s191
    %s194 = sphi 0, %s193
    %s208 = sphi 0, %s194
    %s212 = sphi 0, %s212
    %s214 = sphi 0, %s212
    %s215 = sphi 0, %s214
    %s229 = sphi 0, %s215
    %s233 = sphi 0, %s233
    %s235 = sphi 0, %s233
    %s236 = sphi 0, %s235
    %s250 = sphi 0, %s236
    %s254 = sphi 0, %s254
    %s256 = sphi 0, %s254
    %s257 = sphi 0, %s256
    %s271 = sphi 0, %s257
    %s275 = sphi 0, %s275
    %s277 = sphi 0, %s275
    %s278 = sphi 0, %s277
    %s292 = sphi 0, %s278
    %s296 = sphi 0, %s296
    %s298 = sphi 0, %s296
    %s299 = sphi 0, %s298
    %s313 = sphi 0, %s299
    %s317 = sphi 0, %s317
    %s319 = sphi 0, %s317
    %s320 = sphi 0, %s319
    %s334 = sphi 0, %s320
    %s338 = sphi 0, %s338
    %s340 = sphi 0, %s338
    %s341 = sphi 0, %s340
    %s355 = sphi 0, %s341
    %s359 = sphi 0, %s359
    %s361 = sphi 0, %s359
    %s362 = sphi 0, %s361
    %s376 = sphi 0, %s362
    %s380 = sphi 0, %s380
    %s382 = sphi 0, %s380
    %s383 = sphi 0, %s382
    %s397 = sphi 0, %s383
    %s401 = sphi 0, %s401
    %s403 = sphi 0, %s401
    %s404 = sphi 0, %s403
    %s418 = sphi 0, %s404
    %s422 = sphi 0, %s422
    %s424 = sphi 0, %s422
    %s425 = sphi 0, %s424
    %s439 = sphi 0, %s425
    %s443 = sphi 0, %s443
    %s445 = sphi 0, %s443
    %s446 = sphi 0, %s445
    %s460 = sphi 0, %s446
    %s466 = sphi 0, %s468
    %s469 = sphi 0, %s466
    %s470 = sphi 0, %s469
    %s486 = sphi 0, %s470
  $region4: #{resnet_forward.2} parent=0 // loop_header_branch
    %29 = sbr.rel (%p27) target = $region8
  $region5: #{resnet_forward.2} parent=0 // loop_body
    %s31 = ssub.s32 %s26, 1
    %s32 = ssub.s32 %s26, 2
    %s33 = sadd.s32 %s26, 1
    %s34 = ssub.s32 %s26, %s33
    %p35 = scmp.eq.s32.totalorder %s34, 0
    %s37 = sadd.s32 %s36, 1
    %s38 = scalar_select %p35, %s36, %s37
    %p41 = pneg %p35
    %p42 = scmp.eq.s32.totalorder %s26, 3
    %p43 = por %p41, %p42
    %p44 = scmp.ne.s32.totalorder %s36, %s39
    %p45 = scmp.eq.s32.totalorder %s26, 0
    %p46 = por %p44, %p45
    %p47 = scmp.ne.s32.totalorder %s36, %s39
    %p48 = scmp.eq.s32.totalorder %s31, 3
    %p49 = por %p47, %p48
    %p50 = scmp.ne.s32.totalorder %s39, %s40
    %p51 = scmp.eq.s32.totalorder %s31, 0
    %p52 = por %p50, %p51
    %p53 = scmp.ne.s32.totalorder %s39, %s40
    %p54 = scmp.eq.s32.totalorder %s32, 3
    %p55 = por %p53, %p54
    %p57 = scmp.ne.s32.totalorder %s40, %s56
    %p58 = scmp.eq.s32.totalorder %s32, 0
    %p59 = por %p57, %p58
    %s60 = ssub.s32 %s26, %s33
    %p61 = scmp.eq.s32.totalorder %s60, 0
    %s63 = sadd.s32 %s62, 1
    %s64 = scalar_select %p61, %s62, %s63
    %p67 = pneg %p61
    %p68 = scmp.eq.s32.totalorder %s26, 3
    %p69 = por %p67, %p68
    %p70 = scmp.ne.s32.totalorder %s62, %s65
    %p71 = scmp.eq.s32.totalorder %s26, 0
    %p72 = por %p70, %p71
    %p73 = scmp.ne.s32.totalorder %s62, %s65
    %p74 = scmp.eq.s32.totalorder %s31, 3
    %p75 = por %p73, %p74
    %p76 = scmp.ne.s32.totalorder %s65, %s66
    %p77 = scmp.eq.s32.totalorder %s31, 0
    %p78 = por %p76, %p77
    %p79 = scmp.ne.s32.totalorder %s65, %s66
    %p80 = scmp.eq.s32.totalorder %s32, 3
    %p81 = por %p79, %p80
    %p83 = scmp.ne.s32.totalorder %s66, %s82
    %p84 = scmp.eq.s32.totalorder %s32, 0
    %p85 = por %p83, %p84
    %s87 = sadd.s32 %s86, 1
    %p90 = scmp.eq.s32.totalorder %s26, 3
    %p91 = scmp.ne.s32.totalorder %s86, %s88
    %p92 = scmp.eq.s32.totalorder %s26, 0
    %p93 = por %p91, %p92
    %p94 = scmp.ne.s32.totalorder %s86, %s88
    %p95 = scmp.eq.s32.totalorder %s31, 3
    %p96 = por %p94, %p95
    %p97 = scmp.ne.s32.totalorder %s88, %s89
    %p98 = scmp.eq.s32.totalorder %s31, 0
    %p99 = por %p97, %p98
    %p100 = scmp.ne.s32.totalorder %s88, %s89
    %p101 = scmp.eq.s32.totalorder %s32, 3
    %p102 = por %p100, %p101
    %p104 = scmp.ne.s32.totalorder %s89, %s103
    %p105 = scmp.eq.s32.totalorder %s32, 0
    %p106 = por %p104, %p105
    %s108 = sadd.s32 %s107, 1
    %p111 = scmp.eq.s32.totalorder %s26, 3
    %p112 = scmp.ne.s32.totalorder %s107, %s109
    %p113 = scmp.eq.s32.totalorder %s26, 0
    %p114 = por %p112, %p113
    %p115 = scmp.ne.s32.totalorder %s107, %s109
    %p116 = scmp.eq.s32.totalorder %s31, 3
    %p117 = por %p115, %p116
    %p118 = scmp.ne.s32.totalorder %s109, %s110
    %p119 = scmp.eq.s32.totalorder %s31, 0
    %p120 = por %p118, %p119
    %p121 = scmp.ne.s32.totalorder %s109, %s110
    %p122 = scmp.eq.s32.totalorder %s32, 3
    %p123 = por %p121, %p122
    %p125 = scmp.ne.s32.totalorder %s110, %s124
    %p126 = scmp.eq.s32.totalorder %s32, 0
    %p127 = por %p125, %p126
    %s129 = sadd.s32 %s128, 1
    %p132 = scmp.eq.s32.totalorder %s26, 3
    %p133 = scmp.ne.s32.totalorder %s128, %s130
    %p134 = scmp.eq.s32.totalorder %s26, 0
    %p135 = por %p133, %p134
    %p136 = scmp.ne.s32.totalorder %s128, %s130
    %p137 = scmp.eq.s32.totalorder %s31, 3
    %p138 = por %p136, %p137
    %p139 = scmp.ne.s32.totalorder %s130, %s131
    %p140 = scmp.eq.s32.totalorder %s31, 0
    %p141 = por %p139, %p140
    %p142 = scmp.ne.s32.totalorder %s130, %s131
    %p143 = scmp.eq.s32.totalorder %s32, 3
    %p144 = por %p142, %p143
    %p146 = scmp.ne.s32.totalorder %s131, %s145
    %p147 = scmp.eq.s32.totalorder %s32, 0
    %p148 = por %p146, %p147
    %s150 = sadd.s32 %s149, 1
    %p153 = scmp.eq.s32.totalorder %s26, 3
    %p154 = scmp.ne.s32.totalorder %s149, %s151
    %p155 = scmp.eq.s32.totalorder %s26, 0
    %p156 = por %p154, %p155
    %p157 = scmp.ne.s32.totalorder %s149, %s151
    %p158 = scmp.eq.s32.totalorder %s31, 3
    %p159 = por %p157, %p158
    %p160 = scmp.ne.s32.totalorder %s151, %s152
    %p161 = scmp.eq.s32.totalorder %s31, 0
    %p162 = por %p160, %p161
    %p163 = scmp.ne.s32.totalorder %s151, %s152
    %p164 = scmp.eq.s32.totalorder %s32, 3
    %p165 = por %p163, %p164
    %p167 = scmp.ne.s32.totalorder %s152, %s166
    %p168 = scmp.eq.s32.totalorder %s32, 0
    %p169 = por %p167, %p168
    %s171 = sadd.s32 %s170, 1
    %p174 = scmp.eq.s32.totalorder %s26, 3
    %p175 = scmp.ne.s32.totalorder %s170, %s172
    %p176 = scmp.eq.s32.totalorder %s26, 0
    %p177 = por %p175, %p176
    %p178 = scmp.ne.s32.totalorder %s170, %s172
    %p179 = scmp.eq.s32.totalorder %s31, 3
    %p180 = por %p178, %p179
    %p181 = scmp.ne.s32.totalorder %s172, %s173
    %p182 = scmp.eq.s32.totalorder %s31, 0
    %p183 = por %p181, %p182
    %p184 = scmp.ne.s32.totalorder %s172, %s173
    %p185 = scmp.eq.s32.totalorder %s32, 3
    %p186 = por %p184, %p185
    %p188 = scmp.ne.s32.totalorder %s173, %s187
    %p189 = scmp.eq.s32.totalorder %s32, 0
    %p190 = por %p188, %p189
    %s192 = sadd.s32 %s191, 1
    %p195 = scmp.eq.s32.totalorder %s26, 3
    %p196 = scmp.ne.s32.totalorder %s191, %s193
    %p197 = scmp.eq.s32.totalorder %s26, 0
    %p198 = por %p196, %p197
    %p199 = scmp.ne.s32.totalorder %s191, %s193
    %p200 = scmp.eq.s32.totalorder %s31, 3
    %p201 = por %p199, %p200
    %p202 = scmp.ne.s32.totalorder %s193, %s194
    %p203 = scmp.eq.s32.totalorder %s31, 0
    %p204 = por %p202, %p203
    %p205 = scmp.ne.s32.totalorder %s193, %s194
    %p206 = scmp.eq.s32.totalorder %s32, 3
    %p207 = por %p205, %p206
    %p209 = scmp.ne.s32.totalorder %s194, %s208
    %p210 = scmp.eq.s32.totalorder %s32, 0
    %p211 = por %p209, %p210
    %s213 = sadd.s32 %s212, 1
    %p216 = scmp.eq.s32.totalorder %s26, 3
    %p217 = scmp.ne.s32.totalorder %s212, %s214
    %p218 = scmp.eq.s32.totalorder %s26, 0
    %p219 = por %p217, %p218
    %p220 = scmp.ne.s32.totalorder %s212, %s214
    %p221 = scmp.eq.s32.totalorder %s31, 3
    %p222 = por %p220, %p221
    %p223 = scmp.ne.s32.totalorder %s214, %s215
    %p224 = scmp.eq.s32.totalorder %s31, 0
    %p225 = por %p223, %p224
    %p226 = scmp.ne.s32.totalorder %s214, %s215
    %p227 = scmp.eq.s32.totalorder %s32, 3
    %p228 = por %p226, %p227
    %p230 = scmp.ne.s32.totalorder %s215, %s229
    %p231 = scmp.eq.s32.totalorder %s32, 0
    %p232 = por %p230, %p231
    %s234 = sadd.s32 %s233, 1
    %p237 = scmp.eq.s32.totalorder %s26, 3
    %p238 = scmp.ne.s32.totalorder %s233, %s235
    %p239 = scmp.eq.s32.totalorder %s26, 0
    %p240 = por %p238, %p239
    %p241 = scmp.ne.s32.totalorder %s233, %s235
    %p242 = scmp.eq.s32.totalorder %s31, 3
    %p243 = por %p241, %p242
    %p244 = scmp.ne.s32.totalorder %s235, %s236
    %p245 = scmp.eq.s32.totalorder %s31, 0
    %p246 = por %p244, %p245
    %p247 = scmp.ne.s32.totalorder %s235, %s236
    %p248 = scmp.eq.s32.totalorder %s32, 3
    %p249 = por %p247, %p248
    %p251 = scmp.ne.s32.totalorder %s236, %s250
    %p252 = scmp.eq.s32.totalorder %s32, 0
    %p253 = por %p251, %p252
    %s255 = sadd.s32 %s254, 1
    %p258 = scmp.eq.s32.totalorder %s26, 3
    %p259 = scmp.ne.s32.totalorder %s254, %s256
    %p260 = scmp.eq.s32.totalorder %s26, 0
    %p261 = por %p259, %p260
    %p262 = scmp.ne.s32.totalorder %s254, %s256
    %p263 = scmp.eq.s32.totalorder %s31, 3
    %p264 = por %p262, %p263
    %p265 = scmp.ne.s32.totalorder %s256, %s257
    %p266 = scmp.eq.s32.totalorder %s31, 0
    %p267 = por %p265, %p266
    %p268 = scmp.ne.s32.totalorder %s256, %s257
    %p269 = scmp.eq.s32.totalorder %s32, 3
    %p270 = por %p268, %p269
    %p272 = scmp.ne.s32.totalorder %s257, %s271
    %p273 = scmp.eq.s32.totalorder %s32, 0
    %p274 = por %p272, %p273
    %s276 = sadd.s32 %s275, 1
    %p279 = scmp.eq.s32.totalorder %s26, 3
    %p280 = scmp.ne.s32.totalorder %s275, %s277
    %p281 = scmp.eq.s32.totalorder %s26, 0
    %p282 = por %p280, %p281
    %p283 = scmp.ne.s32.totalorder %s275, %s277
    %p284 = scmp.eq.s32.totalorder %s31, 3
    %p285 = por %p283, %p284
    %p286 = scmp.ne.s32.totalorder %s277, %s278
    %p287 = scmp.eq.s32.totalorder %s31, 0
    %p288 = por %p286, %p287
    %p289 = scmp.ne.s32.totalorder %s277, %s278
    %p290 = scmp.eq.s32.totalorder %s32, 3
    %p291 = por %p289, %p290
    %p293 = scmp.ne.s32.totalorder %s278, %s292
    %p294 = scmp.eq.s32.totalorder %s32, 0
    %p295 = por %p293, %p294
    %s297 = sadd.s32 %s296, 1
    %p300 = scmp.eq.s32.totalorder %s26, 3
    %p301 = scmp.ne.s32.totalorder %s296, %s298
    %p302 = scmp.eq.s32.totalorder %s26, 0
    %p303 = por %p301, %p302
    %p304 = scmp.ne.s32.totalorder %s296, %s298
    %p305 = scmp.eq.s32.totalorder %s31, 3
    %p306 = por %p304, %p305
    %p307 = scmp.ne.s32.totalorder %s298, %s299
    %p308 = scmp.eq.s32.totalorder %s31, 0
    %p309 = por %p307, %p308
    %p310 = scmp.ne.s32.totalorder %s298, %s299
    %p311 = scmp.eq.s32.totalorder %s32, 3
    %p312 = por %p310, %p311
    %p314 = scmp.ne.s32.totalorder %s299, %s313
    %p315 = scmp.eq.s32.totalorder %s32, 0
    %p316 = por %p314, %p315
    %s318 = sadd.s32 %s317, 1
    %p321 = scmp.eq.s32.totalorder %s26, 3
    %p322 = scmp.ne.s32.totalorder %s317, %s319
    %p323 = scmp.eq.s32.totalorder %s26, 0
    %p324 = por %p322, %p323
    %p325 = scmp.ne.s32.totalorder %s317, %s319
    %p326 = scmp.eq.s32.totalorder %s31, 3
    %p327 = por %p325, %p326
    %p328 = scmp.ne.s32.totalorder %s319, %s320
    %p329 = scmp.eq.s32.totalorder %s31, 0
    %p330 = por %p328, %p329
    %p331 = scmp.ne.s32.totalorder %s319, %s320
    %p332 = scmp.eq.s32.totalorder %s32, 3
    %p333 = por %p331, %p332
    %p335 = scmp.ne.s32.totalorder %s320, %s334
    %p336 = scmp.eq.s32.totalorder %s32, 0
    %p337 = por %p335, %p336
    %s339 = sadd.s32 %s338, 1
    %p342 = scmp.eq.s32.totalorder %s26, 3
    %p343 = scmp.ne.s32.totalorder %s338, %s340
    %p344 = scmp.eq.s32.totalorder %s26, 0
    %p345 = por %p343, %p344
    %p346 = scmp.ne.s32.totalorder %s338, %s340
    %p347 = scmp.eq.s32.totalorder %s31, 3
    %p348 = por %p346, %p347
    %p349 = scmp.ne.s32.totalorder %s340, %s341
    %p350 = scmp.eq.s32.totalorder %s31, 0
    %p351 = por %p349, %p350
    %p352 = scmp.ne.s32.totalorder %s340, %s341
    %p353 = scmp.eq.s32.totalorder %s32, 3
    %p354 = por %p352, %p353
    %p356 = scmp.ne.s32.totalorder %s341, %s355
    %p357 = scmp.eq.s32.totalorder %s32, 0
    %p358 = por %p356, %p357
    %s360 = sadd.s32 %s359, 1
    %p363 = scmp.eq.s32.totalorder %s26, 3
    %p364 = scmp.ne.s32.totalorder %s359, %s361
    %p365 = scmp.eq.s32.totalorder %s26, 0
    %p366 = por %p364, %p365
    %p367 = scmp.ne.s32.totalorder %s359, %s361
    %p368 = scmp.eq.s32.totalorder %s31, 3
    %p369 = por %p367, %p368
    %p370 = scmp.ne.s32.totalorder %s361, %s362
    %p371 = scmp.eq.s32.totalorder %s31, 0
    %p372 = por %p370, %p371
    %p373 = scmp.ne.s32.totalorder %s361, %s362
    %p374 = scmp.eq.s32.totalorder %s32, 3
    %p375 = por %p373, %p374
    %p377 = scmp.ne.s32.totalorder %s362, %s376
    %p378 = scmp.eq.s32.totalorder %s32, 0
    %p379 = por %p377, %p378
    %s381 = sadd.s32 %s380, 1
    %p384 = scmp.eq.s32.totalorder %s26, 3
    %p385 = scmp.ne.s32.totalorder %s380, %s382
    %p386 = scmp.eq.s32.totalorder %s26, 0
    %p387 = por %p385, %p386
    %p388 = scmp.ne.s32.totalorder %s380, %s382
    %p389 = scmp.eq.s32.totalorder %s31, 3
    %p390 = por %p388, %p389
    %p391 = scmp.ne.s32.totalorder %s382, %s383
    %p392 = scmp.eq.s32.totalorder %s31, 0
    %p393 = por %p391, %p392
    %p394 = scmp.ne.s32.totalorder %s382, %s383
    %p395 = scmp.eq.s32.totalorder %s32, 3
    %p396 = por %p394, %p395
    %p398 = scmp.ne.s32.totalorder %s383, %s397
    %p399 = scmp.eq.s32.totalorder %s32, 0
    %p400 = por %p398, %p399
    %s402 = sadd.s32 %s401, 1
    %p405 = scmp.eq.s32.totalorder %s26, 3
    %p406 = scmp.ne.s32.totalorder %s401, %s403
    %p407 = scmp.eq.s32.totalorder %s26, 0
    %p408 = por %p406, %p407
    %p409 = scmp.ne.s32.totalorder %s401, %s403
    %p410 = scmp.eq.s32.totalorder %s31, 3
    %p411 = por %p409, %p410
    %p412 = scmp.ne.s32.totalorder %s403, %s404
    %p413 = scmp.eq.s32.totalorder %s31, 0
    %p414 = por %p412, %p413
    %p415 = scmp.ne.s32.totalorder %s403, %s404
    %p416 = scmp.eq.s32.totalorder %s32, 3
    %p417 = por %p415, %p416
    %p419 = scmp.ne.s32.totalorder %s404, %s418
    %p420 = scmp.eq.s32.totalorder %s32, 0
    %p421 = por %p419, %p420
    %s423 = sadd.s32 %s422, 1
    %p426 = scmp.eq.s32.totalorder %s26, 3
    %p427 = scmp.ne.s32.totalorder %s422, %s424
    %p428 = scmp.eq.s32.totalorder %s26, 0
    %p429 = por %p427, %p428
    %p430 = scmp.ne.s32.totalorder %s422, %s424
    %p431 = scmp.eq.s32.totalorder %s31, 3
    %p432 = por %p430, %p431
    %p433 = scmp.ne.s32.totalorder %s424, %s425
    %p434 = scmp.eq.s32.totalorder %s31, 0
    %p435 = por %p433, %p434
    %p436 = scmp.ne.s32.totalorder %s424, %s425
    %p437 = scmp.eq.s32.totalorder %s32, 3
    %p438 = por %p436, %p437
    %p440 = scmp.ne.s32.totalorder %s425, %s439
    %p441 = scmp.eq.s32.totalorder %s32, 0
    %p442 = por %p440, %p441
    %s444 = sadd.s32 %s443, 1
    %p447 = scmp.eq.s32.totalorder %s26, 3
    %p448 = scmp.ne.s32.totalorder %s443, %s445
    %p449 = scmp.eq.s32.totalorder %s26, 0
    %p450 = por %p448, %p449
    %p451 = scmp.ne.s32.totalorder %s443, %s445
    %p452 = scmp.eq.s32.totalorder %s31, 3
    %p453 = por %p451, %p452
    %p454 = scmp.ne.s32.totalorder %s445, %s446
    %p455 = scmp.eq.s32.totalorder %s31, 0
    %p456 = por %p454, %p455
    %p457 = scmp.ne.s32.totalorder %s445, %s446
    %p458 = scmp.eq.s32.totalorder %s32, 3
    %p459 = por %p457, %p458
    %p461 = scmp.ne.s32.totalorder %s446, %s460
    %p462 = scmp.eq.s32.totalorder %s32, 0
    %p463 = por %p461, %p462
    %s464 = ssub.s32 %s26, %s33
    %p465 = scmp.eq.s32.totalorder %s464, 0
    %s467 = sadd.s32 %s466, 1
    %s468 = scalar_select %p465, %s466, %s467
    %p471 = pneg %p465
    %p472 = scmp.eq.s32.totalorder %s26, 3
    %p473 = por %p471, %p472
    %p474 = scmp.ne.s32.totalorder %s466, %s469
    %p475 = scmp.eq.s32.totalorder %s26, 0
    %p476 = por %p474, %p475
    %p477 = scmp.ne.s32.totalorder %s466, %s469
    %p478 = scmp.eq.s32.totalorder %s31, 3
    %p479 = por %p477, %p478
    %p480 = scmp.ne.s32.totalorder %s469, %s470
    %p481 = scmp.eq.s32.totalorder %s31, 0
    %p482 = por %p480, %p481
    %p483 = scmp.ne.s32.totalorder %s469, %s470
    %p484 = scmp.eq.s32.totalorder %s32, 3
    %p485 = por %p483, %p484
    %p487 = scmp.ne.s32.totalorder %s470, %s486
    %p488 = scmp.eq.s32.totalorder %s32, 0
    %p489 = por %p487, %p488
    %p490 = scmp.le.s32.totalorder 1, %s26
    %p491 = scmp.lt.s32.totalorder %s26, 5
    %p492 = pnand %p490, %p491
    %p493 = pneg %p492
    // Predicated region
    $region9: #{resnet_forward.2} parent=5 // pred_check
      _
    $region10: #{resnet_forward.2} parent=5 // pred_check_branch
      %495 = sbr.rel (%p492) target = $region12
    $region11: #{resnet_forward.2} parent=5 // pred_region
      %s496 = ssub.s32 %s26, 1
      // Predicated region
      $region13: #{resnet_forward.2} parent=11 // pred_check
        %p497 = pneg %p99
      $region14: #{resnet_forward.2} parent=11 // pred_check_branch
        %499 = sbr.rel (%p497) target = $region16
      $region15: #{resnet_forward.2} parent=11 // pred_region
        _
      $region16: #{resnet_forward.2} parent=11 // pred_fallthru
        _
      // Predicated region
      $region17: #{resnet_forward.2} parent=11 // pred_check
        %p500 = pneg %p120
      $region18: #{resnet_forward.2} parent=11 // pred_check_branch
        %502 = sbr.rel (%p500) target = $region20
      $region19: #{resnet_forward.2} parent=11 // pred_region
        _
      $region20: #{resnet_forward.2} parent=11 // pred_fallthru
        _
      // Predicated region
      $region21: #{resnet_forward.2} parent=11 // pred_check
        %p503 = pneg %p141
      $region22: #{resnet_forward.2} parent=11 // pred_check_branch
        %505 = sbr.rel (%p503) target = $region24
      $region23: #{resnet_forward.2} parent=11 // pred_region
        _
      $region24: #{resnet_forward.2} parent=11 // pred_fallthru
        _
      // Predicated region
      $region25: #{resnet_forward.2} parent=11 // pred_check
        %p506 = pneg %p162
      $region26: #{resnet_forward.2} parent=11 // pred_check_branch
        %508 = sbr.rel (%p506) target = $region28
      $region27: #{resnet_forward.2} parent=11 // pred_region
        _
      $region28: #{resnet_forward.2} parent=11 // pred_fallthru
        _
      // Predicated region
      $region29: #{resnet_forward.2} parent=11 // pred_check
        %p509 = pneg %p183
      $region30: #{resnet_forward.2} parent=11 // pred_check_branch
        %511 = sbr.rel (%p509) target = $region32
      $region31: #{resnet_forward.2} parent=11 // pred_region
        _
      $region32: #{resnet_forward.2} parent=11 // pred_fallthru
        _
      // Predicated region
      $region33: #{resnet_forward.2} parent=11 // pred_check
        %p512 = pneg %p204
      $region34: #{resnet_forward.2} parent=11 // pred_check_branch
        %514 = sbr.rel (%p512) target = $region36
      $region35: #{resnet_forward.2} parent=11 // pred_region
        _
      $region36: #{resnet_forward.2} parent=11 // pred_fallthru
        _
      // Predicated region
      $region37: #{resnet_forward.2} parent=11 // pred_check
        %p515 = pneg %p225
      $region38: #{resnet_forward.2} parent=11 // pred_check_branch
        %517 = sbr.rel (%p515) target = $region40
      $region39: #{resnet_forward.2} parent=11 // pred_region
        _
      $region40: #{resnet_forward.2} parent=11 // pred_fallthru
        _
      // Predicated region
      $region41: #{resnet_forward.2} parent=11 // pred_check
        %p518 = pneg %p246
      $region42: #{resnet_forward.2} parent=11 // pred_check_branch
        %520 = sbr.rel (%p518) target = $region44
      $region43: #{resnet_forward.2} parent=11 // pred_region
        _
      $region44: #{resnet_forward.2} parent=11 // pred_fallthru
        _
      // Predicated region
      $region45: #{resnet_forward.2} parent=11 // pred_check
        %p521 = pneg %p267
      $region46: #{resnet_forward.2} parent=11 // pred_check_branch
        %523 = sbr.rel (%p521) target = $region48
      $region47: #{resnet_forward.2} parent=11 // pred_region
        _
      $region48: #{resnet_forward.2} parent=11 // pred_fallthru
        _
      // Predicated region
      $region49: #{resnet_forward.2} parent=11 // pred_check
        %p524 = pneg %p288
      $region50: #{resnet_forward.2} parent=11 // pred_check_branch
        %526 = sbr.rel (%p524) target = $region52
      $region51: #{resnet_forward.2} parent=11 // pred_region
        _
      $region52: #{resnet_forward.2} parent=11 // pred_fallthru
        _
      // Predicated region
      $region53: #{resnet_forward.2} parent=11 // pred_check
        %p527 = pneg %p309
      $region54: #{resnet_forward.2} parent=11 // pred_check_branch
        %529 = sbr.rel (%p527) target = $region56
      $region55: #{resnet_forward.2} parent=11 // pred_region
        _
      $region56: #{resnet_forward.2} parent=11 // pred_fallthru
        _
      // Predicated region
      $region57: #{resnet_forward.2} parent=11 // pred_check
        %p530 = pneg %p330
      $region58: #{resnet_forward.2} parent=11 // pred_check_branch
        %532 = sbr.rel (%p530) target = $region60
      $region59: #{resnet_forward.2} parent=11 // pred_region
        _
      $region60: #{resnet_forward.2} parent=11 // pred_fallthru
        _
      // Predicated region
      $region61: #{resnet_forward.2} parent=11 // pred_check
        %p533 = pneg %p351
      $region62: #{resnet_forward.2} parent=11 // pred_check_branch
        %535 = sbr.rel (%p533) target = $region64
      $region63: #{resnet_forward.2} parent=11 // pred_region
        _
      $region64: #{resnet_forward.2} parent=11 // pred_fallthru
        _
      // Predicated region
      $region65: #{resnet_forward.2} parent=11 // pred_check
        %p536 = pneg %p372
      $region66: #{resnet_forward.2} parent=11 // pred_check_branch
        %538 = sbr.rel (%p536) target = $region68
      $region67: #{resnet_forward.2} parent=11 // pred_region
        _
      $region68: #{resnet_forward.2} parent=11 // pred_fallthru
        _
      // Predicated region
      $region69: #{resnet_forward.2} parent=11 // pred_check
        %p539 = pneg %p393
      $region70: #{resnet_forward.2} parent=11 // pred_check_branch
        %541 = sbr.rel (%p539) target = $region72
      $region71: #{resnet_forward.2} parent=11 // pred_region
        _
      $region72: #{resnet_forward.2} parent=11 // pred_fallthru
        _
      // Predicated region
      $region73: #{resnet_forward.2} parent=11 // pred_check
        %p542 = pneg %p414
      $region74: #{resnet_forward.2} parent=11 // pred_check_branch
        %544 = sbr.rel (%p542) target = $region76
      $region75: #{resnet_forward.2} parent=11 // pred_region
        _
      $region76: #{resnet_forward.2} parent=11 // pred_fallthru
        _
      // Predicated region
      $region77: #{resnet_forward.2} parent=11 // pred_check
        %p545 = pneg %p435
      $region78: #{resnet_forward.2} parent=11 // pred_check_branch
        %547 = sbr.rel (%p545) target = $region80
      $region79: #{resnet_forward.2} parent=11 // pred_region
        _
      $region80: #{resnet_forward.2} parent=11 // pred_fallthru
        _
      // Predicated region
      $region81: #{resnet_forward.2} parent=11 // pred_check
        %p548 = pneg %p456
      $region82: #{resnet_forward.2} parent=11 // pred_check_branch
        %550 = sbr.rel (%p548) target = $region84
      $region83: #{resnet_forward.2} parent=11 // pred_region
        _
      $region84: #{resnet_forward.2} parent=11 // pred_fallthru
        _
    $region12: #{resnet_forward.2} parent=5 // pred_fallthru
      _
    %p551 = scmp.lt.s32.totalorder %s26, 4
    // Predicated region
    $region85: #{resnet_forward.2} parent=5 // pred_check
      %p552 = pneg %p551
    $region86: #{resnet_forward.2} parent=5 // pred_check_branch
      %554 = sbr.rel (%p552) target = $region88
    $region87: #{resnet_forward.2} parent=5 // pred_region
      // Predicated region
      $region89: #{resnet_forward.2} parent=87 // pred_check
        %p555 = pneg %p46
      $region90: #{resnet_forward.2} parent=87 // pred_check_branch
        %557 = sbr.rel (%p555) target = $region92
      $region91: #{resnet_forward.2} parent=87 // pred_region
        %s558 = smul.u32 16, %s26
        %p559 = scmp.lt.s32.totalorder %s558, 63
        %s560 = scalar_select %p559, %s558, 63
        %s561 = smul.addr %s560, 4
        %s562 = scalar_lea.vmem %s0, %s561
        %s563 = smul.u32 16, %s26
      $region92: #{resnet_forward.2} parent=87 // pred_fallthru
        _
      // Predicated region
      $region93: #{resnet_forward.2} parent=87 // pred_check
        %p564 = pneg %p72
      $region94: #{resnet_forward.2} parent=87 // pred_check_branch
        %566 = sbr.rel (%p564) target = $region96
      $region95: #{resnet_forward.2} parent=87 // pred_region
        %p567 = scmp.lt.s32.totalorder %s26, 3
        %s568 = scalar_select %p567, %s26, 3
        %s569 = smul.addr %s568, 4
        %s570 = scalar_lea.vmem %s1, %s569
      $region96: #{resnet_forward.2} parent=87 // pred_fallthru
        _
    $region88: #{resnet_forward.2} parent=5 // pred_fallthru
      _
    %p571 = scmp.le.s32.totalorder 1, %s26
    %p572 = scmp.lt.s32.totalorder %s26, 5
    %p573 = pnand %p571, %p572
    %p574 = pneg %p573
    // Predicated region
    $region97: #{resnet_forward.2} parent=5 // pred_check
      _
    $region98: #{resnet_forward.2} parent=5 // pred_check_branch
      %576 = sbr.rel (%p573) target = $region100
    $region99: #{resnet_forward.2} parent=5 // pred_region
      %s577 = ssub.s32 %s26, 1
      %s578 = smul.u32 16, %s31
      %p579 = scmp.lt.s32.totalorder %s578, 63
      %s580 = scalar_select %p579, %s578, 63
      %s581 = smul.addr %s580, 4
      %s582 = scalar_lea.vmem %s0, %s581
      %p583 = pneg %p52
      %p584 = pneg %p49
      %p585 = scmp.lt.s32.totalorder %s31, 3
      %s586 = scalar_select %p585, %s31, 3
      %s587 = smul.addr %s586, 4
      %s588 = scalar_lea.vmem %s1, %s587
      %p589 = pneg %p78
      %p590 = pneg %p75
      %p591 = pneg %p99
      %p592 = pneg %p96
      %p593 = pneg %p120
      %p594 = pneg %p117
      %p595 = pneg %p141
      %p596 = pneg %p138
      %p597 = pneg %p162
      %p598 = pneg %p159
      %p599 = pneg %p183
      %p600 = pneg %p180
      %p601 = pneg %p204
      %p602 = pneg %p201
      %p603 = pneg %p225
      %p604 = pneg %p222
      %p605 = pneg %p246
      %p606 = pneg %p243
      %p607 = pneg %p267
      %p608 = pneg %p264
      %p609 = pneg %p288
      %p610 = pneg %p285
      %p611 = pneg %p309
      %p612 = pneg %p306
      %p613 = pneg %p330
      %p614 = pneg %p327
      %p615 = pneg %p351
      %p616 = pneg %p348
      %p617 = pneg %p372
      %p618 = pneg %p369
      %p619 = pneg %p393
      %p620 = pneg %p390
      %p621 = pneg %p414
      %p622 = pneg %p411
      %p623 = pneg %p435
      %p624 = pneg %p432
      %p625 = pneg %p456
      %p626 = pneg %p453
      %p627 = pneg %p482
      %p628 = pneg %p479
      %p629 = scmp.lt.s32.totalorder %s31, 3
      %s630 = scalar_select %p629, %s31, 3
      %s631 = smul.addr %s630, 4
      %s632 = smul.addr %s631, 8
      %s633 = scalar_lea.vmem %s20, %s632
      %s634 = smul.u32 16, %s31
      %p635 = scmp.lt.s32.totalorder %s634, 63
      %s636 = scalar_select %p635, %s634, 63
      %s637 = smul.addr %s636, 4
      %s638 = scalar_lea.vmem %s0, %s637
      %s639 = smul.u32 16, %s31
      %p640 = scmp.lt.s32.totalorder %s31, 3
      %s641 = scalar_select %p640, %s31, 3
      %s642 = smul.addr %s641, 4
      %s643 = scalar_lea.vmem %s1, %s642
      %p644 = scmp.lt.s32.totalorder %s31, 3
      %s645 = scalar_select %p644, %s31, 3
      %s646 = smul.addr %s645, 4
      %s647 = smul.addr %s646, 8
      %s648 = scalar_lea.vmem %s20, %s647
      %v650 = vld [vmem:[%s638] sm:$0xf]
      %v651 = vld [vmem:[%s638 + $0x4] sm:$0xf]
      %v652 = vld [vmem:[%s638 + $0x8] sm:$0xf]
      %v653 = vld [vmem:[%s638 + $0xc] sm:$0xf]
      %v654 = vld [vmem:[%s638 + $0x10] sm:$0xf]
      %v655 = vld [vmem:[%s638 + $0x14] sm:$0xf]
      %v656 = vld [vmem:[%s638 + $0x18] sm:$0xf]
      %v657 = vld [vmem:[%s638 + $0x1c] sm:$0xf]
      %v658 = vld [vmem:[%s638 + $0x20] sm:$0xf]
      %v659 = vld [vmem:[%s638 + $0x24] sm:$0xf]
      %v660 = vld [vmem:[%s638 + $0x28] sm:$0xf]
      %v661 = vld [vmem:[%s638 + $0x2c] sm:$0xf]
      %v662 = vld [vmem:[%s638 + $0x30] sm:$0xf]
      %v663 = vld [vmem:[%s638 + $0x34] sm:$0xf]
      %v664 = vld [vmem:[%s638 + $0x38] sm:$0xf]
      %v665 = vld [vmem:[%s638 + $0x3c] sm:$0xf]
      %v666 = vld [vmem:[%s2] sm:$0xf]
      %v667 = vld [vmem:[%s2 + $0x4] sm:$0xf]
      %v668 = vld [vmem:[%s2 + $0x8] sm:$0xf]
      %v669 = vld [vmem:[%s2 + $0xc] sm:$0xf]
      %v670 = vld [vmem:[%s3] sm:$0x1]
      %v672 = vlaneseq
      %v673 = vshrl.u32 %v672, 7
      %v674 = vsub.s32 0, %v673
      %v675 = vrot.slane %v670, %v674
      %v693 = vunpack.c.l.b16 %v650
      %v694 = vunpack.c.l.b16 %v651
      %v695 = vunpack.c.l.b16 %v652
      %v696 = vunpack.c.l.b16 %v653
      %v697 = vunpack.c.l.b16 %v654
      %v698 = vunpack.c.l.b16 %v655
      %v699 = vunpack.c.l.b16 %v656
      %v700 = vunpack.c.l.b16 %v657
      %v701 = vunpack.c.l.b16 %v658
      %v702 = vunpack.c.l.b16 %v659
      %v703 = vunpack.c.l.b16 %v660
      %v704 = vunpack.c.l.b16 %v661
      %v705 = vunpack.c.l.b16 %v662
      %v706 = vunpack.c.l.b16 %v663
      %v707 = vunpack.c.l.b16 %v664
      %v708 = vunpack.c.l.b16 %v665
      %v709 = vpack.c.b16 %v694, %v693
      %v710 = vpack.c.b16 %v696, %v695
      %v711 = vpack.c.b16 %v698, %v697
      %v712 = vpack.c.b16 %v700, %v699
      %v713 = vpack.c.b16 %v702, %v701
      %v714 = vpack.c.b16 %v704, %v703
      %v715 = vpack.c.b16 %v706, %v705
      %v716 = vpack.c.b16 %v708, %v707
      %v721 = vunpack.c.l.b16 %v666
      %v722 = vunpack.c.l.b16 %v667
      %v723 = vunpack.c.l.b16 %v668
      %v724 = vunpack.c.l.b16 %v669
      %v725 = vpack.c.b16 %v722, %v721
      %v726 = vpack.c.b16 %v724, %v723
      %vm729 = vcmask 261120
      %v731 = vsel %vm729, %v709, 0
      %v734 = vsel %vm729, %v710, 0
      %v737 = vsel %vm729, %v711, 0
      %v740 = vsel %vm729, %v712, 0
      %v743 = vsel %vm729, %v713, 0
      %v746 = vsel %vm729, %v714, 0
      %v749 = vsel %vm729, %v715, 0
      %v752 = vsel %vm729, %v716, 0
      %754 = vmatprep.subr.bf16.mxu0 0
      %755 = vmatpush1.bf16.msra.mxu0 0
      %756 = vmatprep.subr.bf16.mxu0 0
      %757 = vmatpush1.bf16.msra.mxu0 0
      %758 = vmatprep.subr.bf16.mxu0 0
      %759 = vmatpush1.bf16.msra.mxu0 0
      %760 = vmatprep.subr.bf16.mxu0 0
      %761 = vmatpush1.bf16.msra.mxu0 0
      %762 = vmatprep.subr.bf16.mxu0 0
      %763 = vmatpush1.bf16.msra.mxu0 0
      %764 = vmatprep.subr.bf16.mxu0 0
      %765 = vmatpush1.bf16.msra.mxu0 0
      %766 = vmatprep.subr.bf16.mxu0 0
      %767 = vmatpush1.bf16.msra.mxu0 %v726
      %768 = vmatprep.subr.bf16.mxu0 0
      %769 = vmatpush1.bf16.msra.mxu0 %v725
      %770 = vmatprep.subr.bf16.mxu0 0
      %771 = vmatpush2.bf16.msra.mxu0 0
      %772 = vmatprep.subr.bf16.mxu0 0
      %773 = vmatpush2.bf16.msra.mxu0 0
      %774 = vmatprep.subr.bf16.mxu0 0
      %775 = vmatpush2.bf16.msra.mxu0 0
      %776 = vmatprep.subr.bf16.mxu0 0
      %777 = vmatpush2.bf16.msra.mxu0 0
      %778 = vmatprep.subr.bf16.mxu0 0
      %779 = vmatpush2.bf16.msra.mxu0 0
      %780 = vmatprep.subr.bf16.mxu0 0
      %781 = vmatpush2.bf16.msra.mxu0 0
      %782 = vmatprep.subr.bf16.mxu0 0
      %783 = vmatpush2.bf16.msra.mxu0 0
      %784 = vmatprep.subr.bf16.mxu0 0
      %785 = vmatpush2.bf16.msra.mxu0 0
      %786 = vmatprep.mubr.bf16.mxu0 0
      %787 = vmatmul.mubr.bf16.gmra.mxu0 %v731
      %v788 = vpop.f32.mrf.mxu0
      %v789 = vadd.f32 %v675, %v788
      %v790 = vpop.f32.mrf.mxu0
      %v791 = vpop.f32.mrf.mxu0
      %v792 = vadd.f32 %v675, %v791
      %v793 = vpop.f32.mrf.mxu0
      %794 = vmatprep.mubr.bf16.mxu0 0
      %795 = vmatmul.mubr.bf16.gmra.mxu0 %v734
      %v796 = vpop.f32.mrf.mxu0
      %v797 = vadd.f32 %v675, %v796
      %v798 = vpop.f32.mrf.mxu0
      %v799 = vpop.f32.mrf.mxu0
      %v800 = vadd.f32 %v675, %v799
      %v801 = vpop.f32.mrf.mxu0
      %802 = vmatprep.mubr.bf16.mxu0 0
      %803 = vmatmul.mubr.bf16.gmra.mxu0 %v737
      %v804 = vpop.f32.mrf.mxu0
      %v805 = vadd.f32 %v675, %v804
      %v806 = vpop.f32.mrf.mxu0
      %v807 = vpop.f32.mrf.mxu0
      %v808 = vadd.f32 %v675, %v807
      %v809 = vpop.f32.mrf.mxu0
      %810 = vmatprep.mubr.bf16.mxu0 0
      %811 = vmatmul.mubr.bf16.gmra.mxu0 %v740
      %v812 = vpop.f32.mrf.mxu0
      %v813 = vadd.f32 %v675, %v812
      %v814 = vpop.f32.mrf.mxu0
      %v815 = vpop.f32.mrf.mxu0
      %v816 = vadd.f32 %v675, %v815
      %v817 = vpop.f32.mrf.mxu0
      %818 = vmatprep.mubr.bf16.mxu0 0
      %819 = vmatmul.mubr.bf16.gmra.mxu0 %v743
      %v820 = vpop.f32.mrf.mxu0
      %v821 = vadd.f32 %v675, %v820
      %v822 = vpop.f32.mrf.mxu0
      %v823 = vpop.f32.mrf.mxu0
      %v824 = vadd.f32 %v675, %v823
      %v825 = vpop.f32.mrf.mxu0
      %826 = vmatprep.mubr.bf16.mxu0 0
      %827 = vmatmul.mubr.bf16.gmra.mxu0 %v746
      %v828 = vpop.f32.mrf.mxu0
      %v829 = vadd.f32 %v675, %v828
      %v830 = vpop.f32.mrf.mxu0
      %v831 = vpop.f32.mrf.mxu0
      %v832 = vadd.f32 %v675, %v831
      %v833 = vpop.f32.mrf.mxu0
      %834 = vmatprep.mubr.bf16.mxu0 0
      %835 = vmatmul.mubr.bf16.gmra.mxu0 %v749
      %v836 = vpop.f32.mrf.mxu0
      %v837 = vadd.f32 %v675, %v836
      %v838 = vpop.f32.mrf.mxu0
      %v839 = vpop.f32.mrf.mxu0
      %v840 = vadd.f32 %v675, %v839
      %v841 = vpop.f32.mrf.mxu0
      %842 = vmatprep.mubr.bf16.mxu0 0
      %843 = vmatmul.mubr.bf16.gmra.mxu0 %v752
      %v844 = vpop.f32.mrf.mxu0
      %v845 = vadd.f32 %v675, %v844
      %v846 = vpop.f32.mrf.mxu0
      %v847 = vpop.f32.mrf.mxu0
      %v848 = vadd.f32 %v675, %v847
      %v849 = vpop.f32.mrf.mxu0
      %850 = vdwg.mxu0
      %v851 = vmax.f32 %v789, 0.0
      %v852 = vmax.f32 %v792, 0.0
      %v853 = vmax.f32 %v797, 0.0
      %v854 = vmax.f32 %v800, 0.0
      %v855 = vmax.f32 %v805, 0.0
      %v856 = vmax.f32 %v808, 0.0
      %v857 = vmax.f32 %v813, 0.0
      %v858 = vmax.f32 %v816, 0.0
      %v859 = vmax.f32 %v821, 0.0
      %v860 = vmax.f32 %v824, 0.0
      %v861 = vmax.f32 %v829, 0.0
      %v862 = vmax.f32 %v832, 0.0
      %v863 = vmax.f32 %v837, 0.0
      %v864 = vmax.f32 %v840, 0.0
      %v865 = vmax.f32 %v845, 0.0
      %v866 = vmax.f32 %v848, 0.0
      %v867 = vld [vmem:[%s4] sm:$0xf]
      %v868 = vld [vmem:[%s4 + $0x4] sm:$0xf]
      %v869 = vld [vmem:[%s4 + $0x8] sm:$0xf]
      %v870 = vld [vmem:[%s4 + $0xc] sm:$0xf]
      %v871 = vld [vmem:[%s4 + $0x10] sm:$0xf]
      %v872 = vld [vmem:[%s4 + $0x14] sm:$0xf]
      %v873 = vld [vmem:[%s4 + $0x18] sm:$0xf]
      %v874 = vld [vmem:[%s4 + $0x1c] sm:$0xf]
      %v875 = vld [vmem:[%s4 + $0x20] sm:$0xf]
      %v876 = vld [vmem:[%s4 + $0x24] sm:$0xf]
      %v877 = vld [vmem:[%s4 + $0x28] sm:$0xf]
      %v878 = vld [vmem:[%s4 + $0x2c] sm:$0xf]
      %v879 = vld [vmem:[%s4 + $0x30] sm:$0xf]
      %v880 = vld [vmem:[%s4 + $0x34] sm:$0xf]
      %v881 = vld [vmem:[%s4 + $0x38] sm:$0xf]
      %v882 = vld [vmem:[%s4 + $0x3c] sm:$0xf]
      %v883 = vld [vmem:[%s5] sm:$0x1]
      %v884 = vld [vmem:[%s6] sm:$0xf]
      %v885 = vld [vmem:[%s6 + $0x4] sm:$0xf]
      %v886 = vld [vmem:[%s6 + $0x8] sm:$0xf]
      %v887 = vld [vmem:[%s6 + $0xc] sm:$0xf]
      %v888 = vld [vmem:[%s6 + $0x10] sm:$0xf]
      %v889 = vld [vmem:[%s6 + $0x14] sm:$0xf]
      %v890 = vld [vmem:[%s6 + $0x18] sm:$0xf]
      %v891 = vld [vmem:[%s6 + $0x1c] sm:$0xf]
      %v892 = vld [vmem:[%s6 + $0x20] sm:$0xf]
      %v893 = vld [vmem:[%s6 + $0x24] sm:$0xf]
      %v894 = vld [vmem:[%s6 + $0x28] sm:$0xf]
      %v895 = vld [vmem:[%s6 + $0x2c] sm:$0xf]
      %v896 = vld [vmem:[%s6 + $0x30] sm:$0xf]
      %v897 = vld [vmem:[%s6 + $0x34] sm:$0xf]
      %v898 = vld [vmem:[%s6 + $0x38] sm:$0xf]
      %v899 = vld [vmem:[%s6 + $0x3c] sm:$0xf]
      %v900 = vld [vmem:[%s7] sm:$0x1]
      %v901 = vpack.c.bf16 %v852, %v851
      %v902 = vpack.c.bf16 %v854, %v853
      %v903 = vpack.c.bf16 %v856, %v855
      %v904 = vpack.c.bf16 %v858, %v857
      %v905 = vpack.c.bf16 %v860, %v859
      %v906 = vpack.c.bf16 %v862, %v861
      %v907 = vpack.c.bf16 %v864, %v863
      %v908 = vpack.c.bf16 %v866, %v865
      %v910 = vlaneseq
      %v911 = vshrl.u32 %v910, 7
      %v912 = vsub.s32 0, %v911
      %v913 = vrot.slane %v883, %v912
      %v931 = vunpack.c.l.b16 %v867
      %v932 = vunpack.c.l.b16 %v868
      %v933 = vunpack.c.l.b16 %v869
      %v934 = vunpack.c.l.b16 %v870
      %v935 = vunpack.c.l.b16 %v871
      %v936 = vunpack.c.l.b16 %v872
      %v937 = vunpack.c.l.b16 %v873
      %v938 = vunpack.c.l.b16 %v874
      %v939 = vunpack.c.l.b16 %v875
      %v940 = vunpack.c.l.b16 %v876
      %v941 = vunpack.c.l.b16 %v877
      %v942 = vunpack.c.l.b16 %v878
      %v943 = vunpack.c.l.b16 %v879
      %v944 = vunpack.c.l.b16 %v880
      %v945 = vunpack.c.l.b16 %v881
      %v946 = vunpack.c.l.b16 %v882
      %v947 = vpack.c.b16 %v932, %v931
      %v948 = vpack.c.b16 %v934, %v933
      %v949 = vpack.c.b16 %v936, %v935
      %v950 = vpack.c.b16 %v938, %v937
      %v951 = vpack.c.b16 %v940, %v939
      %v952 = vpack.c.b16 %v942, %v941
      %v953 = vpack.c.b16 %v944, %v943
      %v954 = vpack.c.b16 %v946, %v945
      %963 = vmatprep.subr.bf16.mxu0 0
      %964 = vmatpush1.bf16.msra.mxu0 %v954
      %965 = vmatprep.subr.bf16.mxu0 0
      %966 = vmatpush1.bf16.msra.mxu0 %v953
      %967 = vmatprep.subr.bf16.mxu0 0
      %968 = vmatpush1.bf16.msra.mxu0 %v952
      %969 = vmatprep.subr.bf16.mxu0 0
      %970 = vmatpush1.bf16.msra.mxu0 %v951
      %971 = vmatprep.subr.bf16.mxu0 0
      %972 = vmatpush1.bf16.msra.mxu0 %v950
      %973 = vmatprep.subr.bf16.mxu0 0
      %974 = vmatpush1.bf16.msra.mxu0 %v949
      %975 = vmatprep.subr.bf16.mxu0 0
      %976 = vmatpush1.bf16.msra.mxu0 %v948
      %977 = vmatprep.subr.bf16.mxu0 0
      %978 = vmatpush1.bf16.msra.mxu0 %v947
      %979 = vmatprep.subr.bf16.mxu0 0
      %980 = vmatpush2.bf16.msra.mxu0 0
      %981 = vmatprep.subr.bf16.mxu0 0
      %982 = vmatpush2.bf16.msra.mxu0 0
      %983 = vmatprep.subr.bf16.mxu0 0
      %984 = vmatpush2.bf16.msra.mxu0 0
      %985 = vmatprep.subr.bf16.mxu0 0
      %986 = vmatpush2.bf16.msra.mxu0 0
      %987 = vmatprep.subr.bf16.mxu0 0
      %988 = vmatpush2.bf16.msra.mxu0 0
      %989 = vmatprep.subr.bf16.mxu0 0
      %990 = vmatpush2.bf16.msra.mxu0 0
      %991 = vmatprep.subr.bf16.mxu0 0
      %992 = vmatpush2.bf16.msra.mxu0 0
      %993 = vmatprep.subr.bf16.mxu0 0
      %994 = vmatpush2.bf16.msra.mxu0 0
      %995 = vmatprep.mubr.bf16.mxu0 0
      %996 = vmatmul.mubr.bf16.gmra.mxu0 %v901
      %v997 = vpop.f32.mrf.mxu0
      %v998 = vadd.f32 %v913, %v997
      %v999 = vpop.f32.mrf.mxu0
      %v1000 = vpop.f32.mrf.mxu0
      %v1001 = vadd.f32 %v913, %v1000
      %v1002 = vpop.f32.mrf.mxu0
      %1003 = vmatprep.mubr.bf16.mxu0 0
      %1004 = vmatmul.mubr.bf16.gmra.mxu0 %v902
      %v1005 = vpop.f32.mrf.mxu0
      %v1006 = vadd.f32 %v913, %v1005
      %v1007 = vpop.f32.mrf.mxu0
      %v1008 = vpop.f32.mrf.mxu0
      %v1009 = vadd.f32 %v913, %v1008
      %v1010 = vpop.f32.mrf.mxu0
      %1011 = vmatprep.mubr.bf16.mxu0 0
      %1012 = vmatmul.mubr.bf16.gmra.mxu0 %v903
      %v1013 = vpop.f32.mrf.mxu0
      %v1014 = vadd.f32 %v913, %v1013
      %v1015 = vpop.f32.mrf.mxu0
      %v1016 = vpop.f32.mrf.mxu0
      %v1017 = vadd.f32 %v913, %v1016
      %v1018 = vpop.f32.mrf.mxu0
      %1019 = vmatprep.mubr.bf16.mxu0 0
      %1020 = vmatmul.mubr.bf16.gmra.mxu0 %v904
      %v1021 = vpop.f32.mrf.mxu0
      %v1022 = vadd.f32 %v913, %v1021
      %v1023 = vpop.f32.mrf.mxu0
      %v1024 = vpop.f32.mrf.mxu0
      %v1025 = vadd.f32 %v913, %v1024
      %v1026 = vpop.f32.mrf.mxu0
      %1027 = vmatprep.mubr.bf16.mxu0 0
      %1028 = vmatmul.mubr.bf16.gmra.mxu0 %v905
      %v1029 = vpop.f32.mrf.mxu0
      %v1030 = vadd.f32 %v913, %v1029
      %v1031 = vpop.f32.mrf.mxu0
      %v1032 = vpop.f32.mrf.mxu0
      %v1033 = vadd.f32 %v913, %v1032
      %v1034 = vpop.f32.mrf.mxu0
      %1035 = vmatprep.mubr.bf16.mxu0 0
      %1036 = vmatmul.mubr.bf16.gmra.mxu0 %v906
      %v1037 = vpop.f32.mrf.mxu0
      %v1038 = vadd.f32 %v913, %v1037
      %v1039 = vpop.f32.mrf.mxu0
      %v1040 = vpop.f32.mrf.mxu0
      %v1041 = vadd.f32 %v913, %v1040
      %v1042 = vpop.f32.mrf.mxu0
      %1043 = vmatprep.mubr.bf16.mxu0 0
      %1044 = vmatmul.mubr.bf16.gmra.mxu0 %v907
      %v1045 = vpop.f32.mrf.mxu0
      %v1046 = vadd.f32 %v913, %v1045
      %v1047 = vpop.f32.mrf.mxu0
      %v1048 = vpop.f32.mrf.mxu0
      %v1049 = vadd.f32 %v913, %v1048
      %v1050 = vpop.f32.mrf.mxu0
      %1051 = vmatprep.mubr.bf16.mxu0 0
      %1052 = vmatmul.mubr.bf16.gmra.mxu0 %v908
      %v1053 = vpop.f32.mrf.mxu0
      %v1054 = vadd.f32 %v913, %v1053
      %v1055 = vpop.f32.mrf.mxu0
      %v1056 = vpop.f32.mrf.mxu0
      %v1057 = vadd.f32 %v913, %v1056
      %v1058 = vpop.f32.mrf.mxu0
      %1059 = vdwg.mxu0
      %v1060 = vmax.f32 %v998, 0.0
      %v1061 = vmax.f32 %v1001, 0.0
      %v1062 = vmax.f32 %v1006, 0.0
      %v1063 = vmax.f32 %v1009, 0.0
      %v1064 = vmax.f32 %v1014, 0.0
      %v1065 = vmax.f32 %v1017, 0.0
      %v1066 = vmax.f32 %v1022, 0.0
      %v1067 = vmax.f32 %v1025, 0.0
      %v1068 = vmax.f32 %v1030, 0.0
      %v1069 = vmax.f32 %v1033, 0.0
      %v1070 = vmax.f32 %v1038, 0.0
      %v1071 = vmax.f32 %v1041, 0.0
      %v1072 = vmax.f32 %v1046, 0.0
      %v1073 = vmax.f32 %v1049, 0.0
      %v1074 = vmax.f32 %v1054, 0.0
      %v1075 = vmax.f32 %v1057, 0.0
      %v1076 = vpack.c.bf16 %v1061, %v1060
      %v1077 = vpack.c.bf16 %v1063, %v1062
      %v1078 = vpack.c.bf16 %v1065, %v1064
      %v1079 = vpack.c.bf16 %v1067, %v1066
      %v1080 = vpack.c.bf16 %v1069, %v1068
      %v1081 = vpack.c.bf16 %v1071, %v1070
      %v1082 = vpack.c.bf16 %v1073, %v1072
      %v1083 = vpack.c.bf16 %v1075, %v1074
      %v1085 = vlaneseq
      %v1086 = vshrl.u32 %v1085, 7
      %v1087 = vsub.s32 0, %v1086
      %v1088 = vrot.slane %v900, %v1087
      %v1106 = vunpack.c.l.b16 %v884
      %v1107 = vunpack.c.l.b16 %v885
      %v1108 = vunpack.c.l.b16 %v886
      %v1109 = vunpack.c.l.b16 %v887
      %v1110 = vunpack.c.l.b16 %v888
      %v1111 = vunpack.c.l.b16 %v889
      %v1112 = vunpack.c.l.b16 %v890
      %v1113 = vunpack.c.l.b16 %v891
      %v1114 = vunpack.c.l.b16 %v892
      %v1115 = vunpack.c.l.b16 %v893
      %v1116 = vunpack.c.l.b16 %v894
      %v1117 = vunpack.c.l.b16 %v895
      %v1118 = vunpack.c.l.b16 %v896
      %v1119 = vunpack.c.l.b16 %v897
      %v1120 = vunpack.c.l.b16 %v898
      %v1121 = vunpack.c.l.b16 %v899
      %v1122 = vpack.c.b16 %v1107, %v1106
      %v1123 = vpack.c.b16 %v1109, %v1108
      %v1124 = vpack.c.b16 %v1111, %v1110
      %v1125 = vpack.c.b16 %v1113, %v1112
      %v1126 = vpack.c.b16 %v1115, %v1114
      %v1127 = vpack.c.b16 %v1117, %v1116
      %v1128 = vpack.c.b16 %v1119, %v1118
      %v1129 = vpack.c.b16 %v1121, %v1120
      %1138 = vmatprep.subr.bf16.mxu0 0
      %1139 = vmatpush1.bf16.msra.mxu0 %v1129
      %1140 = vmatprep.subr.bf16.mxu0 0
      %1141 = vmatpush1.bf16.msra.mxu0 %v1128
      %1142 = vmatprep.subr.bf16.mxu0 0
      %1143 = vmatpush1.bf16.msra.mxu0 %v1127
      %1144 = vmatprep.subr.bf16.mxu0 0
      %1145 = vmatpush1.bf16.msra.mxu0 %v1126
      %1146 = vmatprep.subr.bf16.mxu0 0
      %1147 = vmatpush1.bf16.msra.mxu0 %v1125
      %1148 = vmatprep.subr.bf16.mxu0 0
      %1149 = vmatpush1.bf16.msra.mxu0 %v1124
      %1150 = vmatprep.subr.bf16.mxu0 0
      %1151 = vmatpush1.bf16.msra.mxu0 %v1123
      %1152 = vmatprep.subr.bf16.mxu0 0
      %1153 = vmatpush1.bf16.msra.mxu0 %v1122
      %1154 = vmatprep.subr.bf16.mxu0 0
      %1155 = vmatpush2.bf16.msra.mxu0 0
      %1156 = vmatprep.subr.bf16.mxu0 0
      %1157 = vmatpush2.bf16.msra.mxu0 0
      %1158 = vmatprep.subr.bf16.mxu0 0
      %1159 = vmatpush2.bf16.msra.mxu0 0
      %1160 = vmatprep.subr.bf16.mxu0 0
      %1161 = vmatpush2.bf16.msra.mxu0 0
      %1162 = vmatprep.subr.bf16.mxu0 0
      %1163 = vmatpush2.bf16.msra.mxu0 0
      %1164 = vmatprep.subr.bf16.mxu0 0
      %1165 = vmatpush2.bf16.msra.mxu0 0
      %1166 = vmatprep.subr.bf16.mxu0 0
      %1167 = vmatpush2.bf16.msra.mxu0 0
      %1168 = vmatprep.subr.bf16.mxu0 0
      %1169 = vmatpush2.bf16.msra.mxu0 0
      %1170 = vmatprep.mubr.bf16.mxu0 0
      %1171 = vmatmul.mubr.bf16.gmra.mxu0 %v1076
      %v1172 = vpop.f32.mrf.mxu0
      %v1173 = vadd.f32 %v1088, %v1172
      %v1174 = vpop.f32.mrf.mxu0
      %v1175 = vpop.f32.mrf.mxu0
      %v1176 = vadd.f32 %v1088, %v1175
      %v1177 = vpop.f32.mrf.mxu0
      %1178 = vmatprep.mubr.bf16.mxu0 0
      %1179 = vmatmul.mubr.bf16.gmra.mxu0 %v1077
      %v1180 = vpop.f32.mrf.mxu0
      %v1181 = vadd.f32 %v1088, %v1180
      %v1182 = vpop.f32.mrf.mxu0
      %v1183 = vpop.f32.mrf.mxu0
      %v1184 = vadd.f32 %v1088, %v1183
      %v1185 = vpop.f32.mrf.mxu0
      %1186 = vmatprep.mubr.bf16.mxu0 0
      %1187 = vmatmul.mubr.bf16.gmra.mxu0 %v1078
      %v1188 = vpop.f32.mrf.mxu0
      %v1189 = vadd.f32 %v1088, %v1188
      %v1190 = vpop.f32.mrf.mxu0
      %v1191 = vpop.f32.mrf.mxu0
      %v1192 = vadd.f32 %v1088, %v1191
      %v1193 = vpop.f32.mrf.mxu0
      %1194 = vmatprep.mubr.bf16.mxu0 0
      %1195 = vmatmul.mubr.bf16.gmra.mxu0 %v1079
      %v1196 = vpop.f32.mrf.mxu0
      %v1197 = vadd.f32 %v1088, %v1196
      %v1198 = vpop.f32.mrf.mxu0
      %v1199 = vpop.f32.mrf.mxu0
      %v1200 = vadd.f32 %v1088, %v1199
      %v1201 = vpop.f32.mrf.mxu0
      %1202 = vmatprep.mubr.bf16.mxu0 0
      %1203 = vmatmul.mubr.bf16.gmra.mxu0 %v1080
      %v1204 = vpop.f32.mrf.mxu0
      %v1205 = vadd.f32 %v1088, %v1204
      %v1206 = vpop.f32.mrf.mxu0
      %v1207 = vpop.f32.mrf.mxu0
      %v1208 = vadd.f32 %v1088, %v1207
      %v1209 = vpop.f32.mrf.mxu0
      %1210 = vmatprep.mubr.bf16.mxu0 0
      %1211 = vmatmul.mubr.bf16.gmra.mxu0 %v1081
      %v1212 = vpop.f32.mrf.mxu0
      %v1213 = vadd.f32 %v1088, %v1212
      %v1214 = vpop.f32.mrf.mxu0
      %v1215 = vpop.f32.mrf.mxu0
      %v1216 = vadd.f32 %v1088, %v1215
      %v1217 = vpop.f32.mrf.mxu0
      %1218 = vmatprep.mubr.bf16.mxu0 0
      %1219 = vmatmul.mubr.bf16.gmra.mxu0 %v1082
      %v1220 = vpop.f32.mrf.mxu0
      %v1221 = vadd.f32 %v1088, %v1220
      %v1222 = vpop.f32.mrf.mxu0
      %v1223 = vpop.f32.mrf.mxu0
      %v1224 = vadd.f32 %v1088, %v1223
      %v1225 = vpop.f32.mrf.mxu0
      %1226 = vmatprep.mubr.bf16.mxu0 0
      %1227 = vmatmul.mubr.bf16.gmra.mxu0 %v1083
      %v1228 = vpop.f32.mrf.mxu0
      %v1229 = vadd.f32 %v1088, %v1228
      %v1230 = vpop.f32.mrf.mxu0
      %v1231 = vpop.f32.mrf.mxu0
      %v1232 = vadd.f32 %v1088, %v1231
      %v1233 = vpop.f32.mrf.mxu0
      %1234 = vdwg.mxu0
      %v1235 = vadd.f32 %v1173, %v851
      %v1236 = vadd.f32 %v1176, %v852
      %v1237 = vadd.f32 %v1181, %v853
      %v1238 = vadd.f32 %v1184, %v854
      %v1239 = vadd.f32 %v1189, %v855
      %v1240 = vadd.f32 %v1192, %v856
      %v1241 = vadd.f32 %v1197, %v857
      %v1242 = vadd.f32 %v1200, %v858
      %v1243 = vadd.f32 %v1205, %v859
      %v1244 = vadd.f32 %v1208, %v860
      %v1245 = vadd.f32 %v1213, %v861
      %v1246 = vadd.f32 %v1216, %v862
      %v1247 = vadd.f32 %v1221, %v863
      %v1248 = vadd.f32 %v1224, %v864
      %v1249 = vadd.f32 %v1229, %v865
      %v1250 = vadd.f32 %v1232, %v866
      %v1251 = vmax.f32 %v1235, 0.0
      %v1252 = vmax.f32 %v1236, 0.0
      %v1253 = vmax.f32 %v1237, 0.0
      %v1254 = vmax.f32 %v1238, 0.0
      %v1255 = vmax.f32 %v1239, 0.0
      %v1256 = vmax.f32 %v1240, 0.0
      %v1257 = vmax.f32 %v1241, 0.0
      %v1258 = vmax.f32 %v1242, 0.0
      %v1259 = vmax.f32 %v1243, 0.0
      %v1260 = vmax.f32 %v1244, 0.0
      %v1261 = vmax.f32 %v1245, 0.0
      %v1262 = vmax.f32 %v1246, 0.0
      %v1263 = vmax.f32 %v1247, 0.0
      %v1264 = vmax.f32 %v1248, 0.0
      %v1265 = vmax.f32 %v1249, 0.0
      %v1266 = vmax.f32 %v1250, 0.0
      %v1267 = vld [vmem:[%s8] sm:$0xff]
      %v1268 = vld [vmem:[%s8 + $0x8] sm:$0xff]
      %v1269 = vld [vmem:[%s8 + $0x10] sm:$0xff]
      %v1270 = vld [vmem:[%s8 + $0x18] sm:$0xff]
      %v1271 = vld [vmem:[%s8 + $0x20] sm:$0xff]
      %v1272 = vld [vmem:[%s8 + $0x28] sm:$0xff]
      %v1273 = vld [vmem:[%s8 + $0x30] sm:$0xff]
      %v1274 = vld [vmem:[%s8 + $0x38] sm:$0xff]
      %v1275 = vld [vmem:[%s8 + $0x40] sm:$0xff]
      %v1276 = vld [vmem:[%s8 + $0x48] sm:$0xff]
      %v1277 = vld [vmem:[%s8 + $0x50] sm:$0xff]
      %v1278 = vld [vmem:[%s8 + $0x58] sm:$0xff]
      %v1279 = vld [vmem:[%s8 + $0x60] sm:$0xff]
      %v1280 = vld [vmem:[%s8 + $0x68] sm:$0xff]
      %v1281 = vld [vmem:[%s8 + $0x70] sm:$0xff]
      %v1282 = vld [vmem:[%s8 + $0x78] sm:$0xff]
      %v1283 = vld [vmem:[%s9] sm:$0x3]
      %v1284 = vld [vmem:[%s10] sm:$0xf]
      %v1285 = vld [vmem:[%s10 + $0x4] sm:$0xf]
      %v1286 = vld [vmem:[%s10 + $0x8] sm:$0xf]
      %v1287 = vld [vmem:[%s10 + $0xc] sm:$0xf]
      %v1288 = vld [vmem:[%s10 + $0x10] sm:$0xf]
      %v1289 = vld [vmem:[%s10 + $0x14] sm:$0xf]
      %v1290 = vld [vmem:[%s10 + $0x18] sm:$0xf]
      %v1291 = vld [vmem:[%s10 + $0x1c] sm:$0xf]
      %v1292 = vld [vmem:[%s10 + $0x20] sm:$0xf]
      %v1293 = vld [vmem:[%s10 + $0x24] sm:$0xf]
      %v1294 = vld [vmem:[%s10 + $0x28] sm:$0xf]
      %v1295 = vld [vmem:[%s10 + $0x2c] sm:$0xf]
      %v1296 = vld [vmem:[%s10 + $0x30] sm:$0xf]
      %v1297 = vld [vmem:[%s10 + $0x34] sm:$0xf]
      %v1298 = vld [vmem:[%s10 + $0x38] sm:$0xf]
      %v1299 = vld [vmem:[%s10 + $0x3c] sm:$0xf]
      %v1300 = vld [vmem:[%s11] sm:$0x1]
      %v1301 = vpack.c.bf16 %v1252, %v1251
      %v1302 = vpack.c.bf16 %v1254, %v1253
      %v1303 = vpack.c.bf16 %v1256, %v1255
      %v1304 = vpack.c.bf16 %v1258, %v1257
      %v1305 = vpack.c.bf16 %v1260, %v1259
      %v1306 = vpack.c.bf16 %v1262, %v1261
      %v1307 = vpack.c.bf16 %v1264, %v1263
      %v1308 = vpack.c.bf16 %v1266, %v1265
      %v1310 = vlaneseq
      %v1311 = vshrl.u32 %v1310, 7
      %v1312 = vsub.s32 0, %v1311
      %v1313 = vrot.slane %v1283, %v1312
      %v1314 = vlaneseq
      %v1315 = vshrl.u32 %v1314, 7
      %v1316 = vsub.s32 1, %v1315
      %v1317 = vrot.slane %v1283, %v1316
      %v1336 = vunpack.c.l.b16 %v1267
      %v1337 = vunpack.c.h.b16 %v1267
      %v1338 = vunpack.c.l.b16 %v1268
      %v1339 = vunpack.c.h.b16 %v1268
      %v1340 = vunpack.c.l.b16 %v1269
      %v1341 = vunpack.c.h.b16 %v1269
      %v1342 = vunpack.c.l.b16 %v1270
      %v1343 = vunpack.c.h.b16 %v1270
      %v1344 = vunpack.c.l.b16 %v1271
      %v1345 = vunpack.c.h.b16 %v1271
      %v1346 = vunpack.c.l.b16 %v1272
      %v1347 = vunpack.c.h.b16 %v1272
      %v1348 = vunpack.c.l.b16 %v1273
      %v1349 = vunpack.c.h.b16 %v1273
      %v1350 = vunpack.c.l.b16 %v1274
      %v1351 = vunpack.c.h.b16 %v1274
      %v1352 = vunpack.c.l.b16 %v1275
      %v1353 = vunpack.c.h.b16 %v1275
      %v1354 = vunpack.c.l.b16 %v1276
      %v1355 = vunpack.c.h.b16 %v1276
      %v1356 = vunpack.c.l.b16 %v1277
      %v1357 = vunpack.c.h.b16 %v1277
      %v1358 = vunpack.c.l.b16 %v1278
      %v1359 = vunpack.c.h.b16 %v1278
      %v1360 = vunpack.c.l.b16 %v1279
      %v1361 = vunpack.c.h.b16 %v1279
      %v1362 = vunpack.c.l.b16 %v1280
      %v1363 = vunpack.c.h.b16 %v1280
      %v1364 = vunpack.c.l.b16 %v1281
      %v1365 = vunpack.c.h.b16 %v1281
      %v1366 = vunpack.c.l.b16 %v1282
      %v1367 = vunpack.c.h.b16 %v1282
      %v1368 = vpack.c.b16 %v1338, %v1336
      %v1369 = vpack.c.b16 %v1339, %v1337
      %v1370 = vpack.c.b16 %v1342, %v1340
      %v1371 = vpack.c.b16 %v1343, %v1341
      %v1372 = vpack.c.b16 %v1346, %v1344
      %v1373 = vpack.c.b16 %v1347, %v1345
      %v1374 = vpack.c.b16 %v1350, %v1348
      %v1375 = vpack.c.b16 %v1351, %v1349
      %v1376 = vpack.c.b16 %v1354, %v1352
      %v1377 = vpack.c.b16 %v1355, %v1353
      %v1378 = vpack.c.b16 %v1358, %v1356
      %v1379 = vpack.c.b16 %v1359, %v1357
      %v1380 = vpack.c.b16 %v1362, %v1360
      %v1381 = vpack.c.b16 %v1363, %v1361
      %v1382 = vpack.c.b16 %v1366, %v1364
      %v1383 = vpack.c.b16 %v1367, %v1365
      %1400 = vmatprep.subr.bf16.mxu0 %v1383
      %1401 = vmatpush1.bf16.msra.mxu0 %v1382
      %1402 = vmatprep.subr.bf16.mxu0 %v1381
      %1403 = vmatpush1.bf16.msra.mxu0 %v1380
      %1404 = vmatprep.subr.bf16.mxu0 %v1379
      %1405 = vmatpush1.bf16.msra.mxu0 %v1378
      %1406 = vmatprep.subr.bf16.mxu0 %v1377
      %1407 = vmatpush1.bf16.msra.mxu0 %v1376
      %1408 = vmatprep.subr.bf16.mxu0 %v1375
      %1409 = vmatpush1.bf16.msra.mxu0 %v1374
      %1410 = vmatprep.subr.bf16.mxu0 %v1373
      %1411 = vmatpush1.bf16.msra.mxu0 %v1372
      %1412 = vmatprep.subr.bf16.mxu0 %v1371
      %1413 = vmatpush1.bf16.msra.mxu0 %v1370
      %1414 = vmatprep.subr.bf16.mxu0 %v1369
      %1415 = vmatpush1.bf16.msra.mxu0 %v1368
      %1416 = vmatprep.subr.bf16.mxu0 0
      %1417 = vmatpush2.bf16.msra.mxu0 0
      %1418 = vmatprep.subr.bf16.mxu0 0
      %1419 = vmatpush2.bf16.msra.mxu0 0
      %1420 = vmatprep.subr.bf16.mxu0 0
      %1421 = vmatpush2.bf16.msra.mxu0 0
      %1422 = vmatprep.subr.bf16.mxu0 0
      %1423 = vmatpush2.bf16.msra.mxu0 0
      %1424 = vmatprep.subr.bf16.mxu0 0
      %1425 = vmatpush2.bf16.msra.mxu0 0
      %1426 = vmatprep.subr.bf16.mxu0 0
      %1427 = vmatpush2.bf16.msra.mxu0 0
      %1428 = vmatprep.subr.bf16.mxu0 0
      %1429 = vmatpush2.bf16.msra.mxu0 0
      %1430 = vmatprep.subr.bf16.mxu0 0
      %1431 = vmatpush2.bf16.msra.mxu0 0
      %1432 = vmatprep.mubr.bf16.mxu0 0
      %1433 = vmatmul.mubr.bf16.gmra.mxu0 %v1301
      %v1434 = vpop.f32.mrf.mxu0
      %v1435 = vadd.f32 %v1313, %v1434
      %v1436 = vpop.f32.mrf.mxu0
      %v1437 = vadd.f32 %v1317, %v1436
      %v1438 = vpop.f32.mrf.mxu0
      %v1439 = vadd.f32 %v1313, %v1438
      %v1440 = vpop.f32.mrf.mxu0
      %v1441 = vadd.f32 %v1317, %v1440
      %1442 = vmatprep.mubr.bf16.mxu0 0
      %1443 = vmatmul.mubr.bf16.gmra.mxu0 %v1302
      %v1444 = vpop.f32.mrf.mxu0
      %v1445 = vadd.f32 %v1313, %v1444
      %v1446 = vpop.f32.mrf.mxu0
      %v1447 = vadd.f32 %v1317, %v1446
      %v1448 = vpop.f32.mrf.mxu0
      %v1449 = vadd.f32 %v1313, %v1448
      %v1450 = vpop.f32.mrf.mxu0
      %v1451 = vadd.f32 %v1317, %v1450
      %1452 = vmatprep.mubr.bf16.mxu0 0
      %1453 = vmatmul.mubr.bf16.gmra.mxu0 %v1303
      %v1454 = vpop.f32.mrf.mxu0
      %v1455 = vadd.f32 %v1313, %v1454
      %v1456 = vpop.f32.mrf.mxu0
      %v1457 = vadd.f32 %v1317, %v1456
      %v1458 = vpop.f32.mrf.mxu0
      %v1459 = vadd.f32 %v1313, %v1458
      %v1460 = vpop.f32.mrf.mxu0
      %v1461 = vadd.f32 %v1317, %v1460
      %1462 = vmatprep.mubr.bf16.mxu0 0
      %1463 = vmatmul.mubr.bf16.gmra.mxu0 %v1304
      %v1464 = vpop.f32.mrf.mxu0
      %v1465 = vadd.f32 %v1313, %v1464
      %v1466 = vpop.f32.mrf.mxu0
      %v1467 = vadd.f32 %v1317, %v1466
      %v1468 = vpop.f32.mrf.mxu0
      %v1469 = vadd.f32 %v1313, %v1468
      %v1470 = vpop.f32.mrf.mxu0
      %v1471 = vadd.f32 %v1317, %v1470
      %1472 = vmatprep.mubr.bf16.mxu0 0
      %1473 = vmatmul.mubr.bf16.gmra.mxu0 %v1305
      %v1474 = vpop.f32.mrf.mxu0
      %v1475 = vadd.f32 %v1313, %v1474
      %v1476 = vpop.f32.mrf.mxu0
      %v1477 = vadd.f32 %v1317, %v1476
      %v1478 = vpop.f32.mrf.mxu0
      %v1479 = vadd.f32 %v1313, %v1478
      %v1480 = vpop.f32.mrf.mxu0
      %v1481 = vadd.f32 %v1317, %v1480
      %1482 = vmatprep.mubr.bf16.mxu0 0
      %1483 = vmatmul.mubr.bf16.gmra.mxu0 %v1306
      %v1484 = vpop.f32.mrf.mxu0
      %v1485 = vadd.f32 %v1313, %v1484
      %v1486 = vpop.f32.mrf.mxu0
      %v1487 = vadd.f32 %v1317, %v1486
      %v1488 = vpop.f32.mrf.mxu0
      %v1489 = vadd.f32 %v1313, %v1488
      %v1490 = vpop.f32.mrf.mxu0
      %v1491 = vadd.f32 %v1317, %v1490
      %1492 = vmatprep.mubr.bf16.mxu0 0
      %1493 = vmatmul.mubr.bf16.gmra.mxu0 %v1307
      %v1494 = vpop.f32.mrf.mxu0
      %v1495 = vadd.f32 %v1313, %v1494
      %v1496 = vpop.f32.mrf.mxu0
      %v1497 = vadd.f32 %v1317, %v1496
      %v1498 = vpop.f32.mrf.mxu0
      %v1499 = vadd.f32 %v1313, %v1498
      %v1500 = vpop.f32.mrf.mxu0
      %v1501 = vadd.f32 %v1317, %v1500
      %1502 = vmatprep.mubr.bf16.mxu0 0
      %1503 = vmatmul.mubr.bf16.gmra.mxu0 %v1308
      %v1504 = vpop.f32.mrf.mxu0
      %v1505 = vadd.f32 %v1313, %v1504
      %v1506 = vpop.f32.mrf.mxu0
      %v1507 = vadd.f32 %v1317, %v1506
      %v1508 = vpop.f32.mrf.mxu0
      %v1509 = vadd.f32 %v1313, %v1508
      %v1510 = vpop.f32.mrf.mxu0
      %v1511 = vadd.f32 %v1317, %v1510
      %1512 = vdwg.mxu0
      %v1513 = vmax.f32 %v1435, 0.0
      %v1514 = vmax.f32 %v1439, 0.0
      %v1515 = vmax.f32 %v1445, 0.0
      %v1516 = vmax.f32 %v1449, 0.0
      %v1517 = vmax.f32 %v1455, 0.0
      %v1518 = vmax.f32 %v1459, 0.0
      %v1519 = vmax.f32 %v1465, 0.0
      %v1520 = vmax.f32 %v1469, 0.0
      %v1521 = vmax.f32 %v1475, 0.0
      %v1522 = vmax.f32 %v1479, 0.0
      %v1523 = vmax.f32 %v1485, 0.0
      %v1524 = vmax.f32 %v1489, 0.0
      %v1525 = vmax.f32 %v1495, 0.0
      %v1526 = vmax.f32 %v1499, 0.0
      %v1527 = vmax.f32 %v1505, 0.0
      %v1528 = vmax.f32 %v1509, 0.0
      %v1529 = vpack.c.bf16 %v1514, %v1513
      %v1530 = vpack.c.bf16 %v1516, %v1515
      %v1531 = vpack.c.bf16 %v1518, %v1517
      %v1532 = vpack.c.bf16 %v1520, %v1519
      %v1533 = vpack.c.bf16 %v1522, %v1521
      %v1534 = vpack.c.bf16 %v1524, %v1523
      %v1535 = vpack.c.bf16 %v1526, %v1525
      %v1536 = vpack.c.bf16 %v1528, %v1527
      %v1538 = vlaneseq
      %v1539 = vshrl.u32 %v1538, 7
      %v1540 = vsub.s32 0, %v1539
      %v1541 = vrot.slane %v1300, %v1540
      %v1559 = vunpack.c.l.b16 %v1284
      %v1560 = vunpack.c.l.b16 %v1285
      %v1561 = vunpack.c.l.b16 %v1286
      %v1562 = vunpack.c.l.b16 %v1287
      %v1563 = vunpack.c.l.b16 %v1288
      %v1564 = vunpack.c.l.b16 %v1289
      %v1565 = vunpack.c.l.b16 %v1290
      %v1566 = vunpack.c.l.b16 %v1291
      %v1567 = vunpack.c.l.b16 %v1292
      %v1568 = vunpack.c.l.b16 %v1293
      %v1569 = vunpack.c.l.b16 %v1294
      %v1570 = vunpack.c.l.b16 %v1295
      %v1571 = vunpack.c.l.b16 %v1296
      %v1572 = vunpack.c.l.b16 %v1297
      %v1573 = vunpack.c.l.b16 %v1298
      %v1574 = vunpack.c.l.b16 %v1299
      %v1575 = vpack.c.b16 %v1560, %v1559
      %v1576 = vpack.c.b16 %v1562, %v1561
      %v1577 = vpack.c.b16 %v1564, %v1563
      %v1578 = vpack.c.b16 %v1566, %v1565
      %v1579 = vpack.c.b16 %v1568, %v1567
      %v1580 = vpack.c.b16 %v1570, %v1569
      %v1581 = vpack.c.b16 %v1572, %v1571
      %v1582 = vpack.c.b16 %v1574, %v1573
      %1591 = vmatprep.subr.bf16.mxu0 0
      %1592 = vmatpush1.bf16.msra.mxu0 %v1582
      %1593 = vmatprep.subr.bf16.mxu0 0
      %1594 = vmatpush1.bf16.msra.mxu0 %v1581
      %1595 = vmatprep.subr.bf16.mxu0 0
      %1596 = vmatpush1.bf16.msra.mxu0 %v1580
      %1597 = vmatprep.subr.bf16.mxu0 0
      %1598 = vmatpush1.bf16.msra.mxu0 %v1579
      %1599 = vmatprep.subr.bf16.mxu0 0
      %1600 = vmatpush1.bf16.msra.mxu0 %v1578
      %1601 = vmatprep.subr.bf16.mxu0 0
      %1602 = vmatpush1.bf16.msra.mxu0 %v1577
      %1603 = vmatprep.subr.bf16.mxu0 0
      %1604 = vmatpush1.bf16.msra.mxu0 %v1576
      %1605 = vmatprep.subr.bf16.mxu0 0
      %1606 = vmatpush1.bf16.msra.mxu0 %v1575
      %1607 = vmatprep.subr.bf16.mxu0 0
      %1608 = vmatpush2.bf16.msra.mxu0 0
      %1609 = vmatprep.subr.bf16.mxu0 0
      %1610 = vmatpush2.bf16.msra.mxu0 0
      %1611 = vmatprep.subr.bf16.mxu0 0
      %1612 = vmatpush2.bf16.msra.mxu0 0
      %1613 = vmatprep.subr.bf16.mxu0 0
      %1614 = vmatpush2.bf16.msra.mxu0 0
      %1615 = vmatprep.subr.bf16.mxu0 0
      %1616 = vmatpush2.bf16.msra.mxu0 0
      %1617 = vmatprep.subr.bf16.mxu0 0
      %1618 = vmatpush2.bf16.msra.mxu0 0
      %1619 = vmatprep.subr.bf16.mxu0 0
      %1620 = vmatpush2.bf16.msra.mxu0 0
      %1621 = vmatprep.subr.bf16.mxu0 0
      %1622 = vmatpush2.bf16.msra.mxu0 0
      %1623 = vmatprep.mubr.bf16.mxu0 0
      %1624 = vmatmul.mubr.bf16.gmra.mxu0 %v1529
      %v1625 = vpop.f32.mrf.mxu0
      %v1626 = vadd.f32 %v1541, %v1625
      %v1627 = vpop.f32.mrf.mxu0
      %v1628 = vpop.f32.mrf.mxu0
      %v1629 = vadd.f32 %v1541, %v1628
      %v1630 = vpop.f32.mrf.mxu0
      %1631 = vmatprep.mubr.bf16.mxu0 0
      %1632 = vmatmul.mubr.bf16.gmra.mxu0 %v1530
      %v1633 = vpop.f32.mrf.mxu0
      %v1634 = vadd.f32 %v1541, %v1633
      %v1635 = vpop.f32.mrf.mxu0
      %v1636 = vpop.f32.mrf.mxu0
      %v1637 = vadd.f32 %v1541, %v1636
      %v1638 = vpop.f32.mrf.mxu0
      %1639 = vmatprep.mubr.bf16.mxu0 0
      %1640 = vmatmul.mubr.bf16.gmra.mxu0 %v1531
      %v1641 = vpop.f32.mrf.mxu0
      %v1642 = vadd.f32 %v1541, %v1641
      %v1643 = vpop.f32.mrf.mxu0
      %v1644 = vpop.f32.mrf.mxu0
      %v1645 = vadd.f32 %v1541, %v1644
      %v1646 = vpop.f32.mrf.mxu0
      %1647 = vmatprep.mubr.bf16.mxu0 0
      %1648 = vmatmul.mubr.bf16.gmra.mxu0 %v1532
      %v1649 = vpop.f32.mrf.mxu0
      %v1650 = vadd.f32 %v1541, %v1649
      %v1651 = vpop.f32.mrf.mxu0
      %v1652 = vpop.f32.mrf.mxu0
      %v1653 = vadd.f32 %v1541, %v1652
      %v1654 = vpop.f32.mrf.mxu0
      %1655 = vmatprep.mubr.bf16.mxu0 0
      %1656 = vmatmul.mubr.bf16.gmra.mxu0 %v1533
      %v1657 = vpop.f32.mrf.mxu0
      %v1658 = vadd.f32 %v1541, %v1657
      %v1659 = vpop.f32.mrf.mxu0
      %v1660 = vpop.f32.mrf.mxu0
      %v1661 = vadd.f32 %v1541, %v1660
      %v1662 = vpop.f32.mrf.mxu0
      %1663 = vmatprep.mubr.bf16.mxu0 0
      %1664 = vmatmul.mubr.bf16.gmra.mxu0 %v1534
      %v1665 = vpop.f32.mrf.mxu0
      %v1666 = vadd.f32 %v1541, %v1665
      %v1667 = vpop.f32.mrf.mxu0
      %v1668 = vpop.f32.mrf.mxu0
      %v1669 = vadd.f32 %v1541, %v1668
      %v1670 = vpop.f32.mrf.mxu0
      %1671 = vmatprep.mubr.bf16.mxu0 0
      %1672 = vmatmul.mubr.bf16.gmra.mxu0 %v1535
      %v1673 = vpop.f32.mrf.mxu0
      %v1674 = vadd.f32 %v1541, %v1673
      %v1675 = vpop.f32.mrf.mxu0
      %v1676 = vpop.f32.mrf.mxu0
      %v1677 = vadd.f32 %v1541, %v1676
      %v1678 = vpop.f32.mrf.mxu0
      %1679 = vmatprep.mubr.bf16.mxu0 0
      %1680 = vmatmul.mubr.bf16.gmra.mxu0 %v1536
      %v1681 = vpop.f32.mrf.mxu0
      %v1682 = vadd.f32 %v1541, %v1681
      %v1683 = vpop.f32.mrf.mxu0
      %v1684 = vpop.f32.mrf.mxu0
      %v1685 = vadd.f32 %v1541, %v1684
      %v1686 = vpop.f32.mrf.mxu0
      %1687 = vdwg.mxu0
      %v1688 = vadd.f32 %v1626, %v1437
      %v1689 = vadd.f32 %v1629, %v1441
      %v1690 = vadd.f32 %v1634, %v1447
      %v1691 = vadd.f32 %v1637, %v1451
      %v1692 = vadd.f32 %v1642, %v1457
      %v1693 = vadd.f32 %v1645, %v1461
      %v1694 = vadd.f32 %v1650, %v1467
      %v1695 = vadd.f32 %v1653, %v1471
      %v1696 = vadd.f32 %v1658, %v1477
      %v1697 = vadd.f32 %v1661, %v1481
      %v1698 = vadd.f32 %v1666, %v1487
      %v1699 = vadd.f32 %v1669, %v1491
      %v1700 = vadd.f32 %v1674, %v1497
      %v1701 = vadd.f32 %v1677, %v1501
      %v1702 = vadd.f32 %v1682, %v1507
      %v1703 = vadd.f32 %v1685, %v1511
      %v1704 = vmax.f32 %v1688, 0.0
      %v1705 = vmax.f32 %v1689, 0.0
      %v1706 = vmax.f32 %v1690, 0.0
      %v1707 = vmax.f32 %v1691, 0.0
      %v1708 = vmax.f32 %v1692, 0.0
      %v1709 = vmax.f32 %v1693, 0.0
      %v1710 = vmax.f32 %v1694, 0.0
      %v1711 = vmax.f32 %v1695, 0.0
      %v1712 = vmax.f32 %v1696, 0.0
      %v1713 = vmax.f32 %v1697, 0.0
      %v1714 = vmax.f32 %v1698, 0.0
      %v1715 = vmax.f32 %v1699, 0.0
      %v1716 = vmax.f32 %v1700, 0.0
      %v1717 = vmax.f32 %v1701, 0.0
      %v1718 = vmax.f32 %v1702, 0.0
      %v1719 = vmax.f32 %v1703, 0.0
      %v1720 = vld [vmem:[%s12] sm:$0xff]
      %v1721 = vld [vmem:[%s12 + $0x8] sm:$0xff]
      %v1722 = vld [vmem:[%s12 + $0x10] sm:$0xff]
      %v1723 = vld [vmem:[%s12 + $0x18] sm:$0xff]
      %v1724 = vld [vmem:[%s12 + $0x20] sm:$0xff]
      %v1725 = vld [vmem:[%s12 + $0x28] sm:$0xff]
      %v1726 = vld [vmem:[%s12 + $0x30] sm:$0xff]
      %v1727 = vld [vmem:[%s12 + $0x38] sm:$0xff]
      %v1728 = vld [vmem:[%s12 + $0x40] sm:$0xff]
      %v1729 = vld [vmem:[%s12 + $0x48] sm:$0xff]
      %v1730 = vld [vmem:[%s12 + $0x50] sm:$0xff]
      %v1731 = vld [vmem:[%s12 + $0x58] sm:$0xff]
      %v1732 = vld [vmem:[%s12 + $0x60] sm:$0xff]
      %v1733 = vld [vmem:[%s12 + $0x68] sm:$0xff]
      %v1734 = vld [vmem:[%s12 + $0x70] sm:$0xff]
      %v1735 = vld [vmem:[%s12 + $0x78] sm:$0xff]
      %v1736 = vld [vmem:[%s12 + $0x80] sm:$0xff]
      %v1737 = vld [vmem:[%s12 + $0x88] sm:$0xff]
      %v1738 = vld [vmem:[%s12 + $0x90] sm:$0xff]
      %v1739 = vld [vmem:[%s12 + $0x98] sm:$0xff]
      %v1740 = vld [vmem:[%s12 + $0xa0] sm:$0xff]
      %v1741 = vld [vmem:[%s12 + $0xa8] sm:$0xff]
      %v1742 = vld [vmem:[%s12 + $0xb0] sm:$0xff]
      %v1743 = vld [vmem:[%s12 + $0xb8] sm:$0xff]
      %v1744 = vld [vmem:[%s12 + $0xc0] sm:$0xff]
      %v1745 = vld [vmem:[%s12 + $0xc8] sm:$0xff]
      %v1746 = vld [vmem:[%s12 + $0xd0] sm:$0xff]
      %v1747 = vld [vmem:[%s12 + $0xd8] sm:$0xff]
      %v1748 = vld [vmem:[%s12 + $0xe0] sm:$0xff]
      %v1749 = vld [vmem:[%s12 + $0xe8] sm:$0xff]
      %v1750 = vld [vmem:[%s12 + $0xf0] sm:$0xff]
      %v1751 = vld [vmem:[%s12 + $0xf8] sm:$0xff]
      %v1752 = vld [vmem:[%s13] sm:$0xf]
      %v1753 = vld [vmem:[%s14] sm:$0xff]
      %v1754 = vld [vmem:[%s14 + $0x8] sm:$0xff]
      %v1755 = vld [vmem:[%s14 + $0x10] sm:$0xff]
      %v1756 = vld [vmem:[%s14 + $0x18] sm:$0xff]
      %v1757 = vld [vmem:[%s14 + $0x20] sm:$0xff]
      %v1758 = vld [vmem:[%s14 + $0x28] sm:$0xff]
      %v1759 = vld [vmem:[%s14 + $0x30] sm:$0xff]
      %v1760 = vld [vmem:[%s14 + $0x38] sm:$0xff]
      %v1761 = vld [vmem:[%s14 + $0x40] sm:$0xff]
      %v1762 = vld [vmem:[%s14 + $0x48] sm:$0xff]
      %v1763 = vld [vmem:[%s14 + $0x50] sm:$0xff]
      %v1764 = vld [vmem:[%s14 + $0x58] sm:$0xff]
      %v1765 = vld [vmem:[%s14 + $0x60] sm:$0xff]
      %v1766 = vld [vmem:[%s14 + $0x68] sm:$0xff]
      %v1767 = vld [vmem:[%s14 + $0x70] sm:$0xff]
      %v1768 = vld [vmem:[%s14 + $0x78] sm:$0xff]
      %v1769 = vld [vmem:[%s14 + $0x80] sm:$0xff]
      %v1770 = vld [vmem:[%s14 + $0x88] sm:$0xff]
      %v1771 = vld [vmem:[%s14 + $0x90] sm:$0xff]
      %v1772 = vld [vmem:[%s14 + $0x98] sm:$0xff]
      %v1773 = vld [vmem:[%s14 + $0xa0] sm:$0xff]
      %v1774 = vld [vmem:[%s14 + $0xa8] sm:$0xff]
      %v1775 = vld [vmem:[%s14 + $0xb0] sm:$0xff]
      %v1776 = vld [vmem:[%s14 + $0xb8] sm:$0xff]
      %v1777 = vld [vmem:[%s14 + $0xc0] sm:$0xff]
      %v1778 = vld [vmem:[%s14 + $0xc8] sm:$0xff]
      %v1779 = vld [vmem:[%s14 + $0xd0] sm:$0xff]
      %v1780 = vld [vmem:[%s14 + $0xd8] sm:$0xff]
      %v1781 = vld [vmem:[%s14 + $0xe0] sm:$0xff]
      %v1782 = vld [vmem:[%s14 + $0xe8] sm:$0xff]
      %v1783 = vld [vmem:[%s14 + $0xf0] sm:$0xff]
      %v1784 = vld [vmem:[%s14 + $0xf8] sm:$0xff]
      %v1785 = vld [vmem:[%s15] sm:$0x3]
      %v1786 = vpack.c.bf16 %v1705, %v1704
      %v1787 = vpack.c.bf16 %v1707, %v1706
      %v1788 = vpack.c.bf16 %v1709, %v1708
      %v1789 = vpack.c.bf16 %v1711, %v1710
      %v1790 = vpack.c.bf16 %v1713, %v1712
      %v1791 = vpack.c.bf16 %v1715, %v1714
      %v1792 = vpack.c.bf16 %v1717, %v1716
      %v1793 = vpack.c.bf16 %v1719, %v1718
      %v1795 = vlaneseq
      %v1796 = vshrl.u32 %v1795, 7
      %v1797 = vsub.s32 0, %v1796
      %v1798 = vrot.slane %v1752, %v1797
      %v1799 = vlaneseq
      %v1800 = vshrl.u32 %v1799, 7
      %v1801 = vsub.s32 1, %v1800
      %v1802 = vrot.slane %v1752, %v1801
      %v1803 = vlaneseq
      %v1804 = vshrl.u32 %v1803, 7
      %v1805 = vsub.s32 2, %v1804
      %v1806 = vrot.slane %v1752, %v1805
      %v1807 = vlaneseq
      %v1808 = vshrl.u32 %v1807, 7
      %v1809 = vsub.s32 3, %v1808
      %v1810 = vrot.slane %v1752, %v1809
      %v1847 = vunpack.c.l.b16 %v1720
      %v1848 = vunpack.c.h.b16 %v1720
      %v1849 = vunpack.c.l.b16 %v1721
      %v1850 = vunpack.c.h.b16 %v1721
      %v1851 = vunpack.c.l.b16 %v1722
      %v1852 = vunpack.c.h.b16 %v1722
      %v1853 = vunpack.c.l.b16 %v1723
      %v1854 = vunpack.c.h.b16 %v1723
      %v1855 = vunpack.c.l.b16 %v1724
      %v1856 = vunpack.c.h.b16 %v1724
      %v1857 = vunpack.c.l.b16 %v1725
      %v1858 = vunpack.c.h.b16 %v1725
      %v1859 = vunpack.c.l.b16 %v1726
      %v1860 = vunpack.c.h.b16 %v1726
      %v1861 = vunpack.c.l.b16 %v1727
      %v1862 = vunpack.c.h.b16 %v1727
      %v1863 = vunpack.c.l.b16 %v1728
      %v1864 = vunpack.c.h.b16 %v1728
      %v1865 = vunpack.c.l.b16 %v1729
      %v1866 = vunpack.c.h.b16 %v1729
      %v1867 = vunpack.c.l.b16 %v1730
      %v1868 = vunpack.c.h.b16 %v1730
      %v1869 = vunpack.c.l.b16 %v1731
      %v1870 = vunpack.c.h.b16 %v1731
      %v1871 = vunpack.c.l.b16 %v1732
      %v1872 = vunpack.c.h.b16 %v1732
      %v1873 = vunpack.c.l.b16 %v1733
      %v1874 = vunpack.c.h.b16 %v1733
      %v1875 = vunpack.c.l.b16 %v1734
      %v1876 = vunpack.c.h.b16 %v1734
      %v1877 = vunpack.c.l.b16 %v1735
      %v1878 = vunpack.c.h.b16 %v1735
      %v1879 = vunpack.c.l.b16 %v1736
      %v1880 = vunpack.c.h.b16 %v1736
      %v1881 = vunpack.c.l.b16 %v1737
      %v1882 = vunpack.c.h.b16 %v1737
      %v1883 = vunpack.c.l.b16 %v1738
      %v1884 = vunpack.c.h.b16 %v1738
      %v1885 = vunpack.c.l.b16 %v1739
      %v1886 = vunpack.c.h.b16 %v1739
      %v1887 = vunpack.c.l.b16 %v1740
      %v1888 = vunpack.c.h.b16 %v1740
      %v1889 = vunpack.c.l.b16 %v1741
      %v1890 = vunpack.c.h.b16 %v1741
      %v1891 = vunpack.c.l.b16 %v1742
      %v1892 = vunpack.c.h.b16 %v1742
      %v1893 = vunpack.c.l.b16 %v1743
      %v1894 = vunpack.c.h.b16 %v1743
      %v1895 = vunpack.c.l.b16 %v1744
      %v1896 = vunpack.c.h.b16 %v1744
      %v1897 = vunpack.c.l.b16 %v1745
      %v1898 = vunpack.c.h.b16 %v1745
      %v1899 = vunpack.c.l.b16 %v1746
      %v1900 = vunpack.c.h.b16 %v1746
      %v1901 = vunpack.c.l.b16 %v1747
      %v1902 = vunpack.c.h.b16 %v1747
      %v1903 = vunpack.c.l.b16 %v1748
      %v1904 = vunpack.c.h.b16 %v1748
      %v1905 = vunpack.c.l.b16 %v1749
      %v1906 = vunpack.c.h.b16 %v1749
      %v1907 = vunpack.c.l.b16 %v1750
      %v1908 = vunpack.c.h.b16 %v1750
      %v1909 = vunpack.c.l.b16 %v1751
      %v1910 = vunpack.c.h.b16 %v1751
      %v1911 = vpack.c.b16 %v1851, %v1847
      %v1912 = vpack.c.b16 %v1852, %v1848
      %v1913 = vpack.c.b16 %v1853, %v1849
      %v1914 = vpack.c.b16 %v1854, %v1850
      %v1915 = vpack.c.b16 %v1859, %v1855
      %v1916 = vpack.c.b16 %v1860, %v1856
      %v1917 = vpack.c.b16 %v1861, %v1857
      %v1918 = vpack.c.b16 %v1862, %v1858
      %v1919 = vpack.c.b16 %v1867, %v1863
      %v1920 = vpack.c.b16 %v1868, %v1864
      %v1921 = vpack.c.b16 %v1869, %v1865
      %v1922 = vpack.c.b16 %v1870, %v1866
      %v1923 = vpack.c.b16 %v1875, %v1871
      %v1924 = vpack.c.b16 %v1876, %v1872
      %v1925 = vpack.c.b16 %v1877, %v1873
      %v1926 = vpack.c.b16 %v1878, %v1874
      %v1927 = vpack.c.b16 %v1883, %v1879
      %v1928 = vpack.c.b16 %v1884, %v1880
      %v1929 = vpack.c.b16 %v1885, %v1881
      %v1930 = vpack.c.b16 %v1886, %v1882
      %v1931 = vpack.c.b16 %v1891, %v1887
      %v1932 = vpack.c.b16 %v1892, %v1888
      %v1933 = vpack.c.b16 %v1893, %v1889
      %v1934 = vpack.c.b16 %v1894, %v1890
      %v1935 = vpack.c.b16 %v1899, %v1895
      %v1936 = vpack.c.b16 %v1900, %v1896
      %v1937 = vpack.c.b16 %v1901, %v1897
      %v1938 = vpack.c.b16 %v1902, %v1898
      %v1939 = vpack.c.b16 %v1907, %v1903
      %v1940 = vpack.c.b16 %v1908, %v1904
      %v1941 = vpack.c.b16 %v1909, %v1905
      %v1942 = vpack.c.b16 %v1910, %v1906
      %1975 = vmatprep.subr.bf16.mxu0 %v1940
      %1976 = vmatpush1.bf16.msra.mxu0 %v1939
      %1977 = vmatprep.subr.bf16.mxu0 %v1936
      %1978 = vmatpush1.bf16.msra.mxu0 %v1935
      %1979 = vmatprep.subr.bf16.mxu0 %v1932
      %1980 = vmatpush1.bf16.msra.mxu0 %v1931
      %1981 = vmatprep.subr.bf16.mxu0 %v1928
      %1982 = vmatpush1.bf16.msra.mxu0 %v1927
      %1983 = vmatprep.subr.bf16.mxu0 %v1924
      %1984 = vmatpush1.bf16.msra.mxu0 %v1923
      %1985 = vmatprep.subr.bf16.mxu0 %v1920
      %1986 = vmatpush1.bf16.msra.mxu0 %v1919
      %1987 = vmatprep.subr.bf16.mxu0 %v1916
      %1988 = vmatpush1.bf16.msra.mxu0 %v1915
      %1989 = vmatprep.subr.bf16.mxu0 %v1912
      %1990 = vmatpush1.bf16.msra.mxu0 %v1911
      %1991 = vmatprep.subr.bf16.mxu0 0
      %1992 = vmatpush2.bf16.msra.mxu0 0
      %1993 = vmatprep.subr.bf16.mxu0 0
      %1994 = vmatpush2.bf16.msra.mxu0 0
      %1995 = vmatprep.subr.bf16.mxu0 0
      %1996 = vmatpush2.bf16.msra.mxu0 0
      %1997 = vmatprep.subr.bf16.mxu0 0
      %1998 = vmatpush2.bf16.msra.mxu0 0
      %1999 = vmatprep.subr.bf16.mxu0 0
      %2000 = vmatpush2.bf16.msra.mxu0 0
      %2001 = vmatprep.subr.bf16.mxu0 0
      %2002 = vmatpush2.bf16.msra.mxu0 0
      %2003 = vmatprep.subr.bf16.mxu0 0
      %2004 = vmatpush2.bf16.msra.mxu0 0
      %2005 = vmatprep.subr.bf16.mxu0 0
      %2006 = vmatpush2.bf16.msra.mxu0 0
      %2007 = vmatprep.mubr.bf16.mxu0 0
      %2008 = vmatmul.mubr.bf16.gmra.mxu0 %v1786
      %v2009 = vpop.f32.mrf.mxu0
      %v2010 = vadd.f32 %v1798, %v2009
      %v2011 = vpop.f32.mrf.mxu0
      %v2012 = vadd.f32 %v1802, %v2011
      %v2013 = vpop.f32.mrf.mxu0
      %v2014 = vadd.f32 %v1798, %v2013
      %v2015 = vpop.f32.mrf.mxu0
      %v2016 = vadd.f32 %v1802, %v2015
      %2017 = vmatprep.mubr.bf16.mxu0 0
      %2018 = vmatmul.mubr.bf16.gmra.mxu0 %v1787
      %v2019 = vpop.f32.mrf.mxu0
      %v2020 = vadd.f32 %v1798, %v2019
      %v2021 = vpop.f32.mrf.mxu0
      %v2022 = vadd.f32 %v1802, %v2021
      %v2023 = vpop.f32.mrf.mxu0
      %v2024 = vadd.f32 %v1798, %v2023
      %v2025 = vpop.f32.mrf.mxu0
      %v2026 = vadd.f32 %v1802, %v2025
      %2027 = vmatprep.mubr.bf16.mxu0 0
      %2028 = vmatmul.mubr.bf16.gmra.mxu0 %v1788
      %v2029 = vpop.f32.mrf.mxu0
      %v2030 = vadd.f32 %v1798, %v2029
      %v2031 = vpop.f32.mrf.mxu0
      %v2032 = vadd.f32 %v1802, %v2031
      %v2033 = vpop.f32.mrf.mxu0
      %v2034 = vadd.f32 %v1798, %v2033
      %v2035 = vpop.f32.mrf.mxu0
      %v2036 = vadd.f32 %v1802, %v2035
      %2037 = vmatprep.mubr.bf16.mxu0 0
      %2038 = vmatmul.mubr.bf16.gmra.mxu0 %v1789
      %v2039 = vpop.f32.mrf.mxu0
      %v2040 = vadd.f32 %v1798, %v2039
      %v2041 = vpop.f32.mrf.mxu0
      %v2042 = vadd.f32 %v1802, %v2041
      %v2043 = vpop.f32.mrf.mxu0
      %v2044 = vadd.f32 %v1798, %v2043
      %v2045 = vpop.f32.mrf.mxu0
      %v2046 = vadd.f32 %v1802, %v2045
      %2047 = vmatprep.mubr.bf16.mxu0 0
      %2048 = vmatmul.mubr.bf16.gmra.mxu0 %v1790
      %v2049 = vpop.f32.mrf.mxu0
      %v2050 = vadd.f32 %v1798, %v2049
      %v2051 = vpop.f32.mrf.mxu0
      %v2052 = vadd.f32 %v1802, %v2051
      %v2053 = vpop.f32.mrf.mxu0
      %v2054 = vadd.f32 %v1798, %v2053
      %v2055 = vpop.f32.mrf.mxu0
      %v2056 = vadd.f32 %v1802, %v2055
      %2057 = vmatprep.mubr.bf16.mxu0 0
      %2058 = vmatmul.mubr.bf16.gmra.mxu0 %v1791
      %v2059 = vpop.f32.mrf.mxu0
      %v2060 = vadd.f32 %v1798, %v2059
      %v2061 = vpop.f32.mrf.mxu0
      %v2062 = vadd.f32 %v1802, %v2061
      %v2063 = vpop.f32.mrf.mxu0
      %v2064 = vadd.f32 %v1798, %v2063
      %v2065 = vpop.f32.mrf.mxu0
      %v2066 = vadd.f32 %v1802, %v2065
      %2067 = vmatprep.mubr.bf16.mxu0 0
      %2068 = vmatmul.mubr.bf16.gmra.mxu0 %v1792
      %v2069 = vpop.f32.mrf.mxu0
      %v2070 = vadd.f32 %v1798, %v2069
      %v2071 = vpop.f32.mrf.mxu0
      %v2072 = vadd.f32 %v1802, %v2071
      %v2073 = vpop.f32.mrf.mxu0
      %v2074 = vadd.f32 %v1798, %v2073
      %v2075 = vpop.f32.mrf.mxu0
      %v2076 = vadd.f32 %v1802, %v2075
      %2077 = vmatprep.mubr.bf16.mxu0 0
      %2078 = vmatmul.mubr.bf16.gmra.mxu0 %v1793
      %v2079 = vpop.f32.mrf.mxu0
      %v2080 = vadd.f32 %v1798, %v2079
      %v2081 = vpop.f32.mrf.mxu0
      %v2082 = vadd.f32 %v1802, %v2081
      %v2083 = vpop.f32.mrf.mxu0
      %v2084 = vadd.f32 %v1798, %v2083
      %v2085 = vpop.f32.mrf.mxu0
      %v2086 = vadd.f32 %v1802, %v2085
      %2087 = vdwg.mxu0
      %2088 = vmatprep.subr.bf16.mxu0 %v1942
      %2089 = vmatpush1.bf16.msra.mxu0 %v1941
      %2090 = vmatprep.subr.bf16.mxu0 %v1938
      %2091 = vmatpush1.bf16.msra.mxu0 %v1937
      %2092 = vmatprep.subr.bf16.mxu0 %v1934
      %2093 = vmatpush1.bf16.msra.mxu0 %v1933
      %2094 = vmatprep.subr.bf16.mxu0 %v1930
      %2095 = vmatpush1.bf16.msra.mxu0 %v1929
      %2096 = vmatprep.subr.bf16.mxu0 %v1926
      %2097 = vmatpush1.bf16.msra.mxu0 %v1925
      %2098 = vmatprep.subr.bf16.mxu0 %v1922
      %2099 = vmatpush1.bf16.msra.mxu0 %v1921
      %2100 = vmatprep.subr.bf16.mxu0 %v1918
      %2101 = vmatpush1.bf16.msra.mxu0 %v1917
      %2102 = vmatprep.subr.bf16.mxu0 %v1914
      %2103 = vmatpush1.bf16.msra.mxu0 %v1913
      %2104 = vmatprep.subr.bf16.mxu0 0
      %2105 = vmatpush2.bf16.msra.mxu0 0
      %2106 = vmatprep.subr.bf16.mxu0 0
      %2107 = vmatpush2.bf16.msra.mxu0 0
      %2108 = vmatprep.subr.bf16.mxu0 0
      %2109 = vmatpush2.bf16.msra.mxu0 0
      %2110 = vmatprep.subr.bf16.mxu0 0
      %2111 = vmatpush2.bf16.msra.mxu0 0
      %2112 = vmatprep.subr.bf16.mxu0 0
      %2113 = vmatpush2.bf16.msra.mxu0 0
      %2114 = vmatprep.subr.bf16.mxu0 0
      %2115 = vmatpush2.bf16.msra.mxu0 0
      %2116 = vmatprep.subr.bf16.mxu0 0
      %2117 = vmatpush2.bf16.msra.mxu0 0
      %2118 = vmatprep.subr.bf16.mxu0 0
      %2119 = vmatpush2.bf16.msra.mxu0 0
      %2120 = vmatprep.mubr.bf16.mxu0 0
      %2121 = vmatmul.mubr.bf16.gmra.mxu0 %v1786
      %v2122 = vpop.f32.mrf.mxu0
      %v2123 = vadd.f32 %v1806, %v2122
      %v2124 = vpop.f32.mrf.mxu0
      %v2125 = vadd.f32 %v1810, %v2124
      %v2126 = vpop.f32.mrf.mxu0
      %v2127 = vadd.f32 %v1806, %v2126
      %v2128 = vpop.f32.mrf.mxu0
      %v2129 = vadd.f32 %v1810, %v2128
      %2130 = vmatprep.mubr.bf16.mxu0 0
      %2131 = vmatmul.mubr.bf16.gmra.mxu0 %v1787
      %v2132 = vpop.f32.mrf.mxu0
      %v2133 = vadd.f32 %v1806, %v2132
      %v2134 = vpop.f32.mrf.mxu0
      %v2135 = vadd.f32 %v1810, %v2134
      %v2136 = vpop.f32.mrf.mxu0
      %v2137 = vadd.f32 %v1806, %v2136
      %v2138 = vpop.f32.mrf.mxu0
      %v2139 = vadd.f32 %v1810, %v2138
      %2140 = vmatprep.mubr.bf16.mxu0 0
      %2141 = vmatmul.mubr.bf16.gmra.mxu0 %v1788
      %v2142 = vpop.f32.mrf.mxu0
      %v2143 = vadd.f32 %v1806, %v2142
      %v2144 = vpop.f32.mrf.mxu0
      %v2145 = vadd.f32 %v1810, %v2144
      %v2146 = vpop.f32.mrf.mxu0
      %v2147 = vadd.f32 %v1806, %v2146
      %v2148 = vpop.f32.mrf.mxu0
      %v2149 = vadd.f32 %v1810, %v2148
      %2150 = vmatprep.mubr.bf16.mxu0 0
      %2151 = vmatmul.mubr.bf16.gmra.mxu0 %v1789
      %v2152 = vpop.f32.mrf.mxu0
      %v2153 = vadd.f32 %v1806, %v2152
      %v2154 = vpop.f32.mrf.mxu0
      %v2155 = vadd.f32 %v1810, %v2154
      %v2156 = vpop.f32.mrf.mxu0
      %v2157 = vadd.f32 %v1806, %v2156
      %v2158 = vpop.f32.mrf.mxu0
      %v2159 = vadd.f32 %v1810, %v2158
      %2160 = vmatprep.mubr.bf16.mxu0 0
      %2161 = vmatmul.mubr.bf16.gmra.mxu0 %v1790
      %v2162 = vpop.f32.mrf.mxu0
      %v2163 = vadd.f32 %v1806, %v2162
      %v2164 = vpop.f32.mrf.mxu0
      %v2165 = vadd.f32 %v1810, %v2164
      %v2166 = vpop.f32.mrf.mxu0
      %v2167 = vadd.f32 %v1806, %v2166
      %v2168 = vpop.f32.mrf.mxu0
      %v2169 = vadd.f32 %v1810, %v2168
      %2170 = vmatprep.mubr.bf16.mxu0 0
      %2171 = vmatmul.mubr.bf16.gmra.mxu0 %v1791
      %v2172 = vpop.f32.mrf.mxu0
      %v2173 = vadd.f32 %v1806, %v2172
      %v2174 = vpop.f32.mrf.mxu0
      %v2175 = vadd.f32 %v1810, %v2174
      %v2176 = vpop.f32.mrf.mxu0
      %v2177 = vadd.f32 %v1806, %v2176
      %v2178 = vpop.f32.mrf.mxu0
      %v2179 = vadd.f32 %v1810, %v2178
      %2180 = vmatprep.mubr.bf16.mxu0 0
      %2181 = vmatmul.mubr.bf16.gmra.mxu0 %v1792
      %v2182 = vpop.f32.mrf.mxu0
      %v2183 = vadd.f32 %v1806, %v2182
      %v2184 = vpop.f32.mrf.mxu0
      %v2185 = vadd.f32 %v1810, %v2184
      %v2186 = vpop.f32.mrf.mxu0
      %v2187 = vadd.f32 %v1806, %v2186
      %v2188 = vpop.f32.mrf.mxu0
      %v2189 = vadd.f32 %v1810, %v2188
      %2190 = vmatprep.mubr.bf16.mxu0 0
      %2191 = vmatmul.mubr.bf16.gmra.mxu0 %v1793
      %v2192 = vpop.f32.mrf.mxu0
      %v2193 = vadd.f32 %v1806, %v2192
      %v2194 = vpop.f32.mrf.mxu0
      %v2195 = vadd.f32 %v1810, %v2194
      %v2196 = vpop.f32.mrf.mxu0
      %v2197 = vadd.f32 %v1806, %v2196
      %v2198 = vpop.f32.mrf.mxu0
      %v2199 = vadd.f32 %v1810, %v2198
      %2200 = vdwg.mxu0
      %v2201 = vmax.f32 %v2010, 0.0
      %v2202 = vmax.f32 %v2012, 0.0
      %v2203 = vmax.f32 %v2014, 0.0
      %v2204 = vmax.f32 %v2016, 0.0
      %v2205 = vmax.f32 %v2020, 0.0
      %v2206 = vmax.f32 %v2022, 0.0
      %v2207 = vmax.f32 %v2024, 0.0
      %v2208 = vmax.f32 %v2026, 0.0
      %v2209 = vmax.f32 %v2030, 0.0
      %v2210 = vmax.f32 %v2032, 0.0
      %v2211 = vmax.f32 %v2034, 0.0
      %v2212 = vmax.f32 %v2036, 0.0
      %v2213 = vmax.f32 %v2040, 0.0
      %v2214 = vmax.f32 %v2042, 0.0
      %v2215 = vmax.f32 %v2044, 0.0
      %v2216 = vmax.f32 %v2046, 0.0
      %v2217 = vmax.f32 %v2050, 0.0
      %v2218 = vmax.f32 %v2052, 0.0
      %v2219 = vmax.f32 %v2054, 0.0
      %v2220 = vmax.f32 %v2056, 0.0
      %v2221 = vmax.f32 %v2060, 0.0
      %v2222 = vmax.f32 %v2062, 0.0
      %v2223 = vmax.f32 %v2064, 0.0
      %v2224 = vmax.f32 %v2066, 0.0
      %v2225 = vmax.f32 %v2070, 0.0
      %v2226 = vmax.f32 %v2072, 0.0
      %v2227 = vmax.f32 %v2074, 0.0
      %v2228 = vmax.f32 %v2076, 0.0
      %v2229 = vmax.f32 %v2080, 0.0
      %v2230 = vmax.f32 %v2082, 0.0
      %v2231 = vmax.f32 %v2084, 0.0
      %v2232 = vmax.f32 %v2086, 0.0
      %v2233 = vpack.c.bf16 %v2203, %v2201
      %v2234 = vpack.c.bf16 %v2204, %v2202
      %v2235 = vpack.c.bf16 %v2207, %v2205
      %v2236 = vpack.c.bf16 %v2208, %v2206
      %v2237 = vpack.c.bf16 %v2211, %v2209
      %v2238 = vpack.c.bf16 %v2212, %v2210
      %v2239 = vpack.c.bf16 %v2215, %v2213
      %v2240 = vpack.c.bf16 %v2216, %v2214
      %v2241 = vpack.c.bf16 %v2219, %v2217
      %v2242 = vpack.c.bf16 %v2220, %v2218
      %v2243 = vpack.c.bf16 %v2223, %v2221
      %v2244 = vpack.c.bf16 %v2224, %v2222
      %v2245 = vpack.c.bf16 %v2227, %v2225
      %v2246 = vpack.c.bf16 %v2228, %v2226
      %v2247 = vpack.c.bf16 %v2231, %v2229
      %v2248 = vpack.c.bf16 %v2232, %v2230
      %v2250 = vlaneseq
      %v2251 = vshrl.u32 %v2250, 7
      %v2252 = vsub.s32 0, %v2251
      %v2253 = vrot.slane %v1785, %v2252
      %v2254 = vlaneseq
      %v2255 = vshrl.u32 %v2254, 7
      %v2256 = vsub.s32 1, %v2255
      %v2257 = vrot.slane %v1785, %v2256
      %v2292 = vunpack.c.l.b16 %v1753
      %v2293 = vunpack.c.h.b16 %v1753
      %v2294 = vunpack.c.l.b16 %v1754
      %v2295 = vunpack.c.h.b16 %v1754
      %v2296 = vunpack.c.l.b16 %v1755
      %v2297 = vunpack.c.h.b16 %v1755
      %v2298 = vunpack.c.l.b16 %v1756
      %v2299 = vunpack.c.h.b16 %v1756
      %v2300 = vunpack.c.l.b16 %v1757
      %v2301 = vunpack.c.h.b16 %v1757
      %v2302 = vunpack.c.l.b16 %v1758
      %v2303 = vunpack.c.h.b16 %v1758
      %v2304 = vunpack.c.l.b16 %v1759
      %v2305 = vunpack.c.h.b16 %v1759
      %v2306 = vunpack.c.l.b16 %v1760
      %v2307 = vunpack.c.h.b16 %v1760
      %v2308 = vunpack.c.l.b16 %v1761
      %v2309 = vunpack.c.h.b16 %v1761
      %v2310 = vunpack.c.l.b16 %v1762
      %v2311 = vunpack.c.h.b16 %v1762
      %v2312 = vunpack.c.l.b16 %v1763
      %v2313 = vunpack.c.h.b16 %v1763
      %v2314 = vunpack.c.l.b16 %v1764
      %v2315 = vunpack.c.h.b16 %v1764
      %v2316 = vunpack.c.l.b16 %v1765
      %v2317 = vunpack.c.h.b16 %v1765
      %v2318 = vunpack.c.l.b16 %v1766
      %v2319 = vunpack.c.h.b16 %v1766
      %v2320 = vunpack.c.l.b16 %v1767
      %v2321 = vunpack.c.h.b16 %v1767
      %v2322 = vunpack.c.l.b16 %v1768
      %v2323 = vunpack.c.h.b16 %v1768
      %v2324 = vunpack.c.l.b16 %v1769
      %v2325 = vunpack.c.h.b16 %v1769
      %v2326 = vunpack.c.l.b16 %v1770
      %v2327 = vunpack.c.h.b16 %v1770
      %v2328 = vunpack.c.l.b16 %v1771
      %v2329 = vunpack.c.h.b16 %v1771
      %v2330 = vunpack.c.l.b16 %v1772
      %v2331 = vunpack.c.h.b16 %v1772
      %v2332 = vunpack.c.l.b16 %v1773
      %v2333 = vunpack.c.h.b16 %v1773
      %v2334 = vunpack.c.l.b16 %v1774
      %v2335 = vunpack.c.h.b16 %v1774
      %v2336 = vunpack.c.l.b16 %v1775
      %v2337 = vunpack.c.h.b16 %v1775
      %v2338 = vunpack.c.l.b16 %v1776
      %v2339 = vunpack.c.h.b16 %v1776
      %v2340 = vunpack.c.l.b16 %v1777
      %v2341 = vunpack.c.h.b16 %v1777
      %v2342 = vunpack.c.l.b16 %v1778
      %v2343 = vunpack.c.h.b16 %v1778
      %v2344 = vunpack.c.l.b16 %v1779
      %v2345 = vunpack.c.h.b16 %v1779
      %v2346 = vunpack.c.l.b16 %v1780
      %v2347 = vunpack.c.h.b16 %v1780
      %v2348 = vunpack.c.l.b16 %v1781
      %v2349 = vunpack.c.h.b16 %v1781
      %v2350 = vunpack.c.l.b16 %v1782
      %v2351 = vunpack.c.h.b16 %v1782
      %v2352 = vunpack.c.l.b16 %v1783
      %v2353 = vunpack.c.h.b16 %v1783
      %v2354 = vunpack.c.l.b16 %v1784
      %v2355 = vunpack.c.h.b16 %v1784
      %v2356 = vpack.c.b16 %v2294, %v2292
      %v2357 = vpack.c.b16 %v2295, %v2293
      %v2358 = vpack.c.b16 %v2298, %v2296
      %v2359 = vpack.c.b16 %v2299, %v2297
      %v2360 = vpack.c.b16 %v2302, %v2300
      %v2361 = vpack.c.b16 %v2303, %v2301
      %v2362 = vpack.c.b16 %v2306, %v2304
      %v2363 = vpack.c.b16 %v2307, %v2305
      %v2364 = vpack.c.b16 %v2310, %v2308
      %v2365 = vpack.c.b16 %v2311, %v2309
      %v2366 = vpack.c.b16 %v2314, %v2312
      %v2367 = vpack.c.b16 %v2315, %v2313
      %v2368 = vpack.c.b16 %v2318, %v2316
      %v2369 = vpack.c.b16 %v2319, %v2317
      %v2370 = vpack.c.b16 %v2322, %v2320
      %v2371 = vpack.c.b16 %v2323, %v2321
      %v2372 = vpack.c.b16 %v2326, %v2324
      %v2373 = vpack.c.b16 %v2327, %v2325
      %v2374 = vpack.c.b16 %v2330, %v2328
      %v2375 = vpack.c.b16 %v2331, %v2329
      %v2376 = vpack.c.b16 %v2334, %v2332
      %v2377 = vpack.c.b16 %v2335, %v2333
      %v2378 = vpack.c.b16 %v2338, %v2336
      %v2379 = vpack.c.b16 %v2339, %v2337
      %v2380 = vpack.c.b16 %v2342, %v2340
      %v2381 = vpack.c.b16 %v2343, %v2341
      %v2382 = vpack.c.b16 %v2346, %v2344
      %v2383 = vpack.c.b16 %v2347, %v2345
      %v2384 = vpack.c.b16 %v2350, %v2348
      %v2385 = vpack.c.b16 %v2351, %v2349
      %v2386 = vpack.c.b16 %v2354, %v2352
      %v2387 = vpack.c.b16 %v2355, %v2353
      %2420 = vmatprep.subr.bf16.mxu0 %v2371
      %2421 = vmatpush1.bf16.msra.mxu0 %v2370
      %2422 = vmatprep.subr.bf16.mxu0 %v2369
      %2423 = vmatpush1.bf16.msra.mxu0 %v2368
      %2424 = vmatprep.subr.bf16.mxu0 %v2367
      %2425 = vmatpush1.bf16.msra.mxu0 %v2366
      %2426 = vmatprep.subr.bf16.mxu0 %v2365
      %2427 = vmatpush1.bf16.msra.mxu0 %v2364
      %2428 = vmatprep.subr.bf16.mxu0 %v2363
      %2429 = vmatpush1.bf16.msra.mxu0 %v2362
      %2430 = vmatprep.subr.bf16.mxu0 %v2361
      %2431 = vmatpush1.bf16.msra.mxu0 %v2360
      %2432 = vmatprep.subr.bf16.mxu0 %v2359
      %2433 = vmatpush1.bf16.msra.mxu0 %v2358
      %2434 = vmatprep.subr.bf16.mxu0 %v2357
      %2435 = vmatpush1.bf16.msra.mxu0 %v2356
      %2436 = vmatprep.subr.bf16.mxu0 %v2387
      %2437 = vmatpush2.bf16.msra.mxu0 %v2386
      %2438 = vmatprep.subr.bf16.mxu0 %v2385
      %2439 = vmatpush2.bf16.msra.mxu0 %v2384
      %2440 = vmatprep.subr.bf16.mxu0 %v2383
      %2441 = vmatpush2.bf16.msra.mxu0 %v2382
      %2442 = vmatprep.subr.bf16.mxu0 %v2381
      %2443 = vmatpush2.bf16.msra.mxu0 %v2380
      %2444 = vmatprep.subr.bf16.mxu0 %v2379
      %2445 = vmatpush2.bf16.msra.mxu0 %v2378
      %2446 = vmatprep.subr.bf16.mxu0 %v2377
      %2447 = vmatpush2.bf16.msra.mxu0 %v2376
      %2448 = vmatprep.subr.bf16.mxu0 %v2375
      %2449 = vmatpush2.bf16.msra.mxu0 %v2374
      %2450 = vmatprep.subr.bf16.mxu0 %v2373
      %2451 = vmatpush2.bf16.msra.mxu0 %v2372
      %2452 = vmatprep.mubr.bf16.mxu0 %v2234
      %2453 = vmatmul.mubr.bf16.gmra.mxu0 %v2233
      %v2454 = vpop.f32.mrf.mxu0
      %v2455 = vadd.f32 %v2253, %v2454
      %v2456 = vpop.f32.mrf.mxu0
      %v2457 = vadd.f32 %v2257, %v2456
      %v2458 = vpop.f32.mrf.mxu0
      %v2459 = vadd.f32 %v2253, %v2458
      %v2460 = vpop.f32.mrf.mxu0
      %v2461 = vadd.f32 %v2257, %v2460
      %2462 = vmatprep.mubr.bf16.mxu0 %v2236
      %2463 = vmatmul.mubr.bf16.gmra.mxu0 %v2235
      %v2464 = vpop.f32.mrf.mxu0
      %v2465 = vadd.f32 %v2253, %v2464
      %v2466 = vpop.f32.mrf.mxu0
      %v2467 = vadd.f32 %v2257, %v2466
      %v2468 = vpop.f32.mrf.mxu0
      %v2469 = vadd.f32 %v2253, %v2468
      %v2470 = vpop.f32.mrf.mxu0
      %v2471 = vadd.f32 %v2257, %v2470
      %2472 = vmatprep.mubr.bf16.mxu0 %v2238
      %2473 = vmatmul.mubr.bf16.gmra.mxu0 %v2237
      %v2474 = vpop.f32.mrf.mxu0
      %v2475 = vadd.f32 %v2253, %v2474
      %v2476 = vpop.f32.mrf.mxu0
      %v2477 = vadd.f32 %v2257, %v2476
      %v2478 = vpop.f32.mrf.mxu0
      %v2479 = vadd.f32 %v2253, %v2478
      %v2480 = vpop.f32.mrf.mxu0
      %v2481 = vadd.f32 %v2257, %v2480
      %2482 = vmatprep.mubr.bf16.mxu0 %v2240
      %2483 = vmatmul.mubr.bf16.gmra.mxu0 %v2239
      %v2484 = vpop.f32.mrf.mxu0
      %v2485 = vadd.f32 %v2253, %v2484
      %v2486 = vpop.f32.mrf.mxu0
      %v2487 = vadd.f32 %v2257, %v2486
      %v2488 = vpop.f32.mrf.mxu0
      %v2489 = vadd.f32 %v2253, %v2488
      %v2490 = vpop.f32.mrf.mxu0
      %v2491 = vadd.f32 %v2257, %v2490
      %2492 = vmatprep.mubr.bf16.mxu0 %v2242
      %2493 = vmatmul.mubr.bf16.gmra.mxu0 %v2241
      %v2494 = vpop.f32.mrf.mxu0
      %v2495 = vadd.f32 %v2253, %v2494
      %v2496 = vpop.f32.mrf.mxu0
      %v2497 = vadd.f32 %v2257, %v2496
      %v2498 = vpop.f32.mrf.mxu0
      %v2499 = vadd.f32 %v2253, %v2498
      %v2500 = vpop.f32.mrf.mxu0
      %v2501 = vadd.f32 %v2257, %v2500
      %2502 = vmatprep.mubr.bf16.mxu0 %v2244
      %2503 = vmatmul.mubr.bf16.gmra.mxu0 %v2243
      %v2504 = vpop.f32.mrf.mxu0
      %v2505 = vadd.f32 %v2253, %v2504
      %v2506 = vpop.f32.mrf.mxu0
      %v2507 = vadd.f32 %v2257, %v2506
      %v2508 = vpop.f32.mrf.mxu0
      %v2509 = vadd.f32 %v2253, %v2508
      %v2510 = vpop.f32.mrf.mxu0
      %v2511 = vadd.f32 %v2257, %v2510
      %2512 = vmatprep.mubr.bf16.mxu0 %v2246
      %2513 = vmatmul.mubr.bf16.gmra.mxu0 %v2245
      %v2514 = vpop.f32.mrf.mxu0
      %v2515 = vadd.f32 %v2253, %v2514
      %v2516 = vpop.f32.mrf.mxu0
      %v2517 = vadd.f32 %v2257, %v2516
      %v2518 = vpop.f32.mrf.mxu0
      %v2519 = vadd.f32 %v2253, %v2518
      %v2520 = vpop.f32.mrf.mxu0
      %v2521 = vadd.f32 %v2257, %v2520
      %2522 = vmatprep.mubr.bf16.mxu0 %v2248
      %2523 = vmatmul.mubr.bf16.gmra.mxu0 %v2247
      %v2524 = vpop.f32.mrf.mxu0
      %v2525 = vadd.f32 %v2253, %v2524
      %v2526 = vpop.f32.mrf.mxu0
      %v2527 = vadd.f32 %v2257, %v2526
      %v2528 = vpop.f32.mrf.mxu0
      %v2529 = vadd.f32 %v2253, %v2528
      %v2530 = vpop.f32.mrf.mxu0
      %v2531 = vadd.f32 %v2257, %v2530
      %2532 = vdwg.mxu0
      %v2533 = vadd.f32 %v2455, %v2123
      %v2534 = vadd.f32 %v2457, %v2125
      %v2535 = vadd.f32 %v2459, %v2127
      %v2536 = vadd.f32 %v2461, %v2129
      %v2537 = vadd.f32 %v2465, %v2133
      %v2538 = vadd.f32 %v2467, %v2135
      %v2539 = vadd.f32 %v2469, %v2137
      %v2540 = vadd.f32 %v2471, %v2139
      %v2541 = vadd.f32 %v2475, %v2143
      %v2542 = vadd.f32 %v2477, %v2145
      %v2543 = vadd.f32 %v2479, %v2147
      %v2544 = vadd.f32 %v2481, %v2149
      %v2545 = vadd.f32 %v2485, %v2153
      %v2546 = vadd.f32 %v2487, %v2155
      %v2547 = vadd.f32 %v2489, %v2157
      %v2548 = vadd.f32 %v2491, %v2159
      %v2549 = vadd.f32 %v2495, %v2163
      %v2550 = vadd.f32 %v2497, %v2165
      %v2551 = vadd.f32 %v2499, %v2167
      %v2552 = vadd.f32 %v2501, %v2169
      %v2553 = vadd.f32 %v2505, %v2173
      %v2554 = vadd.f32 %v2507, %v2175
      %v2555 = vadd.f32 %v2509, %v2177
      %v2556 = vadd.f32 %v2511, %v2179
      %v2557 = vadd.f32 %v2515, %v2183
      %v2558 = vadd.f32 %v2517, %v2185
      %v2559 = vadd.f32 %v2519, %v2187
      %v2560 = vadd.f32 %v2521, %v2189
      %v2561 = vadd.f32 %v2525, %v2193
      %v2562 = vadd.f32 %v2527, %v2195
      %v2563 = vadd.f32 %v2529, %v2197
      %v2564 = vadd.f32 %v2531, %v2199
      %v2565 = vmax.f32 %v2533, 0.0
      %v2566 = vmax.f32 %v2534, 0.0
      %v2567 = vmax.f32 %v2535, 0.0
      %v2568 = vmax.f32 %v2536, 0.0
      %v2569 = vmax.f32 %v2537, 0.0
      %v2570 = vmax.f32 %v2538, 0.0
      %v2571 = vmax.f32 %v2539, 0.0
      %v2572 = vmax.f32 %v2540, 0.0
      %v2573 = vmax.f32 %v2541, 0.0
      %v2574 = vmax.f32 %v2542, 0.0
      %v2575 = vmax.f32 %v2543, 0.0
      %v2576 = vmax.f32 %v2544, 0.0
      %v2577 = vmax.f32 %v2545, 0.0
      %v2578 = vmax.f32 %v2546, 0.0
      %v2579 = vmax.f32 %v2547, 0.0
      %v2580 = vmax.f32 %v2548, 0.0
      %v2581 = vmax.f32 %v2549, 0.0
      %v2582 = vmax.f32 %v2550, 0.0
      %v2583 = vmax.f32 %v2551, 0.0
      %v2584 = vmax.f32 %v2552, 0.0
      %v2585 = vmax.f32 %v2553, 0.0
      %v2586 = vmax.f32 %v2554, 0.0
      %v2587 = vmax.f32 %v2555, 0.0
      %v2588 = vmax.f32 %v2556, 0.0
      %v2589 = vmax.f32 %v2557, 0.0
      %v2590 = vmax.f32 %v2558, 0.0
      %v2591 = vmax.f32 %v2559, 0.0
      %v2592 = vmax.f32 %v2560, 0.0
      %v2593 = vmax.f32 %v2561, 0.0
      %v2594 = vmax.f32 %v2562, 0.0
      %v2595 = vmax.f32 %v2563, 0.0
      %v2596 = vmax.f32 %v2564, 0.0
      %v2597 = vld [vmem:[%s16] sm:$0xff]
      %v2598 = vld [vmem:[%s16 + $0x8] sm:$0xff]
      %v2599 = vld [vmem:[%s16 + $0x10] sm:$0xff]
      %v2600 = vld [vmem:[%s16 + $0x18] sm:$0xff]
      %v2601 = vld [vmem:[%s16 + $0x20] sm:$0xff]
      %v2602 = vld [vmem:[%s16 + $0x28] sm:$0xff]
      %v2603 = vld [vmem:[%s16 + $0x30] sm:$0xff]
      %v2604 = vld [vmem:[%s16 + $0x38] sm:$0xff]
      %v2605 = vld [vmem:[%s16 + $0x40] sm:$0xff]
      %v2606 = vld [vmem:[%s16 + $0x48] sm:$0xff]
      %v2607 = vld [vmem:[%s16 + $0x50] sm:$0xff]
      %v2608 = vld [vmem:[%s16 + $0x58] sm:$0xff]
      %v2609 = vld [vmem:[%s16 + $0x60] sm:$0xff]
      %v2610 = vld [vmem:[%s16 + $0x68] sm:$0xff]
      %v2611 = vld [vmem:[%s16 + $0x70] sm:$0xff]
      %v2612 = vld [vmem:[%s16 + $0x78] sm:$0xff]
      %v2613 = vld [vmem:[%s16 + $0x80] sm:$0xff]
      %v2614 = vld [vmem:[%s16 + $0x88] sm:$0xff]
      %v2615 = vld [vmem:[%s16 + $0x90] sm:$0xff]
      %v2616 = vld [vmem:[%s16 + $0x98] sm:$0xff]
      %v2617 = vld [vmem:[%s16 + $0xa0] sm:$0xff]
      %v2618 = vld [vmem:[%s16 + $0xa8] sm:$0xff]
      %v2619 = vld [vmem:[%s16 + $0xb0] sm:$0xff]
      %v2620 = vld [vmem:[%s16 + $0xb8] sm:$0xff]
      %v2621 = vld [vmem:[%s16 + $0xc0] sm:$0xff]
      %v2622 = vld [vmem:[%s16 + $0xc8] sm:$0xff]
      %v2623 = vld [vmem:[%s16 + $0xd0] sm:$0xff]
      %v2624 = vld [vmem:[%s16 + $0xd8] sm:$0xff]
      %v2625 = vld [vmem:[%s16 + $0xe0] sm:$0xff]
      %v2626 = vld [vmem:[%s16 + $0xe8] sm:$0xff]
      %v2627 = vld [vmem:[%s16 + $0xf0] sm:$0xff]
      %v2628 = vld [vmem:[%s16 + $0xf8] sm:$0xff]
      %v2629 = vld [vmem:[%s16 + $0x100] sm:$0xff]
      %v2630 = vld [vmem:[%s16 + $0x108] sm:$0xff]
      %v2631 = vld [vmem:[%s16 + $0x110] sm:$0xff]
      %v2632 = vld [vmem:[%s16 + $0x118] sm:$0xff]
      %v2633 = vld [vmem:[%s16 + $0x120] sm:$0xff]
      %v2634 = vld [vmem:[%s16 + $0x128] sm:$0xff]
      %v2635 = vld [vmem:[%s16 + $0x130] sm:$0xff]
      %v2636 = vld [vmem:[%s16 + $0x138] sm:$0xff]
      %v2637 = vld [vmem:[%s16 + $0x140] sm:$0xff]
      %v2638 = vld [vmem:[%s16 + $0x148] sm:$0xff]
      %v2639 = vld [vmem:[%s16 + $0x150] sm:$0xff]
      %v2640 = vld [vmem:[%s16 + $0x158] sm:$0xff]
      %v2641 = vld [vmem:[%s16 + $0x160] sm:$0xff]
      %v2642 = vld [vmem:[%s16 + $0x168] sm:$0xff]
      %v2643 = vld [vmem:[%s16 + $0x170] sm:$0xff]
      %v2644 = vld [vmem:[%s16 + $0x178] sm:$0xff]
      %v2645 = vld [vmem:[%s16 + $0x180] sm:$0xff]
      %v2646 = vld [vmem:[%s16 + $0x188] sm:$0xff]
      %v2647 = vld [vmem:[%s16 + $0x190] sm:$0xff]
      %v2648 = vld [vmem:[%s16 + $0x198] sm:$0xff]
      %v2649 = vld [vmem:[%s16 + $0x1a0] sm:$0xff]
      %v2650 = vld [vmem:[%s16 + $0x1a8] sm:$0xff]
      %v2651 = vld [vmem:[%s16 + $0x1b0] sm:$0xff]
      %v2652 = vld [vmem:[%s16 + $0x1b8] sm:$0xff]
      %v2653 = vld [vmem:[%s16 + $0x1c0] sm:$0xff]
      %v2654 = vld [vmem:[%s16 + $0x1c8] sm:$0xff]
      %v2655 = vld [vmem:[%s16 + $0x1d0] sm:$0xff]
      %v2656 = vld [vmem:[%s16 + $0x1d8] sm:$0xff]
      %v2657 = vld [vmem:[%s16 + $0x1e0] sm:$0xff]
      %v2658 = vld [vmem:[%s16 + $0x1e8] sm:$0xff]
      %v2659 = vld [vmem:[%s16 + $0x1f0] sm:$0xff]
      %v2660 = vld [vmem:[%s16 + $0x1f8] sm:$0xff]
      %v2661 = vld [vmem:[%s16 + $0x200] sm:$0xff]
      %v2662 = vld [vmem:[%s16 + $0x208] sm:$0xff]
      %v2663 = vld [vmem:[%s16 + $0x210] sm:$0xff]
      %v2664 = vld [vmem:[%s16 + $0x218] sm:$0xff]
      %v2665 = vld [vmem:[%s16 + $0x220] sm:$0xff]
      %v2666 = vld [vmem:[%s16 + $0x228] sm:$0xff]
      %v2667 = vld [vmem:[%s16 + $0x230] sm:$0xff]
      %v2668 = vld [vmem:[%s16 + $0x238] sm:$0xff]
      %v2669 = vld [vmem:[%s16 + $0x240] sm:$0xff]
      %v2670 = vld [vmem:[%s16 + $0x248] sm:$0xff]
      %v2671 = vld [vmem:[%s16 + $0x250] sm:$0xff]
      %v2672 = vld [vmem:[%s16 + $0x258] sm:$0xff]
      %v2673 = vld [vmem:[%s16 + $0x260] sm:$0xff]
      %v2674 = vld [vmem:[%s16 + $0x268] sm:$0xff]
      %v2675 = vld [vmem:[%s16 + $0x270] sm:$0xff]
      %v2676 = vld [vmem:[%s16 + $0x278] sm:$0xff]
      %v2677 = vld [vmem:[%s16 + $0x280] sm:$0xff]
      %v2678 = vld [vmem:[%s16 + $0x288] sm:$0xff]
      %v2679 = vld [vmem:[%s16 + $0x290] sm:$0xff]
      %v2680 = vld [vmem:[%s16 + $0x298] sm:$0xff]
      %v2681 = vld [vmem:[%s16 + $0x2a0] sm:$0xff]
      %v2682 = vld [vmem:[%s16 + $0x2a8] sm:$0xff]
      %v2683 = vld [vmem:[%s16 + $0x2b0] sm:$0xff]
      %v2684 = vld [vmem:[%s16 + $0x2b8] sm:$0xff]
      %v2685 = vld [vmem:[%s16 + $0x2c0] sm:$0xff]
      %v2686 = vld [vmem:[%s16 + $0x2c8] sm:$0xff]
      %v2687 = vld [vmem:[%s16 + $0x2d0] sm:$0xff]
      %v2688 = vld [vmem:[%s16 + $0x2d8] sm:$0xff]
      %v2689 = vld [vmem:[%s16 + $0x2e0] sm:$0xff]
      %v2690 = vld [vmem:[%s16 + $0x2e8] sm:$0xff]
      %v2691 = vld [vmem:[%s16 + $0x2f0] sm:$0xff]
      %v2692 = vld [vmem:[%s16 + $0x2f8] sm:$0xff]
      %v2693 = vld [vmem:[%s16 + $0x300] sm:$0xff]
      %v2694 = vld [vmem:[%s16 + $0x308] sm:$0xff]
      %v2695 = vld [vmem:[%s16 + $0x310] sm:$0xff]
      %v2696 = vld [vmem:[%s16 + $0x318] sm:$0xff]
      %v2697 = vld [vmem:[%s16 + $0x320] sm:$0xff]
      %v2698 = vld [vmem:[%s16 + $0x328] sm:$0xff]
      %v2699 = vld [vmem:[%s16 + $0x330] sm:$0xff]
      %v2700 = vld [vmem:[%s16 + $0x338] sm:$0xff]
      %v2701 = vld [vmem:[%s16 + $0x340] sm:$0xff]
      %v2702 = vld [vmem:[%s16 + $0x348] sm:$0xff]
      %v2703 = vld [vmem:[%s16 + $0x350] sm:$0xff]
      %v2704 = vld [vmem:[%s16 + $0x358] sm:$0xff]
      %v2705 = vld [vmem:[%s16 + $0x360] sm:$0xff]
      %v2706 = vld [vmem:[%s16 + $0x368] sm:$0xff]
      %v2707 = vld [vmem:[%s16 + $0x370] sm:$0xff]
      %v2708 = vld [vmem:[%s16 + $0x378] sm:$0xff]
      %v2709 = vld [vmem:[%s16 + $0x380] sm:$0xff]
      %v2710 = vld [vmem:[%s16 + $0x388] sm:$0xff]
      %v2711 = vld [vmem:[%s16 + $0x390] sm:$0xff]
      %v2712 = vld [vmem:[%s16 + $0x398] sm:$0xff]
      %v2713 = vld [vmem:[%s16 + $0x3a0] sm:$0xff]
      %v2714 = vld [vmem:[%s16 + $0x3a8] sm:$0xff]
      %v2715 = vld [vmem:[%s16 + $0x3b0] sm:$0xff]
      %v2716 = vld [vmem:[%s16 + $0x3b8] sm:$0xff]
      %v2717 = vld [vmem:[%s16 + $0x3c0] sm:$0xff]
      %v2718 = vld [vmem:[%s16 + $0x3c8] sm:$0xff]
      %v2719 = vld [vmem:[%s16 + $0x3d0] sm:$0xff]
      %v2720 = vld [vmem:[%s16 + $0x3d8] sm:$0xff]
      %v2721 = vld [vmem:[%s16 + $0x3e0] sm:$0xff]
      %v2722 = vld [vmem:[%s16 + $0x3e8] sm:$0xff]
      %v2723 = vld [vmem:[%s16 + $0x3f0] sm:$0xff]
      %v2724 = vld [vmem:[%s16 + $0x3f8] sm:$0xff]
      %v2725 = vld [vmem:[%s17] sm:$0xff]
      %v2726 = vld [vmem:[%s18] sm:$0xff]
      %v2727 = vld [vmem:[%s18 + $0x8] sm:$0xff]
      %v2728 = vld [vmem:[%s18 + $0x10] sm:$0xff]
      %v2729 = vld [vmem:[%s18 + $0x18] sm:$0xff]
      %v2730 = vld [vmem:[%s18 + $0x20] sm:$0xff]
      %v2731 = vld [vmem:[%s18 + $0x28] sm:$0xff]
      %v2732 = vld [vmem:[%s18 + $0x30] sm:$0xff]
      %v2733 = vld [vmem:[%s18 + $0x38] sm:$0xff]
      %v2734 = vld [vmem:[%s18 + $0x40] sm:$0xff]
      %v2735 = vld [vmem:[%s18 + $0x48] sm:$0xff]
      %v2736 = vld [vmem:[%s18 + $0x50] sm:$0xff]
      %v2737 = vld [vmem:[%s18 + $0x58] sm:$0xff]
      %v2738 = vld [vmem:[%s18 + $0x60] sm:$0xff]
      %v2739 = vld [vmem:[%s18 + $0x68] sm:$0xff]
      %v2740 = vld [vmem:[%s18 + $0x70] sm:$0xff]
      %v2741 = vld [vmem:[%s18 + $0x78] sm:$0xff]
      %v2742 = vld [vmem:[%s18 + $0x80] sm:$0xff]
      %v2743 = vld [vmem:[%s18 + $0x88] sm:$0xff]
      %v2744 = vld [vmem:[%s18 + $0x90] sm:$0xff]
      %v2745 = vld [vmem:[%s18 + $0x98] sm:$0xff]
      %v2746 = vld [vmem:[%s18 + $0xa0] sm:$0xff]
      %v2747 = vld [vmem:[%s18 + $0xa8] sm:$0xff]
      %v2748 = vld [vmem:[%s18 + $0xb0] sm:$0xff]
      %v2749 = vld [vmem:[%s18 + $0xb8] sm:$0xff]
      %v2750 = vld [vmem:[%s18 + $0xc0] sm:$0xff]
      %v2751 = vld [vmem:[%s18 + $0xc8] sm:$0xff]
      %v2752 = vld [vmem:[%s18 + $0xd0] sm:$0xff]
      %v2753 = vld [vmem:[%s18 + $0xd8] sm:$0xff]
      %v2754 = vld [vmem:[%s18 + $0xe0] sm:$0xff]
      %v2755 = vld [vmem:[%s18 + $0xe8] sm:$0xff]
      %v2756 = vld [vmem:[%s18 + $0xf0] sm:$0xff]
      %v2757 = vld [vmem:[%s18 + $0xf8] sm:$0xff]
      %v2758 = vld [vmem:[%s18 + $0x100] sm:$0xff]
      %v2759 = vld [vmem:[%s18 + $0x108] sm:$0xff]
      %v2760 = vld [vmem:[%s18 + $0x110] sm:$0xff]
      %v2761 = vld [vmem:[%s18 + $0x118] sm:$0xff]
      %v2762 = vld [vmem:[%s18 + $0x120] sm:$0xff]
      %v2763 = vld [vmem:[%s18 + $0x128] sm:$0xff]
      %v2764 = vld [vmem:[%s18 + $0x130] sm:$0xff]
      %v2765 = vld [vmem:[%s18 + $0x138] sm:$0xff]
      %v2766 = vld [vmem:[%s18 + $0x140] sm:$0xff]
      %v2767 = vld [vmem:[%s18 + $0x148] sm:$0xff]
      %v2768 = vld [vmem:[%s18 + $0x150] sm:$0xff]
      %v2769 = vld [vmem:[%s18 + $0x158] sm:$0xff]
      %v2770 = vld [vmem:[%s18 + $0x160] sm:$0xff]
      %v2771 = vld [vmem:[%s18 + $0x168] sm:$0xff]
      %v2772 = vld [vmem:[%s18 + $0x170] sm:$0xff]
      %v2773 = vld [vmem:[%s18 + $0x178] sm:$0xff]
      %v2774 = vld [vmem:[%s18 + $0x180] sm:$0xff]
      %v2775 = vld [vmem:[%s18 + $0x188] sm:$0xff]
      %v2776 = vld [vmem:[%s18 + $0x190] sm:$0xff]
      %v2777 = vld [vmem:[%s18 + $0x198] sm:$0xff]
      %v2778 = vld [vmem:[%s18 + $0x1a0] sm:$0xff]
      %v2779 = vld [vmem:[%s18 + $0x1a8] sm:$0xff]
      %v2780 = vld [vmem:[%s18 + $0x1b0] sm:$0xff]
      %v2781 = vld [vmem:[%s18 + $0x1b8] sm:$0xff]
      %v2782 = vld [vmem:[%s18 + $0x1c0] sm:$0xff]
      %v2783 = vld [vmem:[%s18 + $0x1c8] sm:$0xff]
      %v2784 = vld [vmem:[%s18 + $0x1d0] sm:$0xff]
      %v2785 = vld [vmem:[%s18 + $0x1d8] sm:$0xff]
      %v2786 = vld [vmem:[%s18 + $0x1e0] sm:$0xff]
      %v2787 = vld [vmem:[%s18 + $0x1e8] sm:$0xff]
      %v2788 = vld [vmem:[%s18 + $0x1f0] sm:$0xff]
      %v2789 = vld [vmem:[%s18 + $0x1f8] sm:$0xff]
      %v2790 = vld [vmem:[%s18 + $0x200] sm:$0xff]
      %v2791 = vld [vmem:[%s18 + $0x208] sm:$0xff]
      %v2792 = vld [vmem:[%s18 + $0x210] sm:$0xff]
      %v2793 = vld [vmem:[%s18 + $0x218] sm:$0xff]
      %v2794 = vld [vmem:[%s18 + $0x220] sm:$0xff]
      %v2795 = vld [vmem:[%s18 + $0x228] sm:$0xff]
      %v2796 = vld [vmem:[%s18 + $0x230] sm:$0xff]
      %v2797 = vld [vmem:[%s18 + $0x238] sm:$0xff]
      %v2798 = vld [vmem:[%s18 + $0x240] sm:$0xff]
      %v2799 = vld [vmem:[%s18 + $0x248] sm:$0xff]
      %v2800 = vld [vmem:[%s18 + $0x250] sm:$0xff]
      %v2801 = vld [vmem:[%s18 + $0x258] sm:$0xff]
      %v2802 = vld [vmem:[%s18 + $0x260] sm:$0xff]
      %v2803 = vld [vmem:[%s18 + $0x268] sm:$0xff]
      %v2804 = vld [vmem:[%s18 + $0x270] sm:$0xff]
      %v2805 = vld [vmem:[%s18 + $0x278] sm:$0xff]
      %v2806 = vld [vmem:[%s18 + $0x280] sm:$0xff]
      %v2807 = vld [vmem:[%s18 + $0x288] sm:$0xff]
      %v2808 = vld [vmem:[%s18 + $0x290] sm:$0xff]
      %v2809 = vld [vmem:[%s18 + $0x298] sm:$0xff]
      %v2810 = vld [vmem:[%s18 + $0x2a0] sm:$0xff]
      %v2811 = vld [vmem:[%s18 + $0x2a8] sm:$0xff]
      %v2812 = vld [vmem:[%s18 + $0x2b0] sm:$0xff]
      %v2813 = vld [vmem:[%s18 + $0x2b8] sm:$0xff]
      %v2814 = vld [vmem:[%s18 + $0x2c0] sm:$0xff]
      %v2815 = vld [vmem:[%s18 + $0x2c8] sm:$0xff]
      %v2816 = vld [vmem:[%s18 + $0x2d0] sm:$0xff]
      %v2817 = vld [vmem:[%s18 + $0x2d8] sm:$0xff]
      %v2818 = vld [vmem:[%s18 + $0x2e0] sm:$0xff]
      %v2819 = vld [vmem:[%s18 + $0x2e8] sm:$0xff]
      %v2820 = vld [vmem:[%s18 + $0x2f0] sm:$0xff]
      %v2821 = vld [vmem:[%s18 + $0x2f8] sm:$0xff]
      %v2822 = vld [vmem:[%s18 + $0x300] sm:$0xff]
      %v2823 = vld [vmem:[%s18 + $0x308] sm:$0xff]
      %v2824 = vld [vmem:[%s18 + $0x310] sm:$0xff]
      %v2825 = vld [vmem:[%s18 + $0x318] sm:$0xff]
      %v2826 = vld [vmem:[%s18 + $0x320] sm:$0xff]
      %v2827 = vld [vmem:[%s18 + $0x328] sm:$0xff]
      %v2828 = vld [vmem:[%s18 + $0x330] sm:$0xff]
      %v2829 = vld [vmem:[%s18 + $0x338] sm:$0xff]
      %v2830 = vld [vmem:[%s18 + $0x340] sm:$0xff]
      %v2831 = vld [vmem:[%s18 + $0x348] sm:$0xff]
      %v2832 = vld [vmem:[%s18 + $0x350] sm:$0xff]
      %v2833 = vld [vmem:[%s18 + $0x358] sm:$0xff]
      %v2834 = vld [vmem:[%s18 + $0x360] sm:$0xff]
      %v2835 = vld [vmem:[%s18 + $0x368] sm:$0xff]
      %v2836 = vld [vmem:[%s18 + $0x370] sm:$0xff]
      %v2837 = vld [vmem:[%s18 + $0x378] sm:$0xff]
      %v2838 = vld [vmem:[%s18 + $0x380] sm:$0xff]
      %v2839 = vld [vmem:[%s18 + $0x388] sm:$0xff]
      %v2840 = vld [vmem:[%s18 + $0x390] sm:$0xff]
      %v2841 = vld [vmem:[%s18 + $0x398] sm:$0xff]
      %v2842 = vld [vmem:[%s18 + $0x3a0] sm:$0xff]
      %v2843 = vld [vmem:[%s18 + $0x3a8] sm:$0xff]
      %v2844 = vld [vmem:[%s18 + $0x3b0] sm:$0xff]
      %v2845 = vld [vmem:[%s18 + $0x3b8] sm:$0xff]
      %v2846 = vld [vmem:[%s18 + $0x3c0] sm:$0xff]
      %v2847 = vld [vmem:[%s18 + $0x3c8] sm:$0xff]
      %v2848 = vld [vmem:[%s18 + $0x3d0] sm:$0xff]
      %v2849 = vld [vmem:[%s18 + $0x3d8] sm:$0xff]
      %v2850 = vld [vmem:[%s18 + $0x3e0] sm:$0xff]
      %v2851 = vld [vmem:[%s18 + $0x3e8] sm:$0xff]
      %v2852 = vld [vmem:[%s18 + $0x3f0] sm:$0xff]
      %v2853 = vld [vmem:[%s18 + $0x3f8] sm:$0xff]
      %v2854 = vld [vmem:[%s19] sm:$0xf]
      %v2855 = vpack.c.bf16 %v2567, %v2565
      %v2856 = vpack.c.bf16 %v2568, %v2566
      %v2857 = vpack.c.bf16 %v2571, %v2569
      %v2858 = vpack.c.bf16 %v2572, %v2570
      %v2859 = vpack.c.bf16 %v2575, %v2573
      %v2860 = vpack.c.bf16 %v2576, %v2574
      %v2861 = vpack.c.bf16 %v2579, %v2577
      %v2862 = vpack.c.bf16 %v2580, %v2578
      %v2863 = vpack.c.bf16 %v2583, %v2581
      %v2864 = vpack.c.bf16 %v2584, %v2582
      %v2865 = vpack.c.bf16 %v2587, %v2585
      %v2866 = vpack.c.bf16 %v2588, %v2586
      %v2867 = vpack.c.bf16 %v2591, %v2589
      %v2868 = vpack.c.bf16 %v2592, %v2590
      %v2869 = vpack.c.bf16 %v2595, %v2593
      %v2870 = vpack.c.bf16 %v2596, %v2594
      %v2872 = vlaneseq
      %v2873 = vshrl.u32 %v2872, 7
      %v2874 = vsub.s32 0, %v2873
      %v2875 = vrot.slane %v2725, %v2874
      %v2876 = vlaneseq
      %v2877 = vshrl.u32 %v2876, 7
      %v2878 = vsub.s32 1, %v2877
      %v2879 = vrot.slane %v2725, %v2878
      %v2880 = vlaneseq
      %v2881 = vshrl.u32 %v2880, 7
      %v2882 = vsub.s32 2, %v2881
      %v2883 = vrot.slane %v2725, %v2882
      %v2884 = vlaneseq
      %v2885 = vshrl.u32 %v2884, 7
      %v2886 = vsub.s32 3, %v2885
      %v2887 = vrot.slane %v2725, %v2886
      %v2888 = vlaneseq
      %v2889 = vshrl.u32 %v2888, 7
      %v2890 = vsub.s32 4, %v2889
      %v2891 = vrot.slane %v2725, %v2890
      %v2892 = vlaneseq
      %v2893 = vshrl.u32 %v2892, 7
      %v2894 = vsub.s32 5, %v2893
      %v2895 = vrot.slane %v2725, %v2894
      %v2896 = vlaneseq
      %v2897 = vshrl.u32 %v2896, 7
      %v2898 = vsub.s32 6, %v2897
      %v2899 = vrot.slane %v2725, %v2898
      %v2900 = vlaneseq
      %v2901 = vshrl.u32 %v2900, 7
      %v2902 = vsub.s32 7, %v2901
      %v2903 = vrot.slane %v2725, %v2902
      %v3040 = vunpack.c.l.b16 %v2597
      %v3041 = vunpack.c.h.b16 %v2597
      %v3042 = vunpack.c.l.b16 %v2598
      %v3043 = vunpack.c.h.b16 %v2598
      %v3044 = vunpack.c.l.b16 %v2599
      %v3045 = vunpack.c.h.b16 %v2599
      %v3046 = vunpack.c.l.b16 %v2600
      %v3047 = vunpack.c.h.b16 %v2600
      %v3048 = vunpack.c.l.b16 %v2601
      %v3049 = vunpack.c.h.b16 %v2601
      %v3050 = vunpack.c.l.b16 %v2602
      %v3051 = vunpack.c.h.b16 %v2602
      %v3052 = vunpack.c.l.b16 %v2603
      %v3053 = vunpack.c.h.b16 %v2603
      %v3054 = vunpack.c.l.b16 %v2604
      %v3055 = vunpack.c.h.b16 %v2604
      %v3056 = vunpack.c.l.b16 %v2605
      %v3057 = vunpack.c.h.b16 %v2605
      %v3058 = vunpack.c.l.b16 %v2606
      %v3059 = vunpack.c.h.b16 %v2606
      %v3060 = vunpack.c.l.b16 %v2607
      %v3061 = vunpack.c.h.b16 %v2607
      %v3062 = vunpack.c.l.b16 %v2608
      %v3063 = vunpack.c.h.b16 %v2608
      %v3064 = vunpack.c.l.b16 %v2609
      %v3065 = vunpack.c.h.b16 %v2609
      %v3066 = vunpack.c.l.b16 %v2610
      %v3067 = vunpack.c.h.b16 %v2610
      %v3068 = vunpack.c.l.b16 %v2611
      %v3069 = vunpack.c.h.b16 %v2611
      %v3070 = vunpack.c.l.b16 %v2612
      %v3071 = vunpack.c.h.b16 %v2612
      %v3072 = vunpack.c.l.b16 %v2613
      %v3073 = vunpack.c.h.b16 %v2613
      %v3074 = vunpack.c.l.b16 %v2614
      %v3075 = vunpack.c.h.b16 %v2614
      %v3076 = vunpack.c.l.b16 %v2615
      %v3077 = vunpack.c.h.b16 %v2615
      %v3078 = vunpack.c.l.b16 %v2616
      %v3079 = vunpack.c.h.b16 %v2616
      %v3080 = vunpack.c.l.b16 %v2617
      %v3081 = vunpack.c.h.b16 %v2617
      %v3082 = vunpack.c.l.b16 %v2618
      %v3083 = vunpack.c.h.b16 %v2618
      %v3084 = vunpack.c.l.b16 %v2619
      %v3085 = vunpack.c.h.b16 %v2619
      %v3086 = vunpack.c.l.b16 %v2620
      %v3087 = vunpack.c.h.b16 %v2620
      %v3088 = vunpack.c.l.b16 %v2621
      %v3089 = vunpack.c.h.b16 %v2621
      %v3090 = vunpack.c.l.b16 %v2622
      %v3091 = vunpack.c.h.b16 %v2622
      %v3092 = vunpack.c.l.b16 %v2623
      %v3093 = vunpack.c.h.b16 %v2623
      %v3094 = vunpack.c.l.b16 %v2624
      %v3095 = vunpack.c.h.b16 %v2624
      %v3096 = vunpack.c.l.b16 %v2625
      %v3097 = vunpack.c.h.b16 %v2625
      %v3098 = vunpack.c.l.b16 %v2626
      %v3099 = vunpack.c.h.b16 %v2626
      %v3100 = vunpack.c.l.b16 %v2627
      %v3101 = vunpack.c.h.b16 %v2627
      %v3102 = vunpack.c.l.b16 %v2628
      %v3103 = vunpack.c.h.b16 %v2628
      %v3104 = vunpack.c.l.b16 %v2629
      %v3105 = vunpack.c.h.b16 %v2629
      %v3106 = vunpack.c.l.b16 %v2630
      %v3107 = vunpack.c.h.b16 %v2630
      %v3108 = vunpack.c.l.b16 %v2631
      %v3109 = vunpack.c.h.b16 %v2631
      %v3110 = vunpack.c.l.b16 %v2632
      %v3111 = vunpack.c.h.b16 %v2632
      %v3112 = vunpack.c.l.b16 %v2633
      %v3113 = vunpack.c.h.b16 %v2633
      %v3114 = vunpack.c.l.b16 %v2634
      %v3115 = vunpack.c.h.b16 %v2634
      %v3116 = vunpack.c.l.b16 %v2635
      %v3117 = vunpack.c.h.b16 %v2635
      %v3118 = vunpack.c.l.b16 %v2636
      %v3119 = vunpack.c.h.b16 %v2636
      %v3120 = vunpack.c.l.b16 %v2637
      %v3121 = vunpack.c.h.b16 %v2637
      %v3122 = vunpack.c.l.b16 %v2638
      %v3123 = vunpack.c.h.b16 %v2638
      %v3124 = vunpack.c.l.b16 %v2639
      %v3125 = vunpack.c.h.b16 %v2639
      %v3126 = vunpack.c.l.b16 %v2640
      %v3127 = vunpack.c.h.b16 %v2640
      %v3128 = vunpack.c.l.b16 %v2641
      %v3129 = vunpack.c.h.b16 %v2641
      %v3130 = vunpack.c.l.b16 %v2642
      %v3131 = vunpack.c.h.b16 %v2642
      %v3132 = vunpack.c.l.b16 %v2643
      %v3133 = vunpack.c.h.b16 %v2643
      %v3134 = vunpack.c.l.b16 %v2644
      %v3135 = vunpack.c.h.b16 %v2644
      %v3136 = vunpack.c.l.b16 %v2645
      %v3137 = vunpack.c.h.b16 %v2645
      %v3138 = vunpack.c.l.b16 %v2646
      %v3139 = vunpack.c.h.b16 %v2646
      %v3140 = vunpack.c.l.b16 %v2647
      %v3141 = vunpack.c.h.b16 %v2647
      %v3142 = vunpack.c.l.b16 %v2648
      %v3143 = vunpack.c.h.b16 %v2648
      %v3144 = vunpack.c.l.b16 %v2649
      %v3145 = vunpack.c.h.b16 %v2649
      %v3146 = vunpack.c.l.b16 %v2650
      %v3147 = vunpack.c.h.b16 %v2650
      %v3148 = vunpack.c.l.b16 %v2651
      %v3149 = vunpack.c.h.b16 %v2651
      %v3150 = vunpack.c.l.b16 %v2652
      %v3151 = vunpack.c.h.b16 %v2652
      %v3152 = vunpack.c.l.b16 %v2653
      %v3153 = vunpack.c.h.b16 %v2653
      %v3154 = vunpack.c.l.b16 %v2654
      %v3155 = vunpack.c.h.b16 %v2654
      %v3156 = vunpack.c.l.b16 %v2655
      %v3157 = vunpack.c.h.b16 %v2655
      %v3158 = vunpack.c.l.b16 %v2656
      %v3159 = vunpack.c.h.b16 %v2656
      %v3160 = vunpack.c.l.b16 %v2657
      %v3161 = vunpack.c.h.b16 %v2657
      %v3162 = vunpack.c.l.b16 %v2658
      %v3163 = vunpack.c.h.b16 %v2658
      %v3164 = vunpack.c.l.b16 %v2659
      %v3165 = vunpack.c.h.b16 %v2659
      %v3166 = vunpack.c.l.b16 %v2660
      %v3167 = vunpack.c.h.b16 %v2660
      %v3168 = vunpack.c.l.b16 %v2661
      %v3169 = vunpack.c.h.b16 %v2661
      %v3170 = vunpack.c.l.b16 %v2662
      %v3171 = vunpack.c.h.b16 %v2662
      %v3172 = vunpack.c.l.b16 %v2663
      %v3173 = vunpack.c.h.b16 %v2663
      %v3174 = vunpack.c.l.b16 %v2664
      %v3175 = vunpack.c.h.b16 %v2664
      %v3176 = vunpack.c.l.b16 %v2665
      %v3177 = vunpack.c.h.b16 %v2665
      %v3178 = vunpack.c.l.b16 %v2666
      %v3179 = vunpack.c.h.b16 %v2666
      %v3180 = vunpack.c.l.b16 %v2667
      %v3181 = vunpack.c.h.b16 %v2667
      %v3182 = vunpack.c.l.b16 %v2668
      %v3183 = vunpack.c.h.b16 %v2668
      %v3184 = vunpack.c.l.b16 %v2669
      %v3185 = vunpack.c.h.b16 %v2669
      %v3186 = vunpack.c.l.b16 %v2670
      %v3187 = vunpack.c.h.b16 %v2670
      %v3188 = vunpack.c.l.b16 %v2671
      %v3189 = vunpack.c.h.b16 %v2671
      %v3190 = vunpack.c.l.b16 %v2672
      %v3191 = vunpack.c.h.b16 %v2672
      %v3192 = vunpack.c.l.b16 %v2673
      %v3193 = vunpack.c.h.b16 %v2673
      %v3194 = vunpack.c.l.b16 %v2674
      %v3195 = vunpack.c.h.b16 %v2674
      %v3196 = vunpack.c.l.b16 %v2675
      %v3197 = vunpack.c.h.b16 %v2675
      %v3198 = vunpack.c.l.b16 %v2676
      %v3199 = vunpack.c.h.b16 %v2676
      %v3200 = vunpack.c.l.b16 %v2677
      %v3201 = vunpack.c.h.b16 %v2677
      %v3202 = vunpack.c.l.b16 %v2678
      %v3203 = vunpack.c.h.b16 %v2678
      %v3204 = vunpack.c.l.b16 %v2679
      %v3205 = vunpack.c.h.b16 %v2679
      %v3206 = vunpack.c.l.b16 %v2680
      %v3207 = vunpack.c.h.b16 %v2680
      %v3208 = vunpack.c.l.b16 %v2681
      %v3209 = vunpack.c.h.b16 %v2681
      %v3210 = vunpack.c.l.b16 %v2682
      %v3211 = vunpack.c.h.b16 %v2682
      %v3212 = vunpack.c.l.b16 %v2683
      %v3213 = vunpack.c.h.b16 %v2683
      %v3214 = vunpack.c.l.b16 %v2684
      %v3215 = vunpack.c.h.b16 %v2684
      %v3216 = vunpack.c.l.b16 %v2685
      %v3217 = vunpack.c.h.b16 %v2685
      %v3218 = vunpack.c.l.b16 %v2686
      %v3219 = vunpack.c.h.b16 %v2686
      %v3220 = vunpack.c.l.b16 %v2687
      %v3221 = vunpack.c.h.b16 %v2687
      %v3222 = vunpack.c.l.b16 %v2688
      %v3223 = vunpack.c.h.b16 %v2688
      %v3224 = vunpack.c.l.b16 %v2689
      %v3225 = vunpack.c.h.b16 %v2689
      %v3226 = vunpack.c.l.b16 %v2690
      %v3227 = vunpack.c.h.b16 %v2690
      %v3228 = vunpack.c.l.b16 %v2691
      %v3229 = vunpack.c.h.b16 %v2691
      %v3230 = vunpack.c.l.b16 %v2692
      %v3231 = vunpack.c.h.b16 %v2692
      %v3232 = vunpack.c.l.b16 %v2693
      %v3233 = vunpack.c.h.b16 %v2693
      %v3234 = vunpack.c.l.b16 %v2694
      %v3235 = vunpack.c.h.b16 %v2694
      %v3236 = vunpack.c.l.b16 %v2695
      %v3237 = vunpack.c.h.b16 %v2695
      %v3238 = vunpack.c.l.b16 %v2696
      %v3239 = vunpack.c.h.b16 %v2696
      %v3240 = vunpack.c.l.b16 %v2697
      %v3241 = vunpack.c.h.b16 %v2697
      %v3242 = vunpack.c.l.b16 %v2698
      %v3243 = vunpack.c.h.b16 %v2698
      %v3244 = vunpack.c.l.b16 %v2699
      %v3245 = vunpack.c.h.b16 %v2699
      %v3246 = vunpack.c.l.b16 %v2700
      %v3247 = vunpack.c.h.b16 %v2700
      %v3248 = vunpack.c.l.b16 %v2701
      %v3249 = vunpack.c.h.b16 %v2701
      %v3250 = vunpack.c.l.b16 %v2702
      %v3251 = vunpack.c.h.b16 %v2702
      %v3252 = vunpack.c.l.b16 %v2703
      %v3253 = vunpack.c.h.b16 %v2703
      %v3254 = vunpack.c.l.b16 %v2704
      %v3255 = vunpack.c.h.b16 %v2704
      %v3256 = vunpack.c.l.b16 %v2705
      %v3257 = vunpack.c.h.b16 %v2705
      %v3258 = vunpack.c.l.b16 %v2706
      %v3259 = vunpack.c.h.b16 %v2706
      %v3260 = vunpack.c.l.b16 %v2707
      %v3261 = vunpack.c.h.b16 %v2707
      %v3262 = vunpack.c.l.b16 %v2708
      %v3263 = vunpack.c.h.b16 %v2708
      %v3264 = vunpack.c.l.b16 %v2709
      %v3265 = vunpack.c.h.b16 %v2709
      %v3266 = vunpack.c.l.b16 %v2710
      %v3267 = vunpack.c.h.b16 %v2710
      %v3268 = vunpack.c.l.b16 %v2711
      %v3269 = vunpack.c.h.b16 %v2711
      %v3270 = vunpack.c.l.b16 %v2712
      %v3271 = vunpack.c.h.b16 %v2712
      %v3272 = vunpack.c.l.b16 %v2713
      %v3273 = vunpack.c.h.b16 %v2713
      %v3274 = vunpack.c.l.b16 %v2714
      %v3275 = vunpack.c.h.b16 %v2714
      %v3276 = vunpack.c.l.b16 %v2715
      %v3277 = vunpack.c.h.b16 %v2715
      %v3278 = vunpack.c.l.b16 %v2716
      %v3279 = vunpack.c.h.b16 %v2716
      %v3280 = vunpack.c.l.b16 %v2717
      %v3281 = vunpack.c.h.b16 %v2717
      %v3282 = vunpack.c.l.b16 %v2718
      %v3283 = vunpack.c.h.b16 %v2718
      %v3284 = vunpack.c.l.b16 %v2719
      %v3285 = vunpack.c.h.b16 %v2719
      %v3286 = vunpack.c.l.b16 %v2720
      %v3287 = vunpack.c.h.b16 %v2720
      %v3288 = vunpack.c.l.b16 %v2721
      %v3289 = vunpack.c.h.b16 %v2721
      %v3290 = vunpack.c.l.b16 %v2722
      %v3291 = vunpack.c.h.b16 %v2722
      %v3292 = vunpack.c.l.b16 %v2723
      %v3293 = vunpack.c.h.b16 %v2723
      %v3294 = vunpack.c.l.b16 %v2724
      %v3295 = vunpack.c.h.b16 %v2724
      %v3296 = vpack.c.b16 %v3048, %v3040
      %v3297 = vpack.c.b16 %v3049, %v3041
      %v3298 = vpack.c.b16 %v3050, %v3042
      %v3299 = vpack.c.b16 %v3051, %v3043
      %v3300 = vpack.c.b16 %v3052, %v3044
      %v3301 = vpack.c.b16 %v3053, %v3045
      %v3302 = vpack.c.b16 %v3054, %v3046
      %v3303 = vpack.c.b16 %v3055, %v3047
      %v3304 = vpack.c.b16 %v3064, %v3056
      %v3305 = vpack.c.b16 %v3065, %v3057
      %v3306 = vpack.c.b16 %v3066, %v3058
      %v3307 = vpack.c.b16 %v3067, %v3059
      %v3308 = vpack.c.b16 %v3068, %v3060
      %v3309 = vpack.c.b16 %v3069, %v3061
      %v3310 = vpack.c.b16 %v3070, %v3062
      %v3311 = vpack.c.b16 %v3071, %v3063
      %v3312 = vpack.c.b16 %v3080, %v3072
      %v3313 = vpack.c.b16 %v3081, %v3073
      %v3314 = vpack.c.b16 %v3082, %v3074
      %v3315 = vpack.c.b16 %v3083, %v3075
      %v3316 = vpack.c.b16 %v3084, %v3076
      %v3317 = vpack.c.b16 %v3085, %v3077
      %v3318 = vpack.c.b16 %v3086, %v3078
      %v3319 = vpack.c.b16 %v3087, %v3079
      %v3320 = vpack.c.b16 %v3096, %v3088
      %v3321 = vpack.c.b16 %v3097, %v3089
      %v3322 = vpack.c.b16 %v3098, %v3090
      %v3323 = vpack.c.b16 %v3099, %v3091
      %v3324 = vpack.c.b16 %v3100, %v3092
      %v3325 = vpack.c.b16 %v3101, %v3093
      %v3326 = vpack.c.b16 %v3102, %v3094
      %v3327 = vpack.c.b16 %v3103, %v3095
      %v3328 = vpack.c.b16 %v3112, %v3104
      %v3329 = vpack.c.b16 %v3113, %v3105
      %v3330 = vpack.c.b16 %v3114, %v3106
      %v3331 = vpack.c.b16 %v3115, %v3107
      %v3332 = vpack.c.b16 %v3116, %v3108
      %v3333 = vpack.c.b16 %v3117, %v3109
      %v3334 = vpack.c.b16 %v3118, %v3110
      %v3335 = vpack.c.b16 %v3119, %v3111
      %v3336 = vpack.c.b16 %v3128, %v3120
      %v3337 = vpack.c.b16 %v3129, %v3121
      %v3338 = vpack.c.b16 %v3130, %v3122
      %v3339 = vpack.c.b16 %v3131, %v3123
      %v3340 = vpack.c.b16 %v3132, %v3124
      %v3341 = vpack.c.b16 %v3133, %v3125
      %v3342 = vpack.c.b16 %v3134, %v3126
      %v3343 = vpack.c.b16 %v3135, %v3127
      %v3344 = vpack.c.b16 %v3144, %v3136
      %v3345 = vpack.c.b16 %v3145, %v3137
      %v3346 = vpack.c.b16 %v3146, %v3138
      %v3347 = vpack.c.b16 %v3147, %v3139
      %v3348 = vpack.c.b16 %v3148, %v3140
      %v3349 = vpack.c.b16 %v3149, %v3141
      %v3350 = vpack.c.b16 %v3150, %v3142
      %v3351 = vpack.c.b16 %v3151, %v3143
      %v3352 = vpack.c.b16 %v3160, %v3152
      %v3353 = vpack.c.b16 %v3161, %v3153
      %v3354 = vpack.c.b16 %v3162, %v3154
      %v3355 = vpack.c.b16 %v3163, %v3155
      %v3356 = vpack.c.b16 %v3164, %v3156
      %v3357 = vpack.c.b16 %v3165, %v3157
      %v3358 = vpack.c.b16 %v3166, %v3158
      %v3359 = vpack.c.b16 %v3167, %v3159
      %v3360 = vpack.c.b16 %v3176, %v3168
      %v3361 = vpack.c.b16 %v3177, %v3169
      %v3362 = vpack.c.b16 %v3178, %v3170
      %v3363 = vpack.c.b16 %v3179, %v3171
      %v3364 = vpack.c.b16 %v3180, %v3172
      %v3365 = vpack.c.b16 %v3181, %v3173
      %v3366 = vpack.c.b16 %v3182, %v3174
      %v3367 = vpack.c.b16 %v3183, %v3175
      %v3368 = vpack.c.b16 %v3192, %v3184
      %v3369 = vpack.c.b16 %v3193, %v3185
      %v3370 = vpack.c.b16 %v3194, %v3186
      %v3371 = vpack.c.b16 %v3195, %v3187
      %v3372 = vpack.c.b16 %v3196, %v3188
      %v3373 = vpack.c.b16 %v3197, %v3189
      %v3374 = vpack.c.b16 %v3198, %v3190
      %v3375 = vpack.c.b16 %v3199, %v3191
      %v3376 = vpack.c.b16 %v3208, %v3200
      %v3377 = vpack.c.b16 %v3209, %v3201
      %v3378 = vpack.c.b16 %v3210, %v3202
      %v3379 = vpack.c.b16 %v3211, %v3203
      %v3380 = vpack.c.b16 %v3212, %v3204
      %v3381 = vpack.c.b16 %v3213, %v3205
      %v3382 = vpack.c.b16 %v3214, %v3206
      %v3383 = vpack.c.b16 %v3215, %v3207
      %v3384 = vpack.c.b16 %v3224, %v3216
      %v3385 = vpack.c.b16 %v3225, %v3217
      %v3386 = vpack.c.b16 %v3226, %v3218
      %v3387 = vpack.c.b16 %v3227, %v3219
      %v3388 = vpack.c.b16 %v3228, %v3220
      %v3389 = vpack.c.b16 %v3229, %v3221
      %v3390 = vpack.c.b16 %v3230, %v3222
      %v3391 = vpack.c.b16 %v3231, %v3223
      %v3392 = vpack.c.b16 %v3240, %v3232
      %v3393 = vpack.c.b16 %v3241, %v3233
      %v3394 = vpack.c.b16 %v3242, %v3234
      %v3395 = vpack.c.b16 %v3243, %v3235
      %v3396 = vpack.c.b16 %v3244, %v3236
      %v3397 = vpack.c.b16 %v3245, %v3237
      %v3398 = vpack.c.b16 %v3246, %v3238
      %v3399 = vpack.c.b16 %v3247, %v3239
      %v3400 = vpack.c.b16 %v3256, %v3248
      %v3401 = vpack.c.b16 %v3257, %v3249
      %v3402 = vpack.c.b16 %v3258, %v3250
      %v3403 = vpack.c.b16 %v3259, %v3251
      %v3404 = vpack.c.b16 %v3260, %v3252
      %v3405 = vpack.c.b16 %v3261, %v3253
      %v3406 = vpack.c.b16 %v3262, %v3254
      %v3407 = vpack.c.b16 %v3263, %v3255
      %v3408 = vpack.c.b16 %v3272, %v3264
      %v3409 = vpack.c.b16 %v3273, %v3265
      %v3410 = vpack.c.b16 %v3274, %v3266
      %v3411 = vpack.c.b16 %v3275, %v3267
      %v3412 = vpack.c.b16 %v3276, %v3268
      %v3413 = vpack.c.b16 %v3277, %v3269
      %v3414 = vpack.c.b16 %v3278, %v3270
      %v3415 = vpack.c.b16 %v3279, %v3271
      %v3416 = vpack.c.b16 %v3288, %v3280
      %v3417 = vpack.c.b16 %v3289, %v3281
      %v3418 = vpack.c.b16 %v3290, %v3282
      %v3419 = vpack.c.b16 %v3291, %v3283
      %v3420 = vpack.c.b16 %v3292, %v3284
      %v3421 = vpack.c.b16 %v3293, %v3285
      %v3422 = vpack.c.b16 %v3294, %v3286
      %v3423 = vpack.c.b16 %v3295, %v3287
      %3552 = vmatprep.subr.bf16.mxu0 %v3353
      %3553 = vmatpush1.bf16.msra.mxu0 %v3352
      %3554 = vmatprep.subr.bf16.mxu0 %v3345
      %3555 = vmatpush1.bf16.msra.mxu0 %v3344
      %3556 = vmatprep.subr.bf16.mxu0 %v3337
      %3557 = vmatpush1.bf16.msra.mxu0 %v3336
      %3558 = vmatprep.subr.bf16.mxu0 %v3329
      %3559 = vmatpush1.bf16.msra.mxu0 %v3328
      %3560 = vmatprep.subr.bf16.mxu0 %v3321
      %3561 = vmatpush1.bf16.msra.mxu0 %v3320
      %3562 = vmatprep.subr.bf16.mxu0 %v3313
      %3563 = vmatpush1.bf16.msra.mxu0 %v3312
      %3564 = vmatprep.subr.bf16.mxu0 %v3305
      %3565 = vmatpush1.bf16.msra.mxu0 %v3304
      %3566 = vmatprep.subr.bf16.mxu0 %v3297
      %3567 = vmatpush1.bf16.msra.mxu0 %v3296
      %3568 = vmatprep.subr.bf16.mxu0 %v3417
      %3569 = vmatpush2.bf16.msra.mxu0 %v3416
      %3570 = vmatprep.subr.bf16.mxu0 %v3409
      %3571 = vmatpush2.bf16.msra.mxu0 %v3408
      %3572 = vmatprep.subr.bf16.mxu0 %v3401
      %3573 = vmatpush2.bf16.msra.mxu0 %v3400
      %3574 = vmatprep.subr.bf16.mxu0 %v3393
      %3575 = vmatpush2.bf16.msra.mxu0 %v3392
      %3576 = vmatprep.subr.bf16.mxu0 %v3385
      %3577 = vmatpush2.bf16.msra.mxu0 %v3384
      %3578 = vmatprep.subr.bf16.mxu0 %v3377
      %3579 = vmatpush2.bf16.msra.mxu0 %v3376
      %3580 = vmatprep.subr.bf16.mxu0 %v3369
      %3581 = vmatpush2.bf16.msra.mxu0 %v3368
      %3582 = vmatprep.subr.bf16.mxu0 %v3361
      %3583 = vmatpush2.bf16.msra.mxu0 %v3360
      %3584 = vmatprep.mubr.bf16.mxu0 %v2856
      %3585 = vmatmul.mubr.bf16.gmra.mxu0 %v2855
      %v3586 = vpop.f32.mrf.mxu0
      %v3587 = vadd.f32 %v2875, %v3586
      %v3588 = vpop.f32.mrf.mxu0
      %v3589 = vadd.f32 %v2879, %v3588
      %v3590 = vpop.f32.mrf.mxu0
      %v3591 = vadd.f32 %v2875, %v3590
      %v3592 = vpop.f32.mrf.mxu0
      %v3593 = vadd.f32 %v2879, %v3592
      %3594 = vmatprep.mubr.bf16.mxu0 %v2858
      %3595 = vmatmul.mubr.bf16.gmra.mxu0 %v2857
      %v3596 = vpop.f32.mrf.mxu0
      %v3597 = vadd.f32 %v2875, %v3596
      %v3598 = vpop.f32.mrf.mxu0
      %v3599 = vadd.f32 %v2879, %v3598
      %v3600 = vpop.f32.mrf.mxu0
      %v3601 = vadd.f32 %v2875, %v3600
      %v3602 = vpop.f32.mrf.mxu0
      %v3603 = vadd.f32 %v2879, %v3602
      %3604 = vmatprep.mubr.bf16.mxu0 %v2860
      %3605 = vmatmul.mubr.bf16.gmra.mxu0 %v2859
      %v3606 = vpop.f32.mrf.mxu0
      %v3607 = vadd.f32 %v2875, %v3606
      %v3608 = vpop.f32.mrf.mxu0
      %v3609 = vadd.f32 %v2879, %v3608
      %v3610 = vpop.f32.mrf.mxu0
      %v3611 = vadd.f32 %v2875, %v3610
      %v3612 = vpop.f32.mrf.mxu0
      %v3613 = vadd.f32 %v2879, %v3612
      %3614 = vmatprep.mubr.bf16.mxu0 %v2862
      %3615 = vmatmul.mubr.bf16.gmra.mxu0 %v2861
      %v3616 = vpop.f32.mrf.mxu0
      %v3617 = vadd.f32 %v2875, %v3616
      %v3618 = vpop.f32.mrf.mxu0
      %v3619 = vadd.f32 %v2879, %v3618
      %v3620 = vpop.f32.mrf.mxu0
      %v3621 = vadd.f32 %v2875, %v3620
      %v3622 = vpop.f32.mrf.mxu0
      %v3623 = vadd.f32 %v2879, %v3622
      %3624 = vmatprep.mubr.bf16.mxu0 %v2864
      %3625 = vmatmul.mubr.bf16.gmra.mxu0 %v2863
      %v3626 = vpop.f32.mrf.mxu0
      %v3627 = vadd.f32 %v2875, %v3626
      %v3628 = vpop.f32.mrf.mxu0
      %v3629 = vadd.f32 %v2879, %v3628
      %v3630 = vpop.f32.mrf.mxu0
      %v3631 = vadd.f32 %v2875, %v3630
      %v3632 = vpop.f32.mrf.mxu0
      %v3633 = vadd.f32 %v2879, %v3632
      %3634 = vmatprep.mubr.bf16.mxu0 %v2866
      %3635 = vmatmul.mubr.bf16.gmra.mxu0 %v2865
      %v3636 = vpop.f32.mrf.mxu0
      %v3637 = vadd.f32 %v2875, %v3636
      %v3638 = vpop.f32.mrf.mxu0
      %v3639 = vadd.f32 %v2879, %v3638
      %v3640 = vpop.f32.mrf.mxu0
      %v3641 = vadd.f32 %v2875, %v3640
      %v3642 = vpop.f32.mrf.mxu0
      %v3643 = vadd.f32 %v2879, %v3642
      %3644 = vmatprep.mubr.bf16.mxu0 %v2868
      %3645 = vmatmul.mubr.bf16.gmra.mxu0 %v2867
      %v3646 = vpop.f32.mrf.mxu0
      %v3647 = vadd.f32 %v2875, %v3646
      %v3648 = vpop.f32.mrf.mxu0
      %v3649 = vadd.f32 %v2879, %v3648
      %v3650 = vpop.f32.mrf.mxu0
      %v3651 = vadd.f32 %v2875, %v3650
      %v3652 = vpop.f32.mrf.mxu0
      %v3653 = vadd.f32 %v2879, %v3652
      %3654 = vmatprep.mubr.bf16.mxu0 %v2870
      %3655 = vmatmul.mubr.bf16.gmra.mxu0 %v2869
      %v3656 = vpop.f32.mrf.mxu0
      %v3657 = vadd.f32 %v2875, %v3656
      %v3658 = vpop.f32.mrf.mxu0
      %v3659 = vadd.f32 %v2879, %v3658
      %v3660 = vpop.f32.mrf.mxu0
      %v3661 = vadd.f32 %v2875, %v3660
      %v3662 = vpop.f32.mrf.mxu0
      %v3663 = vadd.f32 %v2879, %v3662
      %3664 = vdwg.mxu0
      %3665 = vmatprep.subr.bf16.mxu0 %v3355
      %3666 = vmatpush1.bf16.msra.mxu0 %v3354
      %3667 = vmatprep.subr.bf16.mxu0 %v3347
      %3668 = vmatpush1.bf16.msra.mxu0 %v3346
      %3669 = vmatprep.subr.bf16.mxu0 %v3339
      %3670 = vmatpush1.bf16.msra.mxu0 %v3338
      %3671 = vmatprep.subr.bf16.mxu0 %v3331
      %3672 = vmatpush1.bf16.msra.mxu0 %v3330
      %3673 = vmatprep.subr.bf16.mxu0 %v3323
      %3674 = vmatpush1.bf16.msra.mxu0 %v3322
      %3675 = vmatprep.subr.bf16.mxu0 %v3315
      %3676 = vmatpush1.bf16.msra.mxu0 %v3314
      %3677 = vmatprep.subr.bf16.mxu0 %v3307
      %3678 = vmatpush1.bf16.msra.mxu0 %v3306
      %3679 = vmatprep.subr.bf16.mxu0 %v3299
      %3680 = vmatpush1.bf16.msra.mxu0 %v3298
      %3681 = vmatprep.subr.bf16.mxu0 %v3419
      %3682 = vmatpush2.bf16.msra.mxu0 %v3418
      %3683 = vmatprep.subr.bf16.mxu0 %v3411
      %3684 = vmatpush2.bf16.msra.mxu0 %v3410
      %3685 = vmatprep.subr.bf16.mxu0 %v3403
      %3686 = vmatpush2.bf16.msra.mxu0 %v3402
      %3687 = vmatprep.subr.bf16.mxu0 %v3395
      %3688 = vmatpush2.bf16.msra.mxu0 %v3394
      %3689 = vmatprep.subr.bf16.mxu0 %v3387
      %3690 = vmatpush2.bf16.msra.mxu0 %v3386
      %3691 = vmatprep.subr.bf16.mxu0 %v3379
      %3692 = vmatpush2.bf16.msra.mxu0 %v3378
      %3693 = vmatprep.subr.bf16.mxu0 %v3371
      %3694 = vmatpush2.bf16.msra.mxu0 %v3370
      %3695 = vmatprep.subr.bf16.mxu0 %v3363
      %3696 = vmatpush2.bf16.msra.mxu0 %v3362
      %3697 = vmatprep.mubr.bf16.mxu0 %v2856
      %3698 = vmatmul.mubr.bf16.gmra.mxu0 %v2855
      %v3699 = vpop.f32.mrf.mxu0
      %v3700 = vadd.f32 %v2883, %v3699
      %v3701 = vpop.f32.mrf.mxu0
      %v3702 = vadd.f32 %v2887, %v3701
      %v3703 = vpop.f32.mrf.mxu0
      %v3704 = vadd.f32 %v2883, %v3703
      %v3705 = vpop.f32.mrf.mxu0
      %v3706 = vadd.f32 %v2887, %v3705
      %3707 = vmatprep.mubr.bf16.mxu0 %v2858
      %3708 = vmatmul.mubr.bf16.gmra.mxu0 %v2857
      %v3709 = vpop.f32.mrf.mxu0
      %v3710 = vadd.f32 %v2883, %v3709
      %v3711 = vpop.f32.mrf.mxu0
      %v3712 = vadd.f32 %v2887, %v3711
      %v3713 = vpop.f32.mrf.mxu0
      %v3714 = vadd.f32 %v2883, %v3713
      %v3715 = vpop.f32.mrf.mxu0
      %v3716 = vadd.f32 %v2887, %v3715
      %3717 = vmatprep.mubr.bf16.mxu0 %v2860
      %3718 = vmatmul.mubr.bf16.gmra.mxu0 %v2859
      %v3719 = vpop.f32.mrf.mxu0
      %v3720 = vadd.f32 %v2883, %v3719
      %v3721 = vpop.f32.mrf.mxu0
      %v3722 = vadd.f32 %v2887, %v3721
      %v3723 = vpop.f32.mrf.mxu0
      %v3724 = vadd.f32 %v2883, %v3723
      %v3725 = vpop.f32.mrf.mxu0
      %v3726 = vadd.f32 %v2887, %v3725
      %3727 = vmatprep.mubr.bf16.mxu0 %v2862
      %3728 = vmatmul.mubr.bf16.gmra.mxu0 %v2861
      %v3729 = vpop.f32.mrf.mxu0
      %v3730 = vadd.f32 %v2883, %v3729
      %v3731 = vpop.f32.mrf.mxu0
      %v3732 = vadd.f32 %v2887, %v3731
      %v3733 = vpop.f32.mrf.mxu0
      %v3734 = vadd.f32 %v2883, %v3733
      %v3735 = vpop.f32.mrf.mxu0
      %v3736 = vadd.f32 %v2887, %v3735
      %3737 = vmatprep.mubr.bf16.mxu0 %v2864
      %3738 = vmatmul.mubr.bf16.gmra.mxu0 %v2863
      %v3739 = vpop.f32.mrf.mxu0
      %v3740 = vadd.f32 %v2883, %v3739
      %v3741 = vpop.f32.mrf.mxu0
      %v3742 = vadd.f32 %v2887, %v3741
      %v3743 = vpop.f32.mrf.mxu0
      %v3744 = vadd.f32 %v2883, %v3743
      %v3745 = vpop.f32.mrf.mxu0
      %v3746 = vadd.f32 %v2887, %v3745
      %3747 = vmatprep.mubr.bf16.mxu0 %v2866
      %3748 = vmatmul.mubr.bf16.gmra.mxu0 %v2865
      %v3749 = vpop.f32.mrf.mxu0
      %v3750 = vadd.f32 %v2883, %v3749
      %v3751 = vpop.f32.mrf.mxu0
      %v3752 = vadd.f32 %v2887, %v3751
      %v3753 = vpop.f32.mrf.mxu0
      %v3754 = vadd.f32 %v2883, %v3753
      %v3755 = vpop.f32.mrf.mxu0
      %v3756 = vadd.f32 %v2887, %v3755
      %3757 = vmatprep.mubr.bf16.mxu0 %v2868
      %3758 = vmatmul.mubr.bf16.gmra.mxu0 %v2867
      %v3759 = vpop.f32.mrf.mxu0
      %v3760 = vadd.f32 %v2883, %v3759
      %v3761 = vpop.f32.mrf.mxu0
      %v3762 = vadd.f32 %v2887, %v3761
      %v3763 = vpop.f32.mrf.mxu0
      %v3764 = vadd.f32 %v2883, %v3763
      %v3765 = vpop.f32.mrf.mxu0
      %v3766 = vadd.f32 %v2887, %v3765
      %3767 = vmatprep.mubr.bf16.mxu0 %v2870
      %3768 = vmatmul.mubr.bf16.gmra.mxu0 %v2869
      %v3769 = vpop.f32.mrf.mxu0
      %v3770 = vadd.f32 %v2883, %v3769
      %v3771 = vpop.f32.mrf.mxu0
      %v3772 = vadd.f32 %v2887, %v3771
      %v3773 = vpop.f32.mrf.mxu0
      %v3774 = vadd.f32 %v2883, %v3773
      %v3775 = vpop.f32.mrf.mxu0
      %v3776 = vadd.f32 %v2887, %v3775
      %3777 = vdwg.mxu0
      %3778 = vmatprep.subr.bf16.mxu0 %v3357
      %3779 = vmatpush1.bf16.msra.mxu0 %v3356
      %3780 = vmatprep.subr.bf16.mxu0 %v3349
      %3781 = vmatpush1.bf16.msra.mxu0 %v3348
      %3782 = vmatprep.subr.bf16.mxu0 %v3341
      %3783 = vmatpush1.bf16.msra.mxu0 %v3340
      %3784 = vmatprep.subr.bf16.mxu0 %v3333
      %3785 = vmatpush1.bf16.msra.mxu0 %v3332
      %3786 = vmatprep.subr.bf16.mxu0 %v3325
      %3787 = vmatpush1.bf16.msra.mxu0 %v3324
      %3788 = vmatprep.subr.bf16.mxu0 %v3317
      %3789 = vmatpush1.bf16.msra.mxu0 %v3316
      %3790 = vmatprep.subr.bf16.mxu0 %v3309
      %3791 = vmatpush1.bf16.msra.mxu0 %v3308
      %3792 = vmatprep.subr.bf16.mxu0 %v3301
      %3793 = vmatpush1.bf16.msra.mxu0 %v3300
      %3794 = vmatprep.subr.bf16.mxu0 %v3421
      %3795 = vmatpush2.bf16.msra.mxu0 %v3420
      %3796 = vmatprep.subr.bf16.mxu0 %v3413
      %3797 = vmatpush2.bf16.msra.mxu0 %v3412
      %3798 = vmatprep.subr.bf16.mxu0 %v3405
      %3799 = vmatpush2.bf16.msra.mxu0 %v3404
      %3800 = vmatprep.subr.bf16.mxu0 %v3397
      %3801 = vmatpush2.bf16.msra.mxu0 %v3396
      %3802 = vmatprep.subr.bf16.mxu0 %v3389
      %3803 = vmatpush2.bf16.msra.mxu0 %v3388
      %3804 = vmatprep.subr.bf16.mxu0 %v3381
      %3805 = vmatpush2.bf16.msra.mxu0 %v3380
      %3806 = vmatprep.subr.bf16.mxu0 %v3373
      %3807 = vmatpush2.bf16.msra.mxu0 %v3372
      %3808 = vmatprep.subr.bf16.mxu0 %v3365
      %3809 = vmatpush2.bf16.msra.mxu0 %v3364
      %3810 = vmatprep.mubr.bf16.mxu0 %v2856
      %3811 = vmatmul.mubr.bf16.gmra.mxu0 %v2855
      %v3812 = vpop.f32.mrf.mxu0
      %v3813 = vadd.f32 %v2891, %v3812
      %v3814 = vpop.f32.mrf.mxu0
      %v3815 = vadd.f32 %v2895, %v3814
      %v3816 = vpop.f32.mrf.mxu0
      %v3817 = vadd.f32 %v2891, %v3816
      %v3818 = vpop.f32.mrf.mxu0
      %v3819 = vadd.f32 %v2895, %v3818
      %3820 = vmatprep.mubr.bf16.mxu0 %v2858
      %3821 = vmatmul.mubr.bf16.gmra.mxu0 %v2857
      %v3822 = vpop.f32.mrf.mxu0
      %v3823 = vadd.f32 %v2891, %v3822
      %v3824 = vpop.f32.mrf.mxu0
      %v3825 = vadd.f32 %v2895, %v3824
      %v3826 = vpop.f32.mrf.mxu0
      %v3827 = vadd.f32 %v2891, %v3826
      %v3828 = vpop.f32.mrf.mxu0
      %v3829 = vadd.f32 %v2895, %v3828
      %3830 = vmatprep.mubr.bf16.mxu0 %v2860
      %3831 = vmatmul.mubr.bf16.gmra.mxu0 %v2859
      %v3832 = vpop.f32.mrf.mxu0
      %v3833 = vadd.f32 %v2891, %v3832
      %v3834 = vpop.f32.mrf.mxu0
      %v3835 = vadd.f32 %v2895, %v3834
      %v3836 = vpop.f32.mrf.mxu0
      %v3837 = vadd.f32 %v2891, %v3836
      %v3838 = vpop.f32.mrf.mxu0
      %v3839 = vadd.f32 %v2895, %v3838
      %3840 = vmatprep.mubr.bf16.mxu0 %v2862
      %3841 = vmatmul.mubr.bf16.gmra.mxu0 %v2861
      %v3842 = vpop.f32.mrf.mxu0
      %v3843 = vadd.f32 %v2891, %v3842
      %v3844 = vpop.f32.mrf.mxu0
      %v3845 = vadd.f32 %v2895, %v3844
      %v3846 = vpop.f32.mrf.mxu0
      %v3847 = vadd.f32 %v2891, %v3846
      %v3848 = vpop.f32.mrf.mxu0
      %v3849 = vadd.f32 %v2895, %v3848
      %3850 = vmatprep.mubr.bf16.mxu0 %v2864
      %3851 = vmatmul.mubr.bf16.gmra.mxu0 %v2863
      %v3852 = vpop.f32.mrf.mxu0
      %v3853 = vadd.f32 %v2891, %v3852
      %v3854 = vpop.f32.mrf.mxu0
      %v3855 = vadd.f32 %v2895, %v3854
      %v3856 = vpop.f32.mrf.mxu0
      %v3857 = vadd.f32 %v2891, %v3856
      %v3858 = vpop.f32.mrf.mxu0
      %v3859 = vadd.f32 %v2895, %v3858
      %3860 = vmatprep.mubr.bf16.mxu0 %v2866
      %3861 = vmatmul.mubr.bf16.gmra.mxu0 %v2865
      %v3862 = vpop.f32.mrf.mxu0
      %v3863 = vadd.f32 %v2891, %v3862
      %v3864 = vpop.f32.mrf.mxu0
      %v3865 = vadd.f32 %v2895, %v3864
      %v3866 = vpop.f32.mrf.mxu0
      %v3867 = vadd.f32 %v2891, %v3866
      %v3868 = vpop.f32.mrf.mxu0
      %v3869 = vadd.f32 %v2895, %v3868
      %3870 = vmatprep.mubr.bf16.mxu0 %v2868
      %3871 = vmatmul.mubr.bf16.gmra.mxu0 %v2867
      %v3872 = vpop.f32.mrf.mxu0
      %v3873 = vadd.f32 %v2891, %v3872
      %v3874 = vpop.f32.mrf.mxu0
      %v3875 = vadd.f32 %v2895, %v3874
      %v3876 = vpop.f32.mrf.mxu0
      %v3877 = vadd.f32 %v2891, %v3876
      %v3878 = vpop.f32.mrf.mxu0
      %v3879 = vadd.f32 %v2895, %v3878
      %3880 = vmatprep.mubr.bf16.mxu0 %v2870
      %3881 = vmatmul.mubr.bf16.gmra.mxu0 %v2869
      %v3882 = vpop.f32.mrf.mxu0
      %v3883 = vadd.f32 %v2891, %v3882
      %v3884 = vpop.f32.mrf.mxu0
      %v3885 = vadd.f32 %v2895, %v3884
      %v3886 = vpop.f32.mrf.mxu0
      %v3887 = vadd.f32 %v2891, %v3886
      %v3888 = vpop.f32.mrf.mxu0
      %v3889 = vadd.f32 %v2895, %v3888
      %3890 = vdwg.mxu0
      %3891 = vmatprep.subr.bf16.mxu0 %v3359
      %3892 = vmatpush1.bf16.msra.mxu0 %v3358
      %3893 = vmatprep.subr.bf16.mxu0 %v3351
      %3894 = vmatpush1.bf16.msra.mxu0 %v3350
      %3895 = vmatprep.subr.bf16.mxu0 %v3343
      %3896 = vmatpush1.bf16.msra.mxu0 %v3342
      %3897 = vmatprep.subr.bf16.mxu0 %v3335
      %3898 = vmatpush1.bf16.msra.mxu0 %v3334
      %3899 = vmatprep.subr.bf16.mxu0 %v3327
      %3900 = vmatpush1.bf16.msra.mxu0 %v3326
      %3901 = vmatprep.subr.bf16.mxu0 %v3319
      %3902 = vmatpush1.bf16.msra.mxu0 %v3318
      %3903 = vmatprep.subr.bf16.mxu0 %v3311
      %3904 = vmatpush1.bf16.msra.mxu0 %v3310
      %3905 = vmatprep.subr.bf16.mxu0 %v3303
      %3906 = vmatpush1.bf16.msra.mxu0 %v3302
      %3907 = vmatprep.subr.bf16.mxu0 %v3423
      %3908 = vmatpush2.bf16.msra.mxu0 %v3422
      %3909 = vmatprep.subr.bf16.mxu0 %v3415
      %3910 = vmatpush2.bf16.msra.mxu0 %v3414
      %3911 = vmatprep.subr.bf16.mxu0 %v3407
      %3912 = vmatpush2.bf16.msra.mxu0 %v3406
      %3913 = vmatprep.subr.bf16.mxu0 %v3399
      %3914 = vmatpush2.bf16.msra.mxu0 %v3398
      %3915 = vmatprep.subr.bf16.mxu0 %v3391
      %3916 = vmatpush2.bf16.msra.mxu0 %v3390
      %3917 = vmatprep.subr.bf16.mxu0 %v3383
      %3918 = vmatpush2.bf16.msra.mxu0 %v3382
      %3919 = vmatprep.subr.bf16.mxu0 %v3375
      %3920 = vmatpush2.bf16.msra.mxu0 %v3374
      %3921 = vmatprep.subr.bf16.mxu0 %v3367
      %3922 = vmatpush2.bf16.msra.mxu0 %v3366
      %3923 = vmatprep.mubr.bf16.mxu0 %v2856
      %3924 = vmatmul.mubr.bf16.gmra.mxu0 %v2855
      %v3925 = vpop.f32.mrf.mxu0
      %v3926 = vadd.f32 %v2899, %v3925
      %v3927 = vpop.f32.mrf.mxu0
      %v3928 = vadd.f32 %v2903, %v3927
      %v3929 = vpop.f32.mrf.mxu0
      %v3930 = vadd.f32 %v2899, %v3929
      %v3931 = vpop.f32.mrf.mxu0
      %v3932 = vadd.f32 %v2903, %v3931
      %3933 = vmatprep.mubr.bf16.mxu0 %v2858
      %3934 = vmatmul.mubr.bf16.gmra.mxu0 %v2857
      %v3935 = vpop.f32.mrf.mxu0
      %v3936 = vadd.f32 %v2899, %v3935
      %v3937 = vpop.f32.mrf.mxu0
      %v3938 = vadd.f32 %v2903, %v3937
      %v3939 = vpop.f32.mrf.mxu0
      %v3940 = vadd.f32 %v2899, %v3939
      %v3941 = vpop.f32.mrf.mxu0
      %v3942 = vadd.f32 %v2903, %v3941
      %3943 = vmatprep.mubr.bf16.mxu0 %v2860
      %3944 = vmatmul.mubr.bf16.gmra.mxu0 %v2859
      %v3945 = vpop.f32.mrf.mxu0
      %v3946 = vadd.f32 %v2899, %v3945
      %v3947 = vpop.f32.mrf.mxu0
      %v3948 = vadd.f32 %v2903, %v3947
      %v3949 = vpop.f32.mrf.mxu0
      %v3950 = vadd.f32 %v2899, %v3949
      %v3951 = vpop.f32.mrf.mxu0
      %v3952 = vadd.f32 %v2903, %v3951
      %3953 = vmatprep.mubr.bf16.mxu0 %v2862
      %3954 = vmatmul.mubr.bf16.gmra.mxu0 %v2861
      %v3955 = vpop.f32.mrf.mxu0
      %v3956 = vadd.f32 %v2899, %v3955
      %v3957 = vpop.f32.mrf.mxu0
      %v3958 = vadd.f32 %v2903, %v3957
      %v3959 = vpop.f32.mrf.mxu0
      %v3960 = vadd.f32 %v2899, %v3959
      %v3961 = vpop.f32.mrf.mxu0
      %v3962 = vadd.f32 %v2903, %v3961
      %3963 = vmatprep.mubr.bf16.mxu0 %v2864
      %3964 = vmatmul.mubr.bf16.gmra.mxu0 %v2863
      %v3965 = vpop.f32.mrf.mxu0
      %v3966 = vadd.f32 %v2899, %v3965
      %v3967 = vpop.f32.mrf.mxu0
      %v3968 = vadd.f32 %v2903, %v3967
      %v3969 = vpop.f32.mrf.mxu0
      %v3970 = vadd.f32 %v2899, %v3969
      %v3971 = vpop.f32.mrf.mxu0
      %v3972 = vadd.f32 %v2903, %v3971
      %3973 = vmatprep.mubr.bf16.mxu0 %v2866
      %3974 = vmatmul.mubr.bf16.gmra.mxu0 %v2865
      %v3975 = vpop.f32.mrf.mxu0
      %v3976 = vadd.f32 %v2899, %v3975
      %v3977 = vpop.f32.mrf.mxu0
      %v3978 = vadd.f32 %v2903, %v3977
      %v3979 = vpop.f32.mrf.mxu0
      %v3980 = vadd.f32 %v2899, %v3979
      %v3981 = vpop.f32.mrf.mxu0
      %v3982 = vadd.f32 %v2903, %v3981
      %3983 = vmatprep.mubr.bf16.mxu0 %v2868
      %3984 = vmatmul.mubr.bf16.gmra.mxu0 %v2867
      %v3985 = vpop.f32.mrf.mxu0
      %v3986 = vadd.f32 %v2899, %v3985
      %v3987 = vpop.f32.mrf.mxu0
      %v3988 = vadd.f32 %v2903, %v3987
      %v3989 = vpop.f32.mrf.mxu0
      %v3990 = vadd.f32 %v2899, %v3989
      %v3991 = vpop.f32.mrf.mxu0
      %v3992 = vadd.f32 %v2903, %v3991
      %3993 = vmatprep.mubr.bf16.mxu0 %v2870
      %3994 = vmatmul.mubr.bf16.gmra.mxu0 %v2869
      %v3995 = vpop.f32.mrf.mxu0
      %v3996 = vadd.f32 %v2899, %v3995
      %v3997 = vpop.f32.mrf.mxu0
      %v3998 = vadd.f32 %v2903, %v3997
      %v3999 = vpop.f32.mrf.mxu0
      %v4000 = vadd.f32 %v2899, %v3999
      %v4001 = vpop.f32.mrf.mxu0
      %v4002 = vadd.f32 %v2903, %v4001
      %4003 = vdwg.mxu0
      %v4004 = vmax.f32 %v3587, 0.0
      %v4005 = vmax.f32 %v3589, 0.0
      %v4006 = vmax.f32 %v3700, 0.0
      %v4007 = vmax.f32 %v3702, 0.0
      %v4008 = vmax.f32 %v3591, 0.0
      %v4009 = vmax.f32 %v3593, 0.0
      %v4010 = vmax.f32 %v3704, 0.0
      %v4011 = vmax.f32 %v3706, 0.0
      %v4012 = vmax.f32 %v3597, 0.0
      %v4013 = vmax.f32 %v3599, 0.0
      %v4014 = vmax.f32 %v3710, 0.0
      %v4015 = vmax.f32 %v3712, 0.0
      %v4016 = vmax.f32 %v3601, 0.0
      %v4017 = vmax.f32 %v3603, 0.0
      %v4018 = vmax.f32 %v3714, 0.0
      %v4019 = vmax.f32 %v3716, 0.0
      %v4020 = vmax.f32 %v3607, 0.0
      %v4021 = vmax.f32 %v3609, 0.0
      %v4022 = vmax.f32 %v3720, 0.0
      %v4023 = vmax.f32 %v3722, 0.0
      %v4024 = vmax.f32 %v3611, 0.0
      %v4025 = vmax.f32 %v3613, 0.0
      %v4026 = vmax.f32 %v3724, 0.0
      %v4027 = vmax.f32 %v3726, 0.0
      %v4028 = vmax.f32 %v3617, 0.0
      %v4029 = vmax.f32 %v3619, 0.0
      %v4030 = vmax.f32 %v3730, 0.0
      %v4031 = vmax.f32 %v3732, 0.0
      %v4032 = vmax.f32 %v3621, 0.0
      %v4033 = vmax.f32 %v3623, 0.0
      %v4034 = vmax.f32 %v3734, 0.0
      %v4035 = vmax.f32 %v3736, 0.0
      %v4036 = vmax.f32 %v3627, 0.0
      %v4037 = vmax.f32 %v3629, 0.0
      %v4038 = vmax.f32 %v3740, 0.0
      %v4039 = vmax.f32 %v3742, 0.0
      %v4040 = vmax.f32 %v3631, 0.0
      %v4041 = vmax.f32 %v3633, 0.0
      %v4042 = vmax.f32 %v3744, 0.0
      %v4043 = vmax.f32 %v3746, 0.0
      %v4044 = vmax.f32 %v3637, 0.0
      %v4045 = vmax.f32 %v3639, 0.0
      %v4046 = vmax.f32 %v3750, 0.0
      %v4047 = vmax.f32 %v3752, 0.0
      %v4048 = vmax.f32 %v3641, 0.0
      %v4049 = vmax.f32 %v3643, 0.0
      %v4050 = vmax.f32 %v3754, 0.0
      %v4051 = vmax.f32 %v3756, 0.0
      %v4052 = vmax.f32 %v3647, 0.0
      %v4053 = vmax.f32 %v3649, 0.0
      %v4054 = vmax.f32 %v3760, 0.0
      %v4055 = vmax.f32 %v3762, 0.0
      %v4056 = vmax.f32 %v3651, 0.0
      %v4057 = vmax.f32 %v3653, 0.0
      %v4058 = vmax.f32 %v3764, 0.0
      %v4059 = vmax.f32 %v3766, 0.0
      %v4060 = vmax.f32 %v3657, 0.0
      %v4061 = vmax.f32 %v3659, 0.0
      %v4062 = vmax.f32 %v3770, 0.0
      %v4063 = vmax.f32 %v3772, 0.0
      %v4064 = vmax.f32 %v3661, 0.0
      %v4065 = vmax.f32 %v3663, 0.0
      %v4066 = vmax.f32 %v3774, 0.0
      %v4067 = vmax.f32 %v3776, 0.0
      %v4068 = vpack.c.bf16 %v4008, %v4004
      %v4069 = vpack.c.bf16 %v4009, %v4005
      %v4070 = vpack.c.bf16 %v4010, %v4006
      %v4071 = vpack.c.bf16 %v4011, %v4007
      %v4072 = vpack.c.bf16 %v4016, %v4012
      %v4073 = vpack.c.bf16 %v4017, %v4013
      %v4074 = vpack.c.bf16 %v4018, %v4014
      %v4075 = vpack.c.bf16 %v4019, %v4015
      %v4076 = vpack.c.bf16 %v4024, %v4020
      %v4077 = vpack.c.bf16 %v4025, %v4021
      %v4078 = vpack.c.bf16 %v4026, %v4022
      %v4079 = vpack.c.bf16 %v4027, %v4023
      %v4080 = vpack.c.bf16 %v4032, %v4028
      %v4081 = vpack.c.bf16 %v4033, %v4029
      %v4082 = vpack.c.bf16 %v4034, %v4030
      %v4083 = vpack.c.bf16 %v4035, %v4031
      %v4084 = vpack.c.bf16 %v4040, %v4036
      %v4085 = vpack.c.bf16 %v4041, %v4037
      %v4086 = vpack.c.bf16 %v4042, %v4038
      %v4087 = vpack.c.bf16 %v4043, %v4039
      %v4088 = vpack.c.bf16 %v4048, %v4044
      %v4089 = vpack.c.bf16 %v4049, %v4045
      %v4090 = vpack.c.bf16 %v4050, %v4046
      %v4091 = vpack.c.bf16 %v4051, %v4047
      %v4092 = vpack.c.bf16 %v4056, %v4052
      %v4093 = vpack.c.bf16 %v4057, %v4053
      %v4094 = vpack.c.bf16 %v4058, %v4054
      %v4095 = vpack.c.bf16 %v4059, %v4055
      %v4096 = vpack.c.bf16 %v4064, %v4060
      %v4097 = vpack.c.bf16 %v4065, %v4061
      %v4098 = vpack.c.bf16 %v4066, %v4062
      %v4099 = vpack.c.bf16 %v4067, %v4063
      %v4101 = vlaneseq
      %v4102 = vshrl.u32 %v4101, 7
      %v4103 = vsub.s32 0, %v4102
      %v4104 = vrot.slane %v2854, %v4103
      %v4105 = vlaneseq
      %v4106 = vshrl.u32 %v4105, 7
      %v4107 = vsub.s32 1, %v4106
      %v4108 = vrot.slane %v2854, %v4107
      %v4109 = vlaneseq
      %v4110 = vshrl.u32 %v4109, 7
      %v4111 = vsub.s32 2, %v4110
      %v4112 = vrot.slane %v2854, %v4111
      %v4113 = vlaneseq
      %v4114 = vshrl.u32 %v4113, 7
      %v4115 = vsub.s32 3, %v4114
      %v4116 = vrot.slane %v2854, %v4115
      %v4249 = vunpack.c.l.b16 %v2726
      %v4250 = vunpack.c.h.b16 %v2726
      %v4251 = vunpack.c.l.b16 %v2727
      %v4252 = vunpack.c.h.b16 %v2727
      %v4253 = vunpack.c.l.b16 %v2728
      %v4254 = vunpack.c.h.b16 %v2728
      %v4255 = vunpack.c.l.b16 %v2729
      %v4256 = vunpack.c.h.b16 %v2729
      %v4257 = vunpack.c.l.b16 %v2730
      %v4258 = vunpack.c.h.b16 %v2730
      %v4259 = vunpack.c.l.b16 %v2731
      %v4260 = vunpack.c.h.b16 %v2731
      %v4261 = vunpack.c.l.b16 %v2732
      %v4262 = vunpack.c.h.b16 %v2732
      %v4263 = vunpack.c.l.b16 %v2733
      %v4264 = vunpack.c.h.b16 %v2733
      %v4265 = vunpack.c.l.b16 %v2734
      %v4266 = vunpack.c.h.b16 %v2734
      %v4267 = vunpack.c.l.b16 %v2735
      %v4268 = vunpack.c.h.b16 %v2735
      %v4269 = vunpack.c.l.b16 %v2736
      %v4270 = vunpack.c.h.b16 %v2736
      %v4271 = vunpack.c.l.b16 %v2737
      %v4272 = vunpack.c.h.b16 %v2737
      %v4273 = vunpack.c.l.b16 %v2738
      %v4274 = vunpack.c.h.b16 %v2738
      %v4275 = vunpack.c.l.b16 %v2739
      %v4276 = vunpack.c.h.b16 %v2739
      %v4277 = vunpack.c.l.b16 %v2740
      %v4278 = vunpack.c.h.b16 %v2740
      %v4279 = vunpack.c.l.b16 %v2741
      %v4280 = vunpack.c.h.b16 %v2741
      %v4281 = vunpack.c.l.b16 %v2742
      %v4282 = vunpack.c.h.b16 %v2742
      %v4283 = vunpack.c.l.b16 %v2743
      %v4284 = vunpack.c.h.b16 %v2743
      %v4285 = vunpack.c.l.b16 %v2744
      %v4286 = vunpack.c.h.b16 %v2744
      %v4287 = vunpack.c.l.b16 %v2745
      %v4288 = vunpack.c.h.b16 %v2745
      %v4289 = vunpack.c.l.b16 %v2746
      %v4290 = vunpack.c.h.b16 %v2746
      %v4291 = vunpack.c.l.b16 %v2747
      %v4292 = vunpack.c.h.b16 %v2747
      %v4293 = vunpack.c.l.b16 %v2748
      %v4294 = vunpack.c.h.b16 %v2748
      %v4295 = vunpack.c.l.b16 %v2749
      %v4296 = vunpack.c.h.b16 %v2749
      %v4297 = vunpack.c.l.b16 %v2750
      %v4298 = vunpack.c.h.b16 %v2750
      %v4299 = vunpack.c.l.b16 %v2751
      %v4300 = vunpack.c.h.b16 %v2751
      %v4301 = vunpack.c.l.b16 %v2752
      %v4302 = vunpack.c.h.b16 %v2752
      %v4303 = vunpack.c.l.b16 %v2753
      %v4304 = vunpack.c.h.b16 %v2753
      %v4305 = vunpack.c.l.b16 %v2754
      %v4306 = vunpack.c.h.b16 %v2754
      %v4307 = vunpack.c.l.b16 %v2755
      %v4308 = vunpack.c.h.b16 %v2755
      %v4309 = vunpack.c.l.b16 %v2756
      %v4310 = vunpack.c.h.b16 %v2756
      %v4311 = vunpack.c.l.b16 %v2757
      %v4312 = vunpack.c.h.b16 %v2757
      %v4313 = vunpack.c.l.b16 %v2758
      %v4314 = vunpack.c.h.b16 %v2758
      %v4315 = vunpack.c.l.b16 %v2759
      %v4316 = vunpack.c.h.b16 %v2759
      %v4317 = vunpack.c.l.b16 %v2760
      %v4318 = vunpack.c.h.b16 %v2760
      %v4319 = vunpack.c.l.b16 %v2761
      %v4320 = vunpack.c.h.b16 %v2761
      %v4321 = vunpack.c.l.b16 %v2762
      %v4322 = vunpack.c.h.b16 %v2762
      %v4323 = vunpack.c.l.b16 %v2763
      %v4324 = vunpack.c.h.b16 %v2763
      %v4325 = vunpack.c.l.b16 %v2764
      %v4326 = vunpack.c.h.b16 %v2764
      %v4327 = vunpack.c.l.b16 %v2765
      %v4328 = vunpack.c.h.b16 %v2765
      %v4329 = vunpack.c.l.b16 %v2766
      %v4330 = vunpack.c.h.b16 %v2766
      %v4331 = vunpack.c.l.b16 %v2767
      %v4332 = vunpack.c.h.b16 %v2767
      %v4333 = vunpack.c.l.b16 %v2768
      %v4334 = vunpack.c.h.b16 %v2768
      %v4335 = vunpack.c.l.b16 %v2769
      %v4336 = vunpack.c.h.b16 %v2769
      %v4337 = vunpack.c.l.b16 %v2770
      %v4338 = vunpack.c.h.b16 %v2770
      %v4339 = vunpack.c.l.b16 %v2771
      %v4340 = vunpack.c.h.b16 %v2771
      %v4341 = vunpack.c.l.b16 %v2772
      %v4342 = vunpack.c.h.b16 %v2772
      %v4343 = vunpack.c.l.b16 %v2773
      %v4344 = vunpack.c.h.b16 %v2773
      %v4345 = vunpack.c.l.b16 %v2774
      %v4346 = vunpack.c.h.b16 %v2774
      %v4347 = vunpack.c.l.b16 %v2775
      %v4348 = vunpack.c.h.b16 %v2775
      %v4349 = vunpack.c.l.b16 %v2776
      %v4350 = vunpack.c.h.b16 %v2776
      %v4351 = vunpack.c.l.b16 %v2777
      %v4352 = vunpack.c.h.b16 %v2777
      %v4353 = vunpack.c.l.b16 %v2778
      %v4354 = vunpack.c.h.b16 %v2778
      %v4355 = vunpack.c.l.b16 %v2779
      %v4356 = vunpack.c.h.b16 %v2779
      %v4357 = vunpack.c.l.b16 %v2780
      %v4358 = vunpack.c.h.b16 %v2780
      %v4359 = vunpack.c.l.b16 %v2781
      %v4360 = vunpack.c.h.b16 %v2781
      %v4361 = vunpack.c.l.b16 %v2782
      %v4362 = vunpack.c.h.b16 %v2782
      %v4363 = vunpack.c.l.b16 %v2783
      %v4364 = vunpack.c.h.b16 %v2783
      %v4365 = vunpack.c.l.b16 %v2784
      %v4366 = vunpack.c.h.b16 %v2784
      %v4367 = vunpack.c.l.b16 %v2785
      %v4368 = vunpack.c.h.b16 %v2785
      %v4369 = vunpack.c.l.b16 %v2786
      %v4370 = vunpack.c.h.b16 %v2786
      %v4371 = vunpack.c.l.b16 %v2787
      %v4372 = vunpack.c.h.b16 %v2787
      %v4373 = vunpack.c.l.b16 %v2788
      %v4374 = vunpack.c.h.b16 %v2788
      %v4375 = vunpack.c.l.b16 %v2789
      %v4376 = vunpack.c.h.b16 %v2789
      %v4377 = vunpack.c.l.b16 %v2790
      %v4378 = vunpack.c.h.b16 %v2790
      %v4379 = vunpack.c.l.b16 %v2791
      %v4380 = vunpack.c.h.b16 %v2791
      %v4381 = vunpack.c.l.b16 %v2792
      %v4382 = vunpack.c.h.b16 %v2792
      %v4383 = vunpack.c.l.b16 %v2793
      %v4384 = vunpack.c.h.b16 %v2793
      %v4385 = vunpack.c.l.b16 %v2794
      %v4386 = vunpack.c.h.b16 %v2794
      %v4387 = vunpack.c.l.b16 %v2795
      %v4388 = vunpack.c.h.b16 %v2795
      %v4389 = vunpack.c.l.b16 %v2796
      %v4390 = vunpack.c.h.b16 %v2796
      %v4391 = vunpack.c.l.b16 %v2797
      %v4392 = vunpack.c.h.b16 %v2797
      %v4393 = vunpack.c.l.b16 %v2798
      %v4394 = vunpack.c.h.b16 %v2798
      %v4395 = vunpack.c.l.b16 %v2799
      %v4396 = vunpack.c.h.b16 %v2799
      %v4397 = vunpack.c.l.b16 %v2800
      %v4398 = vunpack.c.h.b16 %v2800
      %v4399 = vunpack.c.l.b16 %v2801
      %v4400 = vunpack.c.h.b16 %v2801
      %v4401 = vunpack.c.l.b16 %v2802
      %v4402 = vunpack.c.h.b16 %v2802
      %v4403 = vunpack.c.l.b16 %v2803
      %v4404 = vunpack.c.h.b16 %v2803
      %v4405 = vunpack.c.l.b16 %v2804
      %v4406 = vunpack.c.h.b16 %v2804
      %v4407 = vunpack.c.l.b16 %v2805
      %v4408 = vunpack.c.h.b16 %v2805
      %v4409 = vunpack.c.l.b16 %v2806
      %v4410 = vunpack.c.h.b16 %v2806
      %v4411 = vunpack.c.l.b16 %v2807
      %v4412 = vunpack.c.h.b16 %v2807
      %v4413 = vunpack.c.l.b16 %v2808
      %v4414 = vunpack.c.h.b16 %v2808
      %v4415 = vunpack.c.l.b16 %v2809
      %v4416 = vunpack.c.h.b16 %v2809
      %v4417 = vunpack.c.l.b16 %v2810
      %v4418 = vunpack.c.h.b16 %v2810
      %v4419 = vunpack.c.l.b16 %v2811
      %v4420 = vunpack.c.h.b16 %v2811
      %v4421 = vunpack.c.l.b16 %v2812
      %v4422 = vunpack.c.h.b16 %v2812
      %v4423 = vunpack.c.l.b16 %v2813
      %v4424 = vunpack.c.h.b16 %v2813
      %v4425 = vunpack.c.l.b16 %v2814
      %v4426 = vunpack.c.h.b16 %v2814
      %v4427 = vunpack.c.l.b16 %v2815
      %v4428 = vunpack.c.h.b16 %v2815
      %v4429 = vunpack.c.l.b16 %v2816
      %v4430 = vunpack.c.h.b16 %v2816
      %v4431 = vunpack.c.l.b16 %v2817
      %v4432 = vunpack.c.h.b16 %v2817
      %v4433 = vunpack.c.l.b16 %v2818
      %v4434 = vunpack.c.h.b16 %v2818
      %v4435 = vunpack.c.l.b16 %v2819
      %v4436 = vunpack.c.h.b16 %v2819
      %v4437 = vunpack.c.l.b16 %v2820
      %v4438 = vunpack.c.h.b16 %v2820
      %v4439 = vunpack.c.l.b16 %v2821
      %v4440 = vunpack.c.h.b16 %v2821
      %v4441 = vunpack.c.l.b16 %v2822
      %v4442 = vunpack.c.h.b16 %v2822
      %v4443 = vunpack.c.l.b16 %v2823
      %v4444 = vunpack.c.h.b16 %v2823
      %v4445 = vunpack.c.l.b16 %v2824
      %v4446 = vunpack.c.h.b16 %v2824
      %v4447 = vunpack.c.l.b16 %v2825
      %v4448 = vunpack.c.h.b16 %v2825
      %v4449 = vunpack.c.l.b16 %v2826
      %v4450 = vunpack.c.h.b16 %v2826
      %v4451 = vunpack.c.l.b16 %v2827
      %v4452 = vunpack.c.h.b16 %v2827
      %v4453 = vunpack.c.l.b16 %v2828
      %v4454 = vunpack.c.h.b16 %v2828
      %v4455 = vunpack.c.l.b16 %v2829
      %v4456 = vunpack.c.h.b16 %v2829
      %v4457 = vunpack.c.l.b16 %v2830
      %v4458 = vunpack.c.h.b16 %v2830
      %v4459 = vunpack.c.l.b16 %v2831
      %v4460 = vunpack.c.h.b16 %v2831
      %v4461 = vunpack.c.l.b16 %v2832
      %v4462 = vunpack.c.h.b16 %v2832
      %v4463 = vunpack.c.l.b16 %v2833
      %v4464 = vunpack.c.h.b16 %v2833
      %v4465 = vunpack.c.l.b16 %v2834
      %v4466 = vunpack.c.h.b16 %v2834
      %v4467 = vunpack.c.l.b16 %v2835
      %v4468 = vunpack.c.h.b16 %v2835
      %v4469 = vunpack.c.l.b16 %v2836
      %v4470 = vunpack.c.h.b16 %v2836
      %v4471 = vunpack.c.l.b16 %v2837
      %v4472 = vunpack.c.h.b16 %v2837
      %v4473 = vunpack.c.l.b16 %v2838
      %v4474 = vunpack.c.h.b16 %v2838
      %v4475 = vunpack.c.l.b16 %v2839
      %v4476 = vunpack.c.h.b16 %v2839
      %v4477 = vunpack.c.l.b16 %v2840
      %v4478 = vunpack.c.h.b16 %v2840
      %v4479 = vunpack.c.l.b16 %v2841
      %v4480 = vunpack.c.h.b16 %v2841
      %v4481 = vunpack.c.l.b16 %v2842
      %v4482 = vunpack.c.h.b16 %v2842
      %v4483 = vunpack.c.l.b16 %v2843
      %v4484 = vunpack.c.h.b16 %v2843
      %v4485 = vunpack.c.l.b16 %v2844
      %v4486 = vunpack.c.h.b16 %v2844
      %v4487 = vunpack.c.l.b16 %v2845
      %v4488 = vunpack.c.h.b16 %v2845
      %v4489 = vunpack.c.l.b16 %v2846
      %v4490 = vunpack.c.h.b16 %v2846
      %v4491 = vunpack.c.l.b16 %v2847
      %v4492 = vunpack.c.h.b16 %v2847
      %v4493 = vunpack.c.l.b16 %v2848
      %v4494 = vunpack.c.h.b16 %v2848
      %v4495 = vunpack.c.l.b16 %v2849
      %v4496 = vunpack.c.h.b16 %v2849
      %v4497 = vunpack.c.l.b16 %v2850
      %v4498 = vunpack.c.h.b16 %v2850
      %v4499 = vunpack.c.l.b16 %v2851
      %v4500 = vunpack.c.h.b16 %v2851
      %v4501 = vunpack.c.l.b16 %v2852
      %v4502 = vunpack.c.h.b16 %v2852
      %v4503 = vunpack.c.l.b16 %v2853
      %v4504 = vunpack.c.h.b16 %v2853
      %v4505 = vpack.c.b16 %v4253, %v4249
      %v4506 = vpack.c.b16 %v4254, %v4250
      %v4507 = vpack.c.b16 %v4255, %v4251
      %v4508 = vpack.c.b16 %v4256, %v4252
      %v4509 = vpack.c.b16 %v4261, %v4257
      %v4510 = vpack.c.b16 %v4262, %v4258
      %v4511 = vpack.c.b16 %v4263, %v4259
      %v4512 = vpack.c.b16 %v4264, %v4260
      %v4513 = vpack.c.b16 %v4269, %v4265
      %v4514 = vpack.c.b16 %v4270, %v4266
      %v4515 = vpack.c.b16 %v4271, %v4267
      %v4516 = vpack.c.b16 %v4272, %v4268
      %v4517 = vpack.c.b16 %v4277, %v4273
      %v4518 = vpack.c.b16 %v4278, %v4274
      %v4519 = vpack.c.b16 %v4279, %v4275
      %v4520 = vpack.c.b16 %v4280, %v4276
      %v4521 = vpack.c.b16 %v4285, %v4281
      %v4522 = vpack.c.b16 %v4286, %v4282
      %v4523 = vpack.c.b16 %v4287, %v4283
      %v4524 = vpack.c.b16 %v4288, %v4284
      %v4525 = vpack.c.b16 %v4293, %v4289
      %v4526 = vpack.c.b16 %v4294, %v4290
      %v4527 = vpack.c.b16 %v4295, %v4291
      %v4528 = vpack.c.b16 %v4296, %v4292
      %v4529 = vpack.c.b16 %v4301, %v4297
      %v4530 = vpack.c.b16 %v4302, %v4298
      %v4531 = vpack.c.b16 %v4303, %v4299
      %v4532 = vpack.c.b16 %v4304, %v4300
      %v4533 = vpack.c.b16 %v4309, %v4305
      %v4534 = vpack.c.b16 %v4310, %v4306
      %v4535 = vpack.c.b16 %v4311, %v4307
      %v4536 = vpack.c.b16 %v4312, %v4308
      %v4537 = vpack.c.b16 %v4317, %v4313
      %v4538 = vpack.c.b16 %v4318, %v4314
      %v4539 = vpack.c.b16 %v4319, %v4315
      %v4540 = vpack.c.b16 %v4320, %v4316
      %v4541 = vpack.c.b16 %v4325, %v4321
      %v4542 = vpack.c.b16 %v4326, %v4322
      %v4543 = vpack.c.b16 %v4327, %v4323
      %v4544 = vpack.c.b16 %v4328, %v4324
      %v4545 = vpack.c.b16 %v4333, %v4329
      %v4546 = vpack.c.b16 %v4334, %v4330
      %v4547 = vpack.c.b16 %v4335, %v4331
      %v4548 = vpack.c.b16 %v4336, %v4332
      %v4549 = vpack.c.b16 %v4341, %v4337
      %v4550 = vpack.c.b16 %v4342, %v4338
      %v4551 = vpack.c.b16 %v4343, %v4339
      %v4552 = vpack.c.b16 %v4344, %v4340
      %v4553 = vpack.c.b16 %v4349, %v4345
      %v4554 = vpack.c.b16 %v4350, %v4346
      %v4555 = vpack.c.b16 %v4351, %v4347
      %v4556 = vpack.c.b16 %v4352, %v4348
      %v4557 = vpack.c.b16 %v4357, %v4353
      %v4558 = vpack.c.b16 %v4358, %v4354
      %v4559 = vpack.c.b16 %v4359, %v4355
      %v4560 = vpack.c.b16 %v4360, %v4356
      %v4561 = vpack.c.b16 %v4365, %v4361
      %v4562 = vpack.c.b16 %v4366, %v4362
      %v4563 = vpack.c.b16 %v4367, %v4363
      %v4564 = vpack.c.b16 %v4368, %v4364
      %v4565 = vpack.c.b16 %v4373, %v4369
      %v4566 = vpack.c.b16 %v4374, %v4370
      %v4567 = vpack.c.b16 %v4375, %v4371
      %v4568 = vpack.c.b16 %v4376, %v4372
      %v4569 = vpack.c.b16 %v4381, %v4377
      %v4570 = vpack.c.b16 %v4382, %v4378
      %v4571 = vpack.c.b16 %v4383, %v4379
      %v4572 = vpack.c.b16 %v4384, %v4380
      %v4573 = vpack.c.b16 %v4389, %v4385
      %v4574 = vpack.c.b16 %v4390, %v4386
      %v4575 = vpack.c.b16 %v4391, %v4387
      %v4576 = vpack.c.b16 %v4392, %v4388
      %v4577 = vpack.c.b16 %v4397, %v4393
      %v4578 = vpack.c.b16 %v4398, %v4394
      %v4579 = vpack.c.b16 %v4399, %v4395
      %v4580 = vpack.c.b16 %v4400, %v4396
      %v4581 = vpack.c.b16 %v4405, %v4401
      %v4582 = vpack.c.b16 %v4406, %v4402
      %v4583 = vpack.c.b16 %v4407, %v4403
      %v4584 = vpack.c.b16 %v4408, %v4404
      %v4585 = vpack.c.b16 %v4413, %v4409
      %v4586 = vpack.c.b16 %v4414, %v4410
      %v4587 = vpack.c.b16 %v4415, %v4411
      %v4588 = vpack.c.b16 %v4416, %v4412
      %v4589 = vpack.c.b16 %v4421, %v4417
      %v4590 = vpack.c.b16 %v4422, %v4418
      %v4591 = vpack.c.b16 %v4423, %v4419
      %v4592 = vpack.c.b16 %v4424, %v4420
      %v4593 = vpack.c.b16 %v4429, %v4425
      %v4594 = vpack.c.b16 %v4430, %v4426
      %v4595 = vpack.c.b16 %v4431, %v4427
      %v4596 = vpack.c.b16 %v4432, %v4428
      %v4597 = vpack.c.b16 %v4437, %v4433
      %v4598 = vpack.c.b16 %v4438, %v4434
      %v4599 = vpack.c.b16 %v4439, %v4435
      %v4600 = vpack.c.b16 %v4440, %v4436
      %v4601 = vpack.c.b16 %v4445, %v4441
      %v4602 = vpack.c.b16 %v4446, %v4442
      %v4603 = vpack.c.b16 %v4447, %v4443
      %v4604 = vpack.c.b16 %v4448, %v4444
      %v4605 = vpack.c.b16 %v4453, %v4449
      %v4606 = vpack.c.b16 %v4454, %v4450
      %v4607 = vpack.c.b16 %v4455, %v4451
      %v4608 = vpack.c.b16 %v4456, %v4452
      %v4609 = vpack.c.b16 %v4461, %v4457
      %v4610 = vpack.c.b16 %v4462, %v4458
      %v4611 = vpack.c.b16 %v4463, %v4459
      %v4612 = vpack.c.b16 %v4464, %v4460
      %v4613 = vpack.c.b16 %v4469, %v4465
      %v4614 = vpack.c.b16 %v4470, %v4466
      %v4615 = vpack.c.b16 %v4471, %v4467
      %v4616 = vpack.c.b16 %v4472, %v4468
      %v4617 = vpack.c.b16 %v4477, %v4473
      %v4618 = vpack.c.b16 %v4478, %v4474
      %v4619 = vpack.c.b16 %v4479, %v4475
      %v4620 = vpack.c.b16 %v4480, %v4476
      %v4621 = vpack.c.b16 %v4485, %v4481
      %v4622 = vpack.c.b16 %v4486, %v4482
      %v4623 = vpack.c.b16 %v4487, %v4483
      %v4624 = vpack.c.b16 %v4488, %v4484
      %v4625 = vpack.c.b16 %v4493, %v4489
      %v4626 = vpack.c.b16 %v4494, %v4490
      %v4627 = vpack.c.b16 %v4495, %v4491
      %v4628 = vpack.c.b16 %v4496, %v4492
      %v4629 = vpack.c.b16 %v4501, %v4497
      %v4630 = vpack.c.b16 %v4502, %v4498
      %v4631 = vpack.c.b16 %v4503, %v4499
      %v4632 = vpack.c.b16 %v4504, %v4500
      %4761 = vmatprep.subr.bf16.mxu0 %v4534
      %4762 = vmatpush1.bf16.msra.mxu0 %v4533
      %4763 = vmatprep.subr.bf16.mxu0 %v4530
      %4764 = vmatpush1.bf16.msra.mxu0 %v4529
      %4765 = vmatprep.subr.bf16.mxu0 %v4526
      %4766 = vmatpush1.bf16.msra.mxu0 %v4525
      %4767 = vmatprep.subr.bf16.mxu0 %v4522
      %4768 = vmatpush1.bf16.msra.mxu0 %v4521
      %4769 = vmatprep.subr.bf16.mxu0 %v4518
      %4770 = vmatpush1.bf16.msra.mxu0 %v4517
      %4771 = vmatprep.subr.bf16.mxu0 %v4514
      %4772 = vmatpush1.bf16.msra.mxu0 %v4513
      %4773 = vmatprep.subr.bf16.mxu0 %v4510
      %4774 = vmatpush1.bf16.msra.mxu0 %v4509
      %4775 = vmatprep.subr.bf16.mxu0 %v4506
      %4776 = vmatpush1.bf16.msra.mxu0 %v4505
      %4777 = vmatprep.subr.bf16.mxu0 %v4566
      %4778 = vmatpush2.bf16.msra.mxu0 %v4565
      %4779 = vmatprep.subr.bf16.mxu0 %v4562
      %4780 = vmatpush2.bf16.msra.mxu0 %v4561
      %4781 = vmatprep.subr.bf16.mxu0 %v4558
      %4782 = vmatpush2.bf16.msra.mxu0 %v4557
      %4783 = vmatprep.subr.bf16.mxu0 %v4554
      %4784 = vmatpush2.bf16.msra.mxu0 %v4553
      %4785 = vmatprep.subr.bf16.mxu0 %v4550
      %4786 = vmatpush2.bf16.msra.mxu0 %v4549
      %4787 = vmatprep.subr.bf16.mxu0 %v4546
      %4788 = vmatpush2.bf16.msra.mxu0 %v4545
      %4789 = vmatprep.subr.bf16.mxu0 %v4542
      %4790 = vmatpush2.bf16.msra.mxu0 %v4541
      %4791 = vmatprep.subr.bf16.mxu0 %v4538
      %4792 = vmatpush2.bf16.msra.mxu0 %v4537
      %4793 = vmatprep.mubr.bf16.mxu0 %v4069
      %4794 = vmatmul.mubr.bf16.gmra.mxu0 %v4068
      %v4795 = vpop.f32.mrf.mxu0
      %v4796 = vadd.f32 %v4104, %v4795
      %v4797 = vpop.f32.mrf.mxu0
      %v4798 = vadd.f32 %v4108, %v4797
      %v4799 = vpop.f32.mrf.mxu0
      %v4800 = vadd.f32 %v4104, %v4799
      %v4801 = vpop.f32.mrf.mxu0
      %v4802 = vadd.f32 %v4108, %v4801
      %4803 = vmatprep.mubr.bf16.mxu0 %v4073
      %4804 = vmatmul.mubr.bf16.gmra.mxu0 %v4072
      %v4805 = vpop.f32.mrf.mxu0
      %v4806 = vadd.f32 %v4104, %v4805
      %v4807 = vpop.f32.mrf.mxu0
      %v4808 = vadd.f32 %v4108, %v4807
      %v4809 = vpop.f32.mrf.mxu0
      %v4810 = vadd.f32 %v4104, %v4809
      %v4811 = vpop.f32.mrf.mxu0
      %v4812 = vadd.f32 %v4108, %v4811
      %4813 = vmatprep.mubr.bf16.mxu0 %v4077
      %4814 = vmatmul.mubr.bf16.gmra.mxu0 %v4076
      %v4815 = vpop.f32.mrf.mxu0
      %v4816 = vadd.f32 %v4104, %v4815
      %v4817 = vpop.f32.mrf.mxu0
      %v4818 = vadd.f32 %v4108, %v4817
      %v4819 = vpop.f32.mrf.mxu0
      %v4820 = vadd.f32 %v4104, %v4819
      %v4821 = vpop.f32.mrf.mxu0
      %v4822 = vadd.f32 %v4108, %v4821
      %4823 = vmatprep.mubr.bf16.mxu0 %v4081
      %4824 = vmatmul.mubr.bf16.gmra.mxu0 %v4080
      %v4825 = vpop.f32.mrf.mxu0
      %v4826 = vadd.f32 %v4104, %v4825
      %v4827 = vpop.f32.mrf.mxu0
      %v4828 = vadd.f32 %v4108, %v4827
      %v4829 = vpop.f32.mrf.mxu0
      %v4830 = vadd.f32 %v4104, %v4829
      %v4831 = vpop.f32.mrf.mxu0
      %v4832 = vadd.f32 %v4108, %v4831
      %4833 = vmatprep.mubr.bf16.mxu0 %v4085
      %4834 = vmatmul.mubr.bf16.gmra.mxu0 %v4084
      %v4835 = vpop.f32.mrf.mxu0
      %v4836 = vadd.f32 %v4104, %v4835
      %v4837 = vpop.f32.mrf.mxu0
      %v4838 = vadd.f32 %v4108, %v4837
      %v4839 = vpop.f32.mrf.mxu0
      %v4840 = vadd.f32 %v4104, %v4839
      %v4841 = vpop.f32.mrf.mxu0
      %v4842 = vadd.f32 %v4108, %v4841
      %4843 = vmatprep.mubr.bf16.mxu0 %v4089
      %4844 = vmatmul.mubr.bf16.gmra.mxu0 %v4088
      %v4845 = vpop.f32.mrf.mxu0
      %v4846 = vadd.f32 %v4104, %v4845
      %v4847 = vpop.f32.mrf.mxu0
      %v4848 = vadd.f32 %v4108, %v4847
      %v4849 = vpop.f32.mrf.mxu0
      %v4850 = vadd.f32 %v4104, %v4849
      %v4851 = vpop.f32.mrf.mxu0
      %v4852 = vadd.f32 %v4108, %v4851
      %4853 = vmatprep.mubr.bf16.mxu0 %v4093
      %4854 = vmatmul.mubr.bf16.gmra.mxu0 %v4092
      %v4855 = vpop.f32.mrf.mxu0
      %v4856 = vadd.f32 %v4104, %v4855
      %v4857 = vpop.f32.mrf.mxu0
      %v4858 = vadd.f32 %v4108, %v4857
      %v4859 = vpop.f32.mrf.mxu0
      %v4860 = vadd.f32 %v4104, %v4859
      %v4861 = vpop.f32.mrf.mxu0
      %v4862 = vadd.f32 %v4108, %v4861
      %4863 = vmatprep.mubr.bf16.mxu0 %v4097
      %4864 = vmatmul.mubr.bf16.gmra.mxu0 %v4096
      %v4865 = vpop.f32.mrf.mxu0
      %v4866 = vadd.f32 %v4104, %v4865
      %v4867 = vpop.f32.mrf.mxu0
      %v4868 = vadd.f32 %v4108, %v4867
      %v4869 = vpop.f32.mrf.mxu0
      %v4870 = vadd.f32 %v4104, %v4869
      %v4871 = vpop.f32.mrf.mxu0
      %v4872 = vadd.f32 %v4108, %v4871
      %4873 = vdwg.mxu0
      %4874 = vmatprep.subr.bf16.mxu0 %v4598
      %4875 = vmatpush1.bf16.msra.mxu0 %v4597
      %4876 = vmatprep.subr.bf16.mxu0 %v4594
      %4877 = vmatpush1.bf16.msra.mxu0 %v4593
      %4878 = vmatprep.subr.bf16.mxu0 %v4590
      %4879 = vmatpush1.bf16.msra.mxu0 %v4589
      %4880 = vmatprep.subr.bf16.mxu0 %v4586
      %4881 = vmatpush1.bf16.msra.mxu0 %v4585
      %4882 = vmatprep.subr.bf16.mxu0 %v4582
      %4883 = vmatpush1.bf16.msra.mxu0 %v4581
      %4884 = vmatprep.subr.bf16.mxu0 %v4578
      %4885 = vmatpush1.bf16.msra.mxu0 %v4577
      %4886 = vmatprep.subr.bf16.mxu0 %v4574
      %4887 = vmatpush1.bf16.msra.mxu0 %v4573
      %4888 = vmatprep.subr.bf16.mxu0 %v4570
      %4889 = vmatpush1.bf16.msra.mxu0 %v4569
      %4890 = vmatprep.subr.bf16.mxu0 %v4630
      %4891 = vmatpush2.bf16.msra.mxu0 %v4629
      %4892 = vmatprep.subr.bf16.mxu0 %v4626
      %4893 = vmatpush2.bf16.msra.mxu0 %v4625
      %4894 = vmatprep.subr.bf16.mxu0 %v4622
      %4895 = vmatpush2.bf16.msra.mxu0 %v4621
      %4896 = vmatprep.subr.bf16.mxu0 %v4618
      %4897 = vmatpush2.bf16.msra.mxu0 %v4617
      %4898 = vmatprep.subr.bf16.mxu0 %v4614
      %4899 = vmatpush2.bf16.msra.mxu0 %v4613
      %4900 = vmatprep.subr.bf16.mxu0 %v4610
      %4901 = vmatpush2.bf16.msra.mxu0 %v4609
      %4902 = vmatprep.subr.bf16.mxu0 %v4606
      %4903 = vmatpush2.bf16.msra.mxu0 %v4605
      %4904 = vmatprep.subr.bf16.mxu0 %v4602
      %4905 = vmatpush2.bf16.msra.mxu0 %v4601
      %4906 = vmatprep.mubr.bf16.mxu0 %v4071
      %4907 = vmatmul.mubr.bf16.gmra.mxu0 %v4070
      %v4908 = vpop.f32.mrf.mxu0
      %v4909 = vadd.f32 %v4796, %v4908
      %v4910 = vpop.f32.mrf.mxu0
      %v4911 = vadd.f32 %v4798, %v4910
      %v4912 = vpop.f32.mrf.mxu0
      %v4913 = vadd.f32 %v4800, %v4912
      %v4914 = vpop.f32.mrf.mxu0
      %v4915 = vadd.f32 %v4802, %v4914
      %4916 = vmatprep.mubr.bf16.mxu0 %v4075
      %4917 = vmatmul.mubr.bf16.gmra.mxu0 %v4074
      %v4918 = vpop.f32.mrf.mxu0
      %v4919 = vadd.f32 %v4806, %v4918
      %v4920 = vpop.f32.mrf.mxu0
      %v4921 = vadd.f32 %v4808, %v4920
      %v4922 = vpop.f32.mrf.mxu0
      %v4923 = vadd.f32 %v4810, %v4922
      %v4924 = vpop.f32.mrf.mxu0
      %v4925 = vadd.f32 %v4812, %v4924
      %4926 = vmatprep.mubr.bf16.mxu0 %v4079
      %4927 = vmatmul.mubr.bf16.gmra.mxu0 %v4078
      %v4928 = vpop.f32.mrf.mxu0
      %v4929 = vadd.f32 %v4816, %v4928
      %v4930 = vpop.f32.mrf.mxu0
      %v4931 = vadd.f32 %v4818, %v4930
      %v4932 = vpop.f32.mrf.mxu0
      %v4933 = vadd.f32 %v4820, %v4932
      %v4934 = vpop.f32.mrf.mxu0
      %v4935 = vadd.f32 %v4822, %v4934
      %4936 = vmatprep.mubr.bf16.mxu0 %v4083
      %4937 = vmatmul.mubr.bf16.gmra.mxu0 %v4082
      %v4938 = vpop.f32.mrf.mxu0
      %v4939 = vadd.f32 %v4826, %v4938
      %v4940 = vpop.f32.mrf.mxu0
      %v4941 = vadd.f32 %v4828, %v4940
      %v4942 = vpop.f32.mrf.mxu0
      %v4943 = vadd.f32 %v4830, %v4942
      %v4944 = vpop.f32.mrf.mxu0
      %v4945 = vadd.f32 %v4832, %v4944
      %4946 = vmatprep.mubr.bf16.mxu0 %v4087
      %4947 = vmatmul.mubr.bf16.gmra.mxu0 %v4086
      %v4948 = vpop.f32.mrf.mxu0
      %v4949 = vadd.f32 %v4836, %v4948
      %v4950 = vpop.f32.mrf.mxu0
      %v4951 = vadd.f32 %v4838, %v4950
      %v4952 = vpop.f32.mrf.mxu0
      %v4953 = vadd.f32 %v4840, %v4952
      %v4954 = vpop.f32.mrf.mxu0
      %v4955 = vadd.f32 %v4842, %v4954
      %4956 = vmatprep.mubr.bf16.mxu0 %v4091
      %4957 = vmatmul.mubr.bf16.gmra.mxu0 %v4090
      %v4958 = vpop.f32.mrf.mxu0
      %v4959 = vadd.f32 %v4846, %v4958
      %v4960 = vpop.f32.mrf.mxu0
      %v4961 = vadd.f32 %v4848, %v4960
      %v4962 = vpop.f32.mrf.mxu0
      %v4963 = vadd.f32 %v4850, %v4962
      %v4964 = vpop.f32.mrf.mxu0
      %v4965 = vadd.f32 %v4852, %v4964
      %4966 = vmatprep.mubr.bf16.mxu0 %v4095
      %4967 = vmatmul.mubr.bf16.gmra.mxu0 %v4094
      %v4968 = vpop.f32.mrf.mxu0
      %v4969 = vadd.f32 %v4856, %v4968
      %v4970 = vpop.f32.mrf.mxu0
      %v4971 = vadd.f32 %v4858, %v4970
      %v4972 = vpop.f32.mrf.mxu0
      %v4973 = vadd.f32 %v4860, %v4972
      %v4974 = vpop.f32.mrf.mxu0
      %v4975 = vadd.f32 %v4862, %v4974
      %4976 = vmatprep.mubr.bf16.mxu0 %v4099
      %4977 = vmatmul.mubr.bf16.gmra.mxu0 %v4098
      %v4978 = vpop.f32.mrf.mxu0
      %v4979 = vadd.f32 %v4866, %v4978
      %v4980 = vpop.f32.mrf.mxu0
      %v4981 = vadd.f32 %v4868, %v4980
      %v4982 = vpop.f32.mrf.mxu0
      %v4983 = vadd.f32 %v4870, %v4982
      %v4984 = vpop.f32.mrf.mxu0
      %v4985 = vadd.f32 %v4872, %v4984
      %4986 = vdwg.mxu0
      %4987 = vmatprep.subr.bf16.mxu0 %v4536
      %4988 = vmatpush1.bf16.msra.mxu0 %v4535
      %4989 = vmatprep.subr.bf16.mxu0 %v4532
      %4990 = vmatpush1.bf16.msra.mxu0 %v4531
      %4991 = vmatprep.subr.bf16.mxu0 %v4528
      %4992 = vmatpush1.bf16.msra.mxu0 %v4527
      %4993 = vmatprep.subr.bf16.mxu0 %v4524
      %4994 = vmatpush1.bf16.msra.mxu0 %v4523
      %4995 = vmatprep.subr.bf16.mxu0 %v4520
      %4996 = vmatpush1.bf16.msra.mxu0 %v4519
      %4997 = vmatprep.subr.bf16.mxu0 %v4516
      %4998 = vmatpush1.bf16.msra.mxu0 %v4515
      %4999 = vmatprep.subr.bf16.mxu0 %v4512
      %5000 = vmatpush1.bf16.msra.mxu0 %v4511
      %5001 = vmatprep.subr.bf16.mxu0 %v4508
      %5002 = vmatpush1.bf16.msra.mxu0 %v4507
      %5003 = vmatprep.subr.bf16.mxu0 %v4568
      %5004 = vmatpush2.bf16.msra.mxu0 %v4567
      %5005 = vmatprep.subr.bf16.mxu0 %v4564
      %5006 = vmatpush2.bf16.msra.mxu0 %v4563
      %5007 = vmatprep.subr.bf16.mxu0 %v4560
      %5008 = vmatpush2.bf16.msra.mxu0 %v4559
      %5009 = vmatprep.subr.bf16.mxu0 %v4556
      %5010 = vmatpush2.bf16.msra.mxu0 %v4555
      %5011 = vmatprep.subr.bf16.mxu0 %v4552
      %5012 = vmatpush2.bf16.msra.mxu0 %v4551
      %5013 = vmatprep.subr.bf16.mxu0 %v4548
      %5014 = vmatpush2.bf16.msra.mxu0 %v4547
      %5015 = vmatprep.subr.bf16.mxu0 %v4544
      %5016 = vmatpush2.bf16.msra.mxu0 %v4543
      %5017 = vmatprep.subr.bf16.mxu0 %v4540
      %5018 = vmatpush2.bf16.msra.mxu0 %v4539
      %5019 = vmatprep.mubr.bf16.mxu0 %v4069
      %5020 = vmatmul.mubr.bf16.gmra.mxu0 %v4068
      %v5021 = vpop.f32.mrf.mxu0
      %v5022 = vadd.f32 %v4112, %v5021
      %v5023 = vpop.f32.mrf.mxu0
      %v5024 = vadd.f32 %v4116, %v5023
      %v5025 = vpop.f32.mrf.mxu0
      %v5026 = vadd.f32 %v4112, %v5025
      %v5027 = vpop.f32.mrf.mxu0
      %v5028 = vadd.f32 %v4116, %v5027
      %5029 = vmatprep.mubr.bf16.mxu0 %v4073
      %5030 = vmatmul.mubr.bf16.gmra.mxu0 %v4072
      %v5031 = vpop.f32.mrf.mxu0
      %v5032 = vadd.f32 %v4112, %v5031
      %v5033 = vpop.f32.mrf.mxu0
      %v5034 = vadd.f32 %v4116, %v5033
      %v5035 = vpop.f32.mrf.mxu0
      %v5036 = vadd.f32 %v4112, %v5035
      %v5037 = vpop.f32.mrf.mxu0
      %v5038 = vadd.f32 %v4116, %v5037
      %5039 = vmatprep.mubr.bf16.mxu0 %v4077
      %5040 = vmatmul.mubr.bf16.gmra.mxu0 %v4076
      %v5041 = vpop.f32.mrf.mxu0
      %v5042 = vadd.f32 %v4112, %v5041
      %v5043 = vpop.f32.mrf.mxu0
      %v5044 = vadd.f32 %v4116, %v5043
      %v5045 = vpop.f32.mrf.mxu0
      %v5046 = vadd.f32 %v4112, %v5045
      %v5047 = vpop.f32.mrf.mxu0
      %v5048 = vadd.f32 %v4116, %v5047
      %5049 = vmatprep.mubr.bf16.mxu0 %v4081
      %5050 = vmatmul.mubr.bf16.gmra.mxu0 %v4080
      %v5051 = vpop.f32.mrf.mxu0
      %v5052 = vadd.f32 %v4112, %v5051
      %v5053 = vpop.f32.mrf.mxu0
      %v5054 = vadd.f32 %v4116, %v5053
      %v5055 = vpop.f32.mrf.mxu0
      %v5056 = vadd.f32 %v4112, %v5055
      %v5057 = vpop.f32.mrf.mxu0
      %v5058 = vadd.f32 %v4116, %v5057
      %5059 = vmatprep.mubr.bf16.mxu0 %v4085
      %5060 = vmatmul.mubr.bf16.gmra.mxu0 %v4084
      %v5061 = vpop.f32.mrf.mxu0
      %v5062 = vadd.f32 %v4112, %v5061
      %v5063 = vpop.f32.mrf.mxu0
      %v5064 = vadd.f32 %v4116, %v5063
      %v5065 = vpop.f32.mrf.mxu0
      %v5066 = vadd.f32 %v4112, %v5065
      %v5067 = vpop.f32.mrf.mxu0
      %v5068 = vadd.f32 %v4116, %v5067
      %5069 = vmatprep.mubr.bf16.mxu0 %v4089
      %5070 = vmatmul.mubr.bf16.gmra.mxu0 %v4088
      %v5071 = vpop.f32.mrf.mxu0
      %v5072 = vadd.f32 %v4112, %v5071
      %v5073 = vpop.f32.mrf.mxu0
      %v5074 = vadd.f32 %v4116, %v5073
      %v5075 = vpop.f32.mrf.mxu0
      %v5076 = vadd.f32 %v4112, %v5075
      %v5077 = vpop.f32.mrf.mxu0
      %v5078 = vadd.f32 %v4116, %v5077
      %5079 = vmatprep.mubr.bf16.mxu0 %v4093
      %5080 = vmatmul.mubr.bf16.gmra.mxu0 %v4092
      %v5081 = vpop.f32.mrf.mxu0
      %v5082 = vadd.f32 %v4112, %v5081
      %v5083 = vpop.f32.mrf.mxu0
      %v5084 = vadd.f32 %v4116, %v5083
      %v5085 = vpop.f32.mrf.mxu0
      %v5086 = vadd.f32 %v4112, %v5085
      %v5087 = vpop.f32.mrf.mxu0
      %v5088 = vadd.f32 %v4116, %v5087
      %5089 = vmatprep.mubr.bf16.mxu0 %v4097
      %5090 = vmatmul.mubr.bf16.gmra.mxu0 %v4096
      %v5091 = vpop.f32.mrf.mxu0
      %v5092 = vadd.f32 %v4112, %v5091
      %v5093 = vpop.f32.mrf.mxu0
      %v5094 = vadd.f32 %v4116, %v5093
      %v5095 = vpop.f32.mrf.mxu0
      %v5096 = vadd.f32 %v4112, %v5095
      %v5097 = vpop.f32.mrf.mxu0
      %v5098 = vadd.f32 %v4116, %v5097
      %5099 = vdwg.mxu0
      %5100 = vmatprep.subr.bf16.mxu0 %v4600
      %5101 = vmatpush1.bf16.msra.mxu0 %v4599
      %5102 = vmatprep.subr.bf16.mxu0 %v4596
      %5103 = vmatpush1.bf16.msra.mxu0 %v4595
      %5104 = vmatprep.subr.bf16.mxu0 %v4592
      %5105 = vmatpush1.bf16.msra.mxu0 %v4591
      %5106 = vmatprep.subr.bf16.mxu0 %v4588
      %5107 = vmatpush1.bf16.msra.mxu0 %v4587
      %5108 = vmatprep.subr.bf16.mxu0 %v4584
      %5109 = vmatpush1.bf16.msra.mxu0 %v4583
      %5110 = vmatprep.subr.bf16.mxu0 %v4580
      %5111 = vmatpush1.bf16.msra.mxu0 %v4579
      %5112 = vmatprep.subr.bf16.mxu0 %v4576
      %5113 = vmatpush1.bf16.msra.mxu0 %v4575
      %5114 = vmatprep.subr.bf16.mxu0 %v4572
      %5115 = vmatpush1.bf16.msra.mxu0 %v4571
      %5116 = vmatprep.subr.bf16.mxu0 %v4632
      %5117 = vmatpush2.bf16.msra.mxu0 %v4631
      %5118 = vmatprep.subr.bf16.mxu0 %v4628
      %5119 = vmatpush2.bf16.msra.mxu0 %v4627
      %5120 = vmatprep.subr.bf16.mxu0 %v4624
      %5121 = vmatpush2.bf16.msra.mxu0 %v4623
      %5122 = vmatprep.subr.bf16.mxu0 %v4620
      %5123 = vmatpush2.bf16.msra.mxu0 %v4619
      %5124 = vmatprep.subr.bf16.mxu0 %v4616
      %5125 = vmatpush2.bf16.msra.mxu0 %v4615
      %5126 = vmatprep.subr.bf16.mxu0 %v4612
      %5127 = vmatpush2.bf16.msra.mxu0 %v4611
      %5128 = vmatprep.subr.bf16.mxu0 %v4608
      %5129 = vmatpush2.bf16.msra.mxu0 %v4607
      %5130 = vmatprep.subr.bf16.mxu0 %v4604
      %5131 = vmatpush2.bf16.msra.mxu0 %v4603
      %5132 = vmatprep.mubr.bf16.mxu0 %v4071
      %5133 = vmatmul.mubr.bf16.gmra.mxu0 %v4070
      %v5134 = vpop.f32.mrf.mxu0
      %v5135 = vadd.f32 %v5022, %v5134
      %v5136 = vpop.f32.mrf.mxu0
      %v5137 = vadd.f32 %v5024, %v5136
      %v5138 = vpop.f32.mrf.mxu0
      %v5139 = vadd.f32 %v5026, %v5138
      %v5140 = vpop.f32.mrf.mxu0
      %v5141 = vadd.f32 %v5028, %v5140
      %5142 = vmatprep.mubr.bf16.mxu0 %v4075
      %5143 = vmatmul.mubr.bf16.gmra.mxu0 %v4074
      %v5144 = vpop.f32.mrf.mxu0
      %v5145 = vadd.f32 %v5032, %v5144
      %v5146 = vpop.f32.mrf.mxu0
      %v5147 = vadd.f32 %v5034, %v5146
      %v5148 = vpop.f32.mrf.mxu0
      %v5149 = vadd.f32 %v5036, %v5148
      %v5150 = vpop.f32.mrf.mxu0
      %v5151 = vadd.f32 %v5038, %v5150
      %5152 = vmatprep.mubr.bf16.mxu0 %v4079
      %5153 = vmatmul.mubr.bf16.gmra.mxu0 %v4078
      %v5154 = vpop.f32.mrf.mxu0
      %v5155 = vadd.f32 %v5042, %v5154
      %v5156 = vpop.f32.mrf.mxu0
      %v5157 = vadd.f32 %v5044, %v5156
      %v5158 = vpop.f32.mrf.mxu0
      %v5159 = vadd.f32 %v5046, %v5158
      %v5160 = vpop.f32.mrf.mxu0
      %v5161 = vadd.f32 %v5048, %v5160
      %5162 = vmatprep.mubr.bf16.mxu0 %v4083
      %5163 = vmatmul.mubr.bf16.gmra.mxu0 %v4082
      %v5164 = vpop.f32.mrf.mxu0
      %v5165 = vadd.f32 %v5052, %v5164
      %v5166 = vpop.f32.mrf.mxu0
      %v5167 = vadd.f32 %v5054, %v5166
      %v5168 = vpop.f32.mrf.mxu0
      %v5169 = vadd.f32 %v5056, %v5168
      %v5170 = vpop.f32.mrf.mxu0
      %v5171 = vadd.f32 %v5058, %v5170
      %5172 = vmatprep.mubr.bf16.mxu0 %v4087
      %5173 = vmatmul.mubr.bf16.gmra.mxu0 %v4086
      %v5174 = vpop.f32.mrf.mxu0
      %v5175 = vadd.f32 %v5062, %v5174
      %v5176 = vpop.f32.mrf.mxu0
      %v5177 = vadd.f32 %v5064, %v5176
      %v5178 = vpop.f32.mrf.mxu0
      %v5179 = vadd.f32 %v5066, %v5178
      %v5180 = vpop.f32.mrf.mxu0
      %v5181 = vadd.f32 %v5068, %v5180
      %5182 = vmatprep.mubr.bf16.mxu0 %v4091
      %5183 = vmatmul.mubr.bf16.gmra.mxu0 %v4090
      %v5184 = vpop.f32.mrf.mxu0
      %v5185 = vadd.f32 %v5072, %v5184
      %v5186 = vpop.f32.mrf.mxu0
      %v5187 = vadd.f32 %v5074, %v5186
      %v5188 = vpop.f32.mrf.mxu0
      %v5189 = vadd.f32 %v5076, %v5188
      %v5190 = vpop.f32.mrf.mxu0
      %v5191 = vadd.f32 %v5078, %v5190
      %5192 = vmatprep.mubr.bf16.mxu0 %v4095
      %5193 = vmatmul.mubr.bf16.gmra.mxu0 %v4094
      %v5194 = vpop.f32.mrf.mxu0
      %v5195 = vadd.f32 %v5082, %v5194
      %v5196 = vpop.f32.mrf.mxu0
      %v5197 = vadd.f32 %v5084, %v5196
      %v5198 = vpop.f32.mrf.mxu0
      %v5199 = vadd.f32 %v5086, %v5198
      %v5200 = vpop.f32.mrf.mxu0
      %v5201 = vadd.f32 %v5088, %v5200
      %5202 = vmatprep.mubr.bf16.mxu0 %v4099
      %5203 = vmatmul.mubr.bf16.gmra.mxu0 %v4098
      %v5204 = vpop.f32.mrf.mxu0
      %v5205 = vadd.f32 %v5092, %v5204
      %v5206 = vpop.f32.mrf.mxu0
      %v5207 = vadd.f32 %v5094, %v5206
      %v5208 = vpop.f32.mrf.mxu0
      %v5209 = vadd.f32 %v5096, %v5208
      %v5210 = vpop.f32.mrf.mxu0
      %v5211 = vadd.f32 %v5098, %v5210
      %5212 = vdwg.mxu0
      %v5213 = vadd.f32 %v4909, %v3813
      %v5214 = vadd.f32 %v4911, %v3815
      %v5215 = vadd.f32 %v5135, %v3926
      %v5216 = vadd.f32 %v5137, %v3928
      %v5217 = vadd.f32 %v4913, %v3817
      %v5218 = vadd.f32 %v4915, %v3819
      %v5219 = vadd.f32 %v5139, %v3930
      %v5220 = vadd.f32 %v5141, %v3932
      %v5221 = vadd.f32 %v4919, %v3823
      %v5222 = vadd.f32 %v4921, %v3825
      %v5223 = vadd.f32 %v5145, %v3936
      %v5224 = vadd.f32 %v5147, %v3938
      %v5225 = vadd.f32 %v4923, %v3827
      %v5226 = vadd.f32 %v4925, %v3829
      %v5227 = vadd.f32 %v5149, %v3940
      %v5228 = vadd.f32 %v5151, %v3942
      %v5229 = vadd.f32 %v4929, %v3833
      %v5230 = vadd.f32 %v4931, %v3835
      %v5231 = vadd.f32 %v5155, %v3946
      %v5232 = vadd.f32 %v5157, %v3948
      %v5233 = vadd.f32 %v4933, %v3837
      %v5234 = vadd.f32 %v4935, %v3839
      %v5235 = vadd.f32 %v5159, %v3950
      %v5236 = vadd.f32 %v5161, %v3952
      %v5237 = vadd.f32 %v4939, %v3843
      %v5238 = vadd.f32 %v4941, %v3845
      %v5239 = vadd.f32 %v5165, %v3956
      %v5240 = vadd.f32 %v5167, %v3958
      %v5241 = vadd.f32 %v4943, %v3847
      %v5242 = vadd.f32 %v4945, %v3849
      %v5243 = vadd.f32 %v5169, %v3960
      %v5244 = vadd.f32 %v5171, %v3962
      %v5245 = vadd.f32 %v4949, %v3853
      %v5246 = vadd.f32 %v4951, %v3855
      %v5247 = vadd.f32 %v5175, %v3966
      %v5248 = vadd.f32 %v5177, %v3968
      %v5249 = vadd.f32 %v4953, %v3857
      %v5250 = vadd.f32 %v4955, %v3859
      %v5251 = vadd.f32 %v5179, %v3970
      %v5252 = vadd.f32 %v5181, %v3972
      %v5253 = vadd.f32 %v4959, %v3863
      %v5254 = vadd.f32 %v4961, %v3865
      %v5255 = vadd.f32 %v5185, %v3976
      %v5256 = vadd.f32 %v5187, %v3978
      %v5257 = vadd.f32 %v4963, %v3867
      %v5258 = vadd.f32 %v4965, %v3869
      %v5259 = vadd.f32 %v5189, %v3980
      %v5260 = vadd.f32 %v5191, %v3982
      %v5261 = vadd.f32 %v4969, %v3873
      %v5262 = vadd.f32 %v4971, %v3875
      %v5263 = vadd.f32 %v5195, %v3986
      %v5264 = vadd.f32 %v5197, %v3988
      %v5265 = vadd.f32 %v4973, %v3877
      %v5266 = vadd.f32 %v4975, %v3879
      %v5267 = vadd.f32 %v5199, %v3990
      %v5268 = vadd.f32 %v5201, %v3992
      %v5269 = vadd.f32 %v4979, %v3883
      %v5270 = vadd.f32 %v4981, %v3885
      %v5271 = vadd.f32 %v5205, %v3996
      %v5272 = vadd.f32 %v5207, %v3998
      %v5273 = vadd.f32 %v4983, %v3887
      %v5274 = vadd.f32 %v4985, %v3889
      %v5275 = vadd.f32 %v5209, %v4000
      %v5276 = vadd.f32 %v5211, %v4002
      %v5277 = vmax.f32 %v5213, 0.0
      %v5278 = vmax.f32 %v5214, 0.0
      %v5279 = vmax.f32 %v5215, 0.0
      %v5280 = vmax.f32 %v5216, 0.0
      %v5281 = vmax.f32 %v5217, 0.0
      %v5282 = vmax.f32 %v5218, 0.0
      %v5283 = vmax.f32 %v5219, 0.0
      %v5284 = vmax.f32 %v5220, 0.0
      %v5285 = vmax.f32 %v5221, 0.0
      %v5286 = vmax.f32 %v5222, 0.0
      %v5287 = vmax.f32 %v5223, 0.0
      %v5288 = vmax.f32 %v5224, 0.0
      %v5289 = vmax.f32 %v5225, 0.0
      %v5290 = vmax.f32 %v5226, 0.0
      %v5291 = vmax.f32 %v5227, 0.0
      %v5292 = vmax.f32 %v5228, 0.0
      %v5293 = vmax.f32 %v5229, 0.0
      %v5294 = vmax.f32 %v5230, 0.0
      %v5295 = vmax.f32 %v5231, 0.0
      %v5296 = vmax.f32 %v5232, 0.0
      %v5297 = vmax.f32 %v5233, 0.0
      %v5298 = vmax.f32 %v5234, 0.0
      %v5299 = vmax.f32 %v5235, 0.0
      %v5300 = vmax.f32 %v5236, 0.0
      %v5301 = vmax.f32 %v5237, 0.0
      %v5302 = vmax.f32 %v5238, 0.0
      %v5303 = vmax.f32 %v5239, 0.0
      %v5304 = vmax.f32 %v5240, 0.0
      %v5305 = vmax.f32 %v5241, 0.0
      %v5306 = vmax.f32 %v5242, 0.0
      %v5307 = vmax.f32 %v5243, 0.0
      %v5308 = vmax.f32 %v5244, 0.0
      %v5309 = vmax.f32 %v5245, 0.0
      %v5310 = vmax.f32 %v5246, 0.0
      %v5311 = vmax.f32 %v5247, 0.0
      %v5312 = vmax.f32 %v5248, 0.0
      %v5313 = vmax.f32 %v5249, 0.0
      %v5314 = vmax.f32 %v5250, 0.0
      %v5315 = vmax.f32 %v5251, 0.0
      %v5316 = vmax.f32 %v5252, 0.0
      %v5317 = vmax.f32 %v5253, 0.0
      %v5318 = vmax.f32 %v5254, 0.0
      %v5319 = vmax.f32 %v5255, 0.0
      %v5320 = vmax.f32 %v5256, 0.0
      %v5321 = vmax.f32 %v5257, 0.0
      %v5322 = vmax.f32 %v5258, 0.0
      %v5323 = vmax.f32 %v5259, 0.0
      %v5324 = vmax.f32 %v5260, 0.0
      %v5325 = vmax.f32 %v5261, 0.0
      %v5326 = vmax.f32 %v5262, 0.0
      %v5327 = vmax.f32 %v5263, 0.0
      %v5328 = vmax.f32 %v5264, 0.0
      %v5329 = vmax.f32 %v5265, 0.0
      %v5330 = vmax.f32 %v5266, 0.0
      %v5331 = vmax.f32 %v5267, 0.0
      %v5332 = vmax.f32 %v5268, 0.0
      %v5333 = vmax.f32 %v5269, 0.0
      %v5334 = vmax.f32 %v5270, 0.0
      %v5335 = vmax.f32 %v5271, 0.0
      %v5336 = vmax.f32 %v5272, 0.0
      %v5337 = vmax.f32 %v5273, 0.0
      %v5338 = vmax.f32 %v5274, 0.0
      %v5339 = vmax.f32 %v5275, 0.0
      %v5340 = vmax.f32 %v5276, 0.0
      %v5341 = vld [vmem:[%s643] sm:$0xf]
      %v5342 = vpack.c.bf16 %v5281, %v5277
      %v5343 = vpack.c.bf16 %v5282, %v5278
      %v5344 = vpack.c.bf16 %v5283, %v5279
      %v5345 = vpack.c.bf16 %v5284, %v5280
      %v5346 = vpack.c.bf16 %v5289, %v5285
      %v5347 = vpack.c.bf16 %v5290, %v5286
      %v5348 = vpack.c.bf16 %v5291, %v5287
      %v5349 = vpack.c.bf16 %v5292, %v5288
      %v5350 = vpack.c.bf16 %v5297, %v5293
      %v5351 = vpack.c.bf16 %v5298, %v5294
      %v5352 = vpack.c.bf16 %v5299, %v5295
      %v5353 = vpack.c.bf16 %v5300, %v5296
      %v5354 = vpack.c.bf16 %v5305, %v5301
      %v5355 = vpack.c.bf16 %v5306, %v5302
      %v5356 = vpack.c.bf16 %v5307, %v5303
      %v5357 = vpack.c.bf16 %v5308, %v5304
      %v5358 = vpack.c.bf16 %v5313, %v5309
      %v5359 = vpack.c.bf16 %v5314, %v5310
      %v5360 = vpack.c.bf16 %v5315, %v5311
      %v5361 = vpack.c.bf16 %v5316, %v5312
      %v5362 = vpack.c.bf16 %v5321, %v5317
      %v5363 = vpack.c.bf16 %v5322, %v5318
      %v5364 = vpack.c.bf16 %v5323, %v5319
      %v5365 = vpack.c.bf16 %v5324, %v5320
      %v5366 = vpack.c.bf16 %v5329, %v5325
      %v5367 = vpack.c.bf16 %v5330, %v5326
      %v5368 = vpack.c.bf16 %v5331, %v5327
      %v5369 = vpack.c.bf16 %v5332, %v5328
      %v5370 = vpack.c.bf16 %v5337, %v5333
      %v5371 = vpack.c.bf16 %v5338, %v5334
      %v5372 = vpack.c.bf16 %v5339, %v5335
      %v5373 = vpack.c.bf16 %v5340, %v5336
      %5374 = vmatprep.subr.bf16.mxu0 %v5371
      %5375 = vmatpush1.bf16.msra.mxu0 %v5370
      %5376 = vmatprep.subr.bf16.mxu0 %v5367
      %5377 = vmatpush1.bf16.msra.mxu0 %v5366
      %5378 = vmatprep.subr.bf16.mxu0 %v5363
      %5379 = vmatpush1.bf16.msra.mxu0 %v5362
      %5380 = vmatprep.subr.bf16.mxu0 %v5359
      %5381 = vmatpush1.bf16.msra.mxu0 %v5358
      %5382 = vmatprep.subr.bf16.mxu0 %v5355
      %5383 = vmatpush1.bf16.msra.mxu0 %v5354
      %5384 = vmatprep.subr.bf16.mxu0 %v5351
      %5385 = vmatpush1.bf16.msra.mxu0 %v5350
      %5386 = vmatprep.subr.bf16.mxu0 %v5347
      %5387 = vmatpush1.bf16.msra.mxu0 %v5346
      %5388 = vmatprep.subr.bf16.mxu0 %v5343
      %5389 = vmatpush1.bf16.msra.mxu0 %v5342
      %5390 = vmatprep.subr.bf16.mxu0 0
      %5391 = vmatpush2.bf16.msra.mxu0 0
      %5392 = vmatprep.subr.bf16.mxu0 0
      %5393 = vmatpush2.bf16.msra.mxu0 0
      %5394 = vmatprep.subr.bf16.mxu0 0
      %5395 = vmatpush2.bf16.msra.mxu0 0
      %5396 = vmatprep.subr.bf16.mxu0 0
      %5397 = vmatpush2.bf16.msra.mxu0 0
      %5398 = vmatprep.subr.bf16.mxu0 0
      %5399 = vmatpush2.bf16.msra.mxu0 0
      %5400 = vmatprep.subr.bf16.mxu0 0
      %5401 = vmatpush2.bf16.msra.mxu0 0
      %5402 = vmatprep.subr.bf16.mxu0 0
      %5403 = vmatpush2.bf16.msra.mxu0 0
      %5404 = vmatprep.subr.bf16.mxu0 0
      %5405 = vmatpush2.bf16.msra.mxu0 0
      %5406 = vmatprep.mubr.bf16.mxu0 0
      %5407 = vmatmul.mubr.bf16.gmra.mxu0 %v5341
      %v5408 = vpop.f32.mrf.mxu0
      %v5409 = vadd.f32 0.0, %v5408
      %v5410 = vpop.f32.mrf.mxu0
      %v5411 = vadd.f32 0.0, %v5410
      %v5412 = vpop.f32.mrf.mxu0
      %v5413 = vpop.f32.mrf.mxu0
      %5414 = vdwg.mxu0
      %5415 = vmatprep.subr.bf16.mxu0 %v5373
      %5416 = vmatpush1.bf16.msra.mxu0 %v5372
      %5417 = vmatprep.subr.bf16.mxu0 %v5369
      %5418 = vmatpush1.bf16.msra.mxu0 %v5368
      %5419 = vmatprep.subr.bf16.mxu0 %v5365
      %5420 = vmatpush1.bf16.msra.mxu0 %v5364
      %5421 = vmatprep.subr.bf16.mxu0 %v5361
      %5422 = vmatpush1.bf16.msra.mxu0 %v5360
      %5423 = vmatprep.subr.bf16.mxu0 %v5357
      %5424 = vmatpush1.bf16.msra.mxu0 %v5356
      %5425 = vmatprep.subr.bf16.mxu0 %v5353
      %5426 = vmatpush1.bf16.msra.mxu0 %v5352
      %5427 = vmatprep.subr.bf16.mxu0 %v5349
      %5428 = vmatpush1.bf16.msra.mxu0 %v5348
      %5429 = vmatprep.subr.bf16.mxu0 %v5345
      %5430 = vmatpush1.bf16.msra.mxu0 %v5344
      %5431 = vmatprep.subr.bf16.mxu0 0
      %5432 = vmatpush2.bf16.msra.mxu0 0
      %5433 = vmatprep.subr.bf16.mxu0 0
      %5434 = vmatpush2.bf16.msra.mxu0 0
      %5435 = vmatprep.subr.bf16.mxu0 0
      %5436 = vmatpush2.bf16.msra.mxu0 0
      %5437 = vmatprep.subr.bf16.mxu0 0
      %5438 = vmatpush2.bf16.msra.mxu0 0
      %5439 = vmatprep.subr.bf16.mxu0 0
      %5440 = vmatpush2.bf16.msra.mxu0 0
      %5441 = vmatprep.subr.bf16.mxu0 0
      %5442 = vmatpush2.bf16.msra.mxu0 0
      %5443 = vmatprep.subr.bf16.mxu0 0
      %5444 = vmatpush2.bf16.msra.mxu0 0
      %5445 = vmatprep.subr.bf16.mxu0 0
      %5446 = vmatpush2.bf16.msra.mxu0 0
      %5447 = vmatprep.mubr.bf16.mxu0 0
      %5448 = vmatmul.mubr.bf16.gmra.mxu0 %v5341
      %v5449 = vpop.f32.mrf.mxu0
      %v5450 = vadd.f32 0.0, %v5449
      %v5451 = vpop.f32.mrf.mxu0
      %v5452 = vadd.f32 0.0, %v5451
      %v5453 = vpop.f32.mrf.mxu0
      %v5454 = vpop.f32.mrf.mxu0
      %5455 = vdwg.mxu0
      %5456 = vst [vmem:[%s648] sm:$0xff] %v5409
      %5457 = vst [vmem:[%s648 + $0x8] sm:$0xff] %v5411
      %5458 = vst [vmem:[%s648 + $0x10] sm:$0xff] %v5450
      %5459 = vst [vmem:[%s648 + $0x18] sm:$0xff] %v5452
      %p5460 = scmp.lt.s32.totalorder %s31, 3
      %s5461 = scalar_select %p5460, %s31, 3
      %s5462 = smul.addr %s5461, 4
      %s5463 = smul.addr %s5462, 8
      %s5464 = scalar_lea.vmem %s20, %s5463
      // Predicated region
      $region101: #{resnet_forward.2} parent=99 // pred_check
        %p5465 = pneg %p479
      $region102: #{resnet_forward.2} parent=99 // pred_check_branch
        %5467 = sbr.rel (%p5465) target = $region104
      $region103: #{resnet_forward.2} parent=99 // pred_region
        _
      $region104: #{resnet_forward.2} parent=99 // pred_fallthru
        _
    $region100: #{resnet_forward.2} parent=5 // pred_fallthru
      _
    %p5468 = scmp.le.s32.totalorder 2, %s26
    // Predicated region
    $region105: #{resnet_forward.2} parent=5 // pred_check
      %p5469 = pneg %p5468
    $region106: #{resnet_forward.2} parent=5 // pred_check_branch
      %5471 = sbr.rel (%p5469) target = $region108
    $region107: #{resnet_forward.2} parent=5 // pred_region
      %s5472 = ssub.s32 %s26, 2
      // Predicated region
      $region109: #{resnet_forward.2} parent=107 // pred_check
        %p5473 = pneg %p485
      $region110: #{resnet_forward.2} parent=107 // pred_check_branch
        %5475 = sbr.rel (%p5473) target = $region112
      $region111: #{resnet_forward.2} parent=107 // pred_region
        %p5476 = scmp.lt.s32.totalorder %s32, 3
        %s5477 = scalar_select %p5476, %s32, 3
        %s5478 = smul.addr %s5477, 4
        %s5479 = smul.addr %s5478, 8
        %s5480 = scalar_lea.vmem %s20, %s5479
      $region112: #{resnet_forward.2} parent=107 // pred_fallthru
        _
    $region108: #{resnet_forward.2} parent=5 // pred_fallthru
      _
  $region6: #{resnet_forward.2} parent=0 // loop_footer
    %s30 = sadd.s32 1, %s26
  $region7: #{resnet_forward.2} parent=0 // loop_footer_branch
    %25 = sbr.rel target = $region3
  $region8: #{resnet_forward.2} parent=0 // loop_exit
    _

</llo_original>
